<compile_context>
chip_gen: v6e
topology: v6e:2x2x1
jax: 0.10.0
libtpu: 0.0.40
codegen_flags: <defaults>
</compile_context>

<pallas_src>
import math

import jax
import jax.numpy as jnp
from jax.experimental import pallas as pl
from jax.experimental.pallas import tpu as pltpu

# ---------------- config ----------------
B = 2            # batch
S = 16           # sequence length
H = 128          # hidden size
NUM_HEADS = 4
HEAD_DIM = H // NUM_HEADS
INTER = 256      # intermediate size
VOCAB = 512      # vocab_size == num_labels
MAXPOS = 32
LN_EPS = 1e-12
BS = B * S       # flat token count


# ---------------- kernel helpers ----------------
def _layer_norm(x, g, b, eps=LN_EPS):
    mu = jnp.mean(x, axis=-1, keepdims=True)
    xc = x - mu
    var = jnp.mean(xc * xc, axis=-1, keepdims=True)
    return xc * jax.lax.rsqrt(var + eps) * g + b


def _gelu(x):
    # TODO(synk): HF BERT uses exact erf-GELU; tanh approximation kept for a
    # guaranteed Mosaic lowering (matches the previously validated version).
    c = math.sqrt(2.0 / math.pi)
    return 0.5 * x * (1.0 + jnp.tanh(c * (x + 0.044715 * x * x * x)))


# ---------------- single fused kernel ----------------
def fused_kcbert_kernel(ids_ref, seg_ref,
                        word_emb, pos_emb, type_emb,
                        ln_eg, ln_eb,
                        wq_h, bq_h, wk_h, bk_h, wv_h, bv_h, wo_h, bo,
                        ln_ag, ln_ab,
                        w1, b1, w2, b2,
                        ln_fg, ln_fb,
                        wc, bc,
                        out_ref):
    ids = ids_ref[...]                                   # (B, S) int32
    seg = seg_ref[...]                                   # (B, S) int32

    # ---- embeddings (word gather done as a one-hot MXU matmul, no XLA gather)
    viota = jax.lax.broadcasted_iota(jnp.int32, (B, S, VOCAB), 2)
    onehot = (ids[:, :, None] == viota).astype(jnp.float32).reshape(BS, VOCAB)
    word = jnp.dot(onehot, word_emb[...], preferred_element_type=jnp.float32)

    pos = jnp.broadcast_to(pos_emb[0:S, :][None, :, :], (B, S, H)).reshape(BS, H)

    t0 = type_emb[0:1, :]                                # (1, H)
    t1 = type_emb[1:2, :]                                # (1, H)
    segf = seg[:, :, None].astype(jnp.float32)           # (B, S, 1), values in {0,1}
    tok_type = (t0[None, :, :] + segf * (t1 - t0)[None, :, :]).reshape(BS, H)

    x = _layer_norm(word + pos + tok_type, ln_eg[...], ln_eb[...])   # (BS, H) f32

    # additive attention bias over keys, broadcast over query rows in-kernel
    key_bias = jnp.where(ids == 0, -10000.0, 0.0).astype(jnp.float32)  # (B, S)
    bias_b = key_bias[:, None, :]                                       # (B, 1, S)

    # ---- self-attention: per-head weights pre-split in wrapper -> no lane
    #      slicing of activations, no explicit K transpose, no concat of heads.
    x_bf = x.astype(jnp.bfloat16)
    scale = 1.0 / math.sqrt(HEAD_DIM)
    attn = jnp.zeros((BS, H), jnp.float32)
    for h in range(NUM_HEADS):                            # static unroll (4)
        q = jnp.dot(x_bf, wq_h[h], preferred_element_type=jnp.float32) + bq_h[h]
        k = jnp.dot(x_bf, wk_h[h], preferred_element_type=jnp.float32) + bk_h[h]
        v = jnp.dot(x_bf, wv_h[h], preferred_element_type=jnp.float32) + bv_h[h]
        q3 = q.reshape(B, S, HEAD_DIM)
        k3 = k.reshape(B, S, HEAD_DIM)
        v3 = v.reshape(B, S, HEAD_DIM)
        s = jnp.einsum('bqd,bkd->bqk', q3, k3,
                       preferred_element_type=jnp.float32) * scale + bias_b
        s = s - jnp.max(s, axis=-1, keepdims=True)
        p = jnp.exp(s)
        p = p / jnp.sum(p, axis=-1, keepdims=True)
        ctx = jnp.einsum('bqk,bkd->bqd', p, v3,
                         preferred_element_type=jnp.float32)          # (B,S,HD)
        ctx2 = ctx.reshape(BS, HEAD_DIM).astype(jnp.bfloat16)
        attn = attn + jnp.dot(ctx2, wo_h[h], preferred_element_type=jnp.float32)
    attn = attn + bo[...]
    x = _layer_norm(x + attn, ln_ag[...], ln_ab[...])     # post-attention LN

    # ---- feed-forward
    hmid = _gelu(jnp.dot(x.astype(jnp.bfloat16), w1[...],
                         preferred_element_type=jnp.float32) + b1[...])
    ffn = jnp.dot(hmid.astype(jnp.bfloat16), w2[...],
                  preferred_element_type=jnp.float32) + b2[...]
    x = _layer_norm(x + ffn, ln_fg[...], ln_fb[...])      # post-FFN LN

    # ---- token-classification head + log_softmax (full vocab resident, 512 lanes)
    logits = jnp.dot(x.astype(jnp.bfloat16), wc[...],
                     preferred_element_type=jnp.float32) + bc[...]    # (BS, V)
    m = jnp.max(logits, axis=-1, keepdims=True)
    sh = logits - m
    lse = jnp.log(jnp.sum(jnp.exp(sh), axis=-1, keepdims=True))
    out_ref[...] = sh - lse


def _full_spec(shape):
    nd = len(shape)
    return pl.BlockSpec(shape, lambda i, _nd=nd: (0,) * _nd)


# ---------------- full forward ----------------
def kcbert_reconstruct_forward(src_input_sentence, src_segment, params):
    attention_mask = src_input_sentence != 0                          # (B, S) bool

    bf16 = jnp.bfloat16
    # layout plumbing (free, in XLA): per-head weight/bias splits + bf16 casts.
    split_cols = lambda w: jnp.transpose(
        w.reshape(H, NUM_HEADS, HEAD_DIM), (1, 0, 2)).astype(bf16)    # (NH, H, HD)
    split_bias = lambda b: b.reshape(NUM_HEADS, 1, HEAD_DIM)          # (NH, 1, HD)

    operands = [
        src_input_sentence.astype(jnp.int32),
        src_segment.astype(jnp.int32),
        params["word_emb"], params["pos_emb"], params["type_emb"],
        params["ln_eg"], params["ln_eb"],
        split_cols(params["wq"]), split_bias(params["bq"]),
        split_cols(params["wk"]), split_bias(params["bk"]),
        split_cols(params["wv"]), split_bias(params["bv"]),
        params["wo"].reshape(NUM_HEADS, HEAD_DIM, H).astype(bf16), params["bo"],
        params["ln_ag"], params["ln_ab"],
        params["w1"].astype(bf16), params["b1"],
        params["w2"].astype(bf16), params["b2"],
        params["ln_fg"], params["ln_fb"],
        params["wc"].astype(bf16), params["bc"],
    ]

    log_probs_flat = pl.pallas_call(
        fused_kcbert_kernel,
        out_shape=jax.ShapeDtypeStruct((BS, VOCAB), jnp.float32),
        grid=(1,),
        in_specs=[_full_spec(op.shape) for op in operands],
        out_specs=_full_spec((BS, VOCAB)),
        compiler_params=pltpu.CompilerParams(dimension_semantics=("arbitrary",)),
    )(*operands)

    return log_probs_flat.reshape(B, S, VOCAB), attention_mask


def make_params(key):
    ks = jax.random.split(key, 16)
    n = lambda k, shp: jax.random.normal(k, shp, jnp.float32) * 0.02
    zeros = lambda shp: jnp.zeros(shp, jnp.float32)
    ones = lambda shp: jnp.ones(shp, jnp.float32)
    return {
        "word_emb": n(ks[0], (VOCAB, H)),
        "pos_emb": n(ks[1], (MAXPOS, H)),
        "type_emb": n(ks[2], (2, H)),
        "ln_eg": ones((1, H)), "ln_eb": zeros((1, H)),
        "wq": n(ks[3], (H, H)), "bq": zeros((1, H)),
        "wk": n(ks[4], (H, H)), "bk": zeros((1, H)),
        "wv": n(ks[5], (H, H)), "bv": zeros((1, H)),
        "wo": n(ks[6], (H, H)), "bo": zeros((1, H)),
        "ln_ag": ones((1, H)), "ln_ab": zeros((1, H)),
        "w1": n(ks[7], (H, INTER)), "b1": zeros((1, INTER)),
        "w2": n(ks[8], (INTER, H)), "b2": zeros((1, H)),
        "ln_fg": ones((1, H)), "ln_fb": zeros((1, H)),
        "wc": n(ks[9], (H, VOCAB)), "bc": zeros((1, VOCAB)),
    }


if __name__ == "__main__":
    key = jax.random.PRNGKey(0)
    pkey, ikey = jax.random.split(key)
    params = make_params(pkey)

    # deterministic example inputs: token ids in [1, VOCAB), trailing padding = 0
    ids = jax.random.randint(ikey, (B, S), 1, VOCAB, dtype=jnp.int32)
    ids = ids.at[0, -3:].set(0).at[1, -5:].set(0)          # pad tokens
    seg = jnp.zeros((B, S), jnp.int32).at[:, S // 2:].set(1)

    forward = jax.jit(kcbert_reconstruct_forward)
    log_probs, mask = forward(ids, seg, params)
    jax.block_until_ready(log_probs)

    # out[attention_mask]: dynamic-shape boolean gather done eagerly on concrete
    # arrays (no clean in-kernel equivalent for a dynamic-size output).
    out = log_probs[mask]                                  # (num_valid_tokens, VOCAB)
    assert out.shape == (int(mask.sum()), VOCAB)
    assert bool(jnp.all(jnp.isfinite(out)))

    print("KERNEL_OK")
</pallas_src>

<mosaic_0001>
module attributes {stable_mosaic.version = 11 : i64} {
  func.func @fused_kcbert_kernel(%arg0: i32, %arg1: memref<2x16xi32, #tpu.memory_space<vmem>>, %arg2: memref<2x16xi32, #tpu.memory_space<vmem>>, %arg3: memref<512x128xf32, #tpu.memory_space<vmem>>, %arg4: memref<32x128xf32, #tpu.memory_space<vmem>>, %arg5: memref<2x128xf32, #tpu.memory_space<vmem>>, %arg6: memref<1x128xf32, #tpu.memory_space<vmem>>, %arg7: memref<1x128xf32, #tpu.memory_space<vmem>>, %arg8: memref<4x128x32xbf16, #tpu.memory_space<vmem>>, %arg9: memref<4x1x32xf32, #tpu.memory_space<vmem>>, %arg10: memref<4x128x32xbf16, #tpu.memory_space<vmem>>, %arg11: memref<4x1x32xf32, #tpu.memory_space<vmem>>, %arg12: memref<4x128x32xbf16, #tpu.memory_space<vmem>>, %arg13: memref<4x1x32xf32, #tpu.memory_space<vmem>>, %arg14: memref<4x32x128xbf16, #tpu.memory_space<vmem>>, %arg15: memref<1x128xf32, #tpu.memory_space<vmem>>, %arg16: memref<1x128xf32, #tpu.memory_space<vmem>>, %arg17: memref<1x128xf32, #tpu.memory_space<vmem>>, %arg18: memref<128x256xbf16, #tpu.memory_space<vmem>>, %arg19: memref<1x256xf32, #tpu.memory_space<vmem>>, %arg20: memref<256x128xbf16, #tpu.memory_space<vmem>>, %arg21: memref<1x128xf32, #tpu.memory_space<vmem>>, %arg22: memref<1x128xf32, #tpu.memory_space<vmem>>, %arg23: memref<1x128xf32, #tpu.memory_space<vmem>>, %arg24: memref<128x512xbf16, #tpu.memory_space<vmem>>, %arg25: memref<1x512xf32, #tpu.memory_space<vmem>>, %arg26: memref<32x512xf32, #tpu.memory_space<vmem>>) attributes {dimension_semantics = [#tpu.dimension_semantics<arbitrary>], iteration_bounds = array<i64: 1>, scalar_prefetch = 0 : i64, scratch_operands = 0 : i64, tpu.core_type = #tpu.core_type<tc>, window_params = [{pipeline_mode = #tpu.pipeline_mode<synchronous>, transform_indices = @transform_0, window_bounds = array<i64: 2, 16>}, {pipeline_mode = #tpu.pipeline_mode<synchronous>, transform_indices = @transform_1, window_bounds = array<i64: 2, 16>}, {pipeline_mode = #tpu.pipeline_mode<synchronous>, transform_indices = @transform_2, window_bounds = array<i64: 512, 128>}, {pipeline_mode = #tpu.pipeline_mode<synchronous>, transform_indices = @transform_3, window_bounds = array<i64: 32, 128>}, {pipeline_mode = #tpu.pipeline_mode<synchronous>, transform_indices = @transform_4, window_bounds = array<i64: 2, 128>}, {pipeline_mode = #tpu.pipeline_mode<synchronous>, transform_indices = @transform_5, window_bounds = array<i64: 1, 128>}, {pipeline_mode = #tpu.pipeline_mode<synchronous>, transform_indices = @transform_6, window_bounds = array<i64: 1, 128>}, {pipeline_mode = #tpu.pipeline_mode<synchronous>, transform_indices = @transform_7, window_bounds = array<i64: 4, 128, 32>}, {pipeline_mode = #tpu.pipeline_mode<synchronous>, transform_indices = @transform_8, window_bounds = array<i64: 4, 1, 32>}, {pipeline_mode = #tpu.pipeline_mode<synchronous>, transform_indices = @transform_9, window_bounds = array<i64: 4, 128, 32>}, {pipeline_mode = #tpu.pipeline_mode<synchronous>, transform_indices = @transform_10, window_bounds = array<i64: 4, 1, 32>}, {pipeline_mode = #tpu.pipeline_mode<synchronous>, transform_indices = @transform_11, window_bounds = array<i64: 4, 128, 32>}, {pipeline_mode = #tpu.pipeline_mode<synchronous>, transform_indices = @transform_12, window_bounds = array<i64: 4, 1, 32>}, {pipeline_mode = #tpu.pipeline_mode<synchronous>, transform_indices = @transform_13, window_bounds = array<i64: 4, 32, 128>}, {pipeline_mode = #tpu.pipeline_mode<synchronous>, transform_indices = @transform_14, window_bounds = array<i64: 1, 128>}, {pipeline_mode = #tpu.pipeline_mode<synchronous>, transform_indices = @transform_15, window_bounds = array<i64: 1, 128>}, {pipeline_mode = #tpu.pipeline_mode<synchronous>, transform_indices = @transform_16, window_bounds = array<i64: 1, 128>}, {pipeline_mode = #tpu.pipeline_mode<synchronous>, transform_indices = @transform_17, window_bounds = array<i64: 128, 256>}, {pipeline_mode = #tpu.pipeline_mode<synchronous>, transform_indices = @transform_18, window_bounds = array<i64: 1, 256>}, {pipeline_mode = #tpu.pipeline_mode<synchronous>, transform_indices = @transform_19, window_bounds = array<i64: 256, 128>}, {pipeline_mode = #tpu.pipeline_mode<synchronous>, transform_indices = @transform_20, window_bounds = array<i64: 1, 128>}, {pipeline_mode = #tpu.pipeline_mode<synchronous>, transform_indices = @transform_21, window_bounds = array<i64: 1, 128>}, {pipeline_mode = #tpu.pipeline_mode<synchronous>, transform_indices = @transform_22, window_bounds = array<i64: 1, 128>}, {pipeline_mode = #tpu.pipeline_mode<synchronous>, transform_indices = @transform_23, window_bounds = array<i64: 128, 512>}, {pipeline_mode = #tpu.pipeline_mode<synchronous>, transform_indices = @transform_24, window_bounds = array<i64: 1, 512>}, {pipeline_mode = #tpu.pipeline_mode<synchronous>, transform_indices = @transform_25, window_bounds = array<i64: 32, 512>}]} {
    %c0 = arith.constant 0 : index
    %c0_0 = arith.constant 0 : index
    %0 = vector.load %arg1[%c0, %c0_0] : memref<2x16xi32, #tpu.memory_space<vmem>>, vector<2x16xi32>
    %c0_1 = arith.constant 0 : index
    %c0_2 = arith.constant 0 : index
    %1 = vector.load %arg2[%c0_1, %c0_2] : memref<2x16xi32, #tpu.memory_space<vmem>>, vector<2x16xi32>
    %2 = tpu.iota {dimensions = array<i32: 2>} : vector<2x16x512xi32>
    %3 = vector.shape_cast %0 : vector<2x16xi32> to vector<2x16x1xi32>
    %4 = vector.broadcast %3 : vector<2x16x1xi32> to vector<2x16x512xi32>
    %5 = arith.cmpi eq, %4, %2 : vector<2x16x512xi32>
    %6 = arith.extui %5 : vector<2x16x512xi1> to vector<2x16x512xi32>
    %7 = arith.sitofp %6 : vector<2x16x512xi32> to vector<2x16x512xf32>
    %8 = vector.shape_cast %7 : vector<2x16x512xf32> to vector<32x512xf32>
    %c0_3 = arith.constant 0 : index
    %c0_4 = arith.constant 0 : index
    %9 = vector.load %arg3[%c0_3, %c0_4] : memref<512x128xf32, #tpu.memory_space<vmem>>, vector<512x128xf32>
    %cst = arith.constant dense<0.000000e+00> : vector<32x128xf32>
    %10 = tpu.matmul %8, %9, %cst {dimension_numbers = #tpu.dot_dimension_numbers<[1], [0], [0], [1], [0, 0, 1, 1], [], []>} : vector<32x512xf32>, vector<512x128xf32>, vector<32x128xf32> -> vector<32x128xf32>
    %c0_5 = arith.constant 0 : index
    %c0_6 = arith.constant 0 : index
    %11 = vector.load %arg4[%c0_5, %c0_6] : memref<32x128xf32, #tpu.memory_space<vmem>>, vector<16x128xf32>
    %12 = vector.shape_cast %11 : vector<16x128xf32> to vector<1x16x128xf32>
    %13 = vector.shape_cast %12 : vector<1x16x128xf32> to vector<1x16x128xf32>
    %14 = vector.broadcast %13 : vector<1x16x128xf32> to vector<2x16x128xf32>
    %15 = vector.shape_cast %14 : vector<2x16x128xf32> to vector<32x128xf32>
    %c0_7 = arith.constant 0 : index
    %c0_8 = arith.constant 0 : index
    %16 = vector.load %arg5[%c0_7, %c0_8] : memref<2x128xf32, #tpu.memory_space<vmem>>, vector<1x128xf32>
    %c1 = arith.constant 1 : index
    %c0_9 = arith.constant 0 : index
    %17 = vector.load %arg5[%c1, %c0_9] : memref<2x128xf32, #tpu.memory_space<vmem>>, vector<1x128xf32>
    %18 = vector.shape_cast %1 : vector<2x16xi32> to vector<2x16x1xi32>
    %19 = arith.sitofp %18 : vector<2x16x1xi32> to vector<2x16x1xf32>
    %20 = vector.shape_cast %16 : vector<1x128xf32> to vector<1x1x128xf32>
    %21 = arith.subf %17, %16 : vector<1x128xf32>
    %22 = vector.shape_cast %21 : vector<1x128xf32> to vector<1x1x128xf32>
    %23 = vector.broadcast %19 : vector<2x16x1xf32> to vector<2x16x128xf32>
    %24 = vector.broadcast %22 : vector<1x1x128xf32> to vector<2x16x128xf32>
    %25 = arith.mulf %23, %24 : vector<2x16x128xf32>
    %26 = vector.broadcast %20 : vector<1x1x128xf32> to vector<2x16x128xf32>
    %27 = arith.addf %26, %25 : vector<2x16x128xf32>
    %28 = vector.shape_cast %27 : vector<2x16x128xf32> to vector<32x128xf32>
    %29 = arith.addf %10, %15 : vector<32x128xf32>
    %30 = arith.addf %29, %28 : vector<32x128xf32>
    %c0_10 = arith.constant 0 : index
    %c0_11 = arith.constant 0 : index
    %31 = vector.load %arg6[%c0_10, %c0_11] : memref<1x128xf32, #tpu.memory_space<vmem>>, vector<1x128xf32>
    %c0_12 = arith.constant 0 : index
    %c0_13 = arith.constant 0 : index
    %32 = vector.load %arg7[%c0_12, %c0_13] : memref<1x128xf32, #tpu.memory_space<vmem>>, vector<1x128xf32>
    %cst_14 = arith.constant dense<0.000000e+00> : vector<32xf32>
    %33 = vector.multi_reduction <add>, %30, %cst_14 [1] : vector<32x128xf32> to vector<32xf32>
    %34 = vector.shape_cast %33 : vector<32xf32> to vector<32x1xf32>
    %cst_15 = arith.constant 1.280000e+02 : f32
    %35 = vector.broadcast %cst_15 : f32 to vector<32x1xf32>
    %36 = arith.divf %34, %35 : vector<32x1xf32>
    %37 = vector.broadcast %36 : vector<32x1xf32> to vector<32x128xf32>
    %38 = arith.subf %30, %37 : vector<32x128xf32>
    %39 = arith.mulf %38, %38 : vector<32x128xf32>
    %cst_16 = arith.constant dense<0.000000e+00> : vector<32xf32>
    %40 = vector.multi_reduction <add>, %39, %cst_16 [1] : vector<32x128xf32> to vector<32xf32>
    %41 = vector.shape_cast %40 : vector<32xf32> to vector<32x1xf32>
    %cst_17 = arith.constant 1.280000e+02 : f32
    %42 = vector.broadcast %cst_17 : f32 to vector<32x1xf32>
    %43 = arith.divf %41, %42 : vector<32x1xf32>
    %cst_18 = arith.constant 9.99999996E-13 : f32
    %44 = vector.broadcast %cst_18 : f32 to vector<32x1xf32>
    %45 = arith.addf %43, %44 : vector<32x1xf32>
    %46 = math.rsqrt %45 : vector<32x1xf32>
    %47 = vector.broadcast %46 : vector<32x1xf32> to vector<32x128xf32>
    %48 = arith.mulf %38, %47 : vector<32x128xf32>
    %49 = vector.broadcast %31 : vector<1x128xf32> to vector<32x128xf32>
    %50 = arith.mulf %48, %49 : vector<32x128xf32>
    %51 = vector.broadcast %32 : vector<1x128xf32> to vector<32x128xf32>
    %52 = arith.addf %50, %51 : vector<32x128xf32>
    %c0_i32 = arith.constant 0 : i32
    %53 = vector.broadcast %c0_i32 : i32 to vector<2x16xi32>
    %54 = arith.cmpi eq, %0, %53 : vector<2x16xi32>
    %cst_19 = arith.constant -1.000000e+04 : f32
    %cst_20 = arith.constant 0.000000e+00 : f32
    %55 = vector.broadcast %cst_19 : f32 to vector<2x16xf32>
    %56 = vector.broadcast %cst_20 : f32 to vector<2x16xf32>
    %57 = arith.select %54, %55, %56 : vector<2x16xi1>, vector<2x16xf32>
    %58 = vector.shape_cast %57 : vector<2x16xf32> to vector<2x1x16xf32>
    %59 = arith.truncf %52 : vector<32x128xf32> to vector<32x128xbf16>
    %cst_21 = arith.constant 0.000000e+00 : f32
    %60 = vector.broadcast %cst_21 : f32 to vector<32x128xf32>
    %c0_22 = arith.constant 0 : index
    %c0_23 = arith.constant 0 : index
    %c0_24 = arith.constant 0 : index
    %61 = vector.load %arg8[%c0_22, %c0_23, %c0_24] : memref<4x128x32xbf16, #tpu.memory_space<vmem>>, vector<1x128x32xbf16>
    %62 = vector.shape_cast %61 : vector<1x128x32xbf16> to vector<128x32xbf16>
    %cst_25 = arith.constant dense<0.000000e+00> : vector<32x32xf32>
    %63 = tpu.matmul %59, %62, %cst_25 {dimension_numbers = #tpu.dot_dimension_numbers<[1], [0], [0], [1], [0, 0, 1, 1], [], []>} : vector<32x128xbf16>, vector<128x32xbf16>, vector<32x32xf32> -> vector<32x32xf32>
    %c0_26 = arith.constant 0 : index
    %c0_27 = arith.constant 0 : index
    %c0_28 = arith.constant 0 : index
    %64 = vector.load %arg9[%c0_26, %c0_27, %c0_28] : memref<4x1x32xf32, #tpu.memory_space<vmem>>, vector<1x1x32xf32>
    %65 = vector.shape_cast %64 : vector<1x1x32xf32> to vector<1x32xf32>
    %66 = vector.broadcast %65 : vector<1x32xf32> to vector<32x32xf32>
    %67 = arith.addf %63, %66 : vector<32x32xf32>
    %c0_29 = arith.constant 0 : index
    %c0_30 = arith.constant 0 : index
    %c0_31 = arith.constant 0 : index
    %68 = vector.load %arg10[%c0_29, %c0_30, %c0_31] : memref<4x128x32xbf16, #tpu.memory_space<vmem>>, vector<1x128x32xbf16>
    %69 = vector.shape_cast %68 : vector<1x128x32xbf16> to vector<128x32xbf16>
    %cst_32 = arith.constant dense<0.000000e+00> : vector<32x32xf32>
    %70 = tpu.matmul %59, %69, %cst_32 {dimension_numbers = #tpu.dot_dimension_numbers<[1], [0], [0], [1], [0, 0, 1, 1], [], []>} : vector<32x128xbf16>, vector<128x32xbf16>, vector<32x32xf32> -> vector<32x32xf32>
    %c0_33 = arith.constant 0 : index
    %c0_34 = arith.constant 0 : index
    %c0_35 = arith.constant 0 : index
    %71 = vector.load %arg11[%c0_33, %c0_34, %c0_35] : memref<4x1x32xf32, #tpu.memory_space<vmem>>, vector<1x1x32xf32>
    %72 = vector.shape_cast %71 : vector<1x1x32xf32> to vector<1x32xf32>
    %73 = vector.broadcast %72 : vector<1x32xf32> to vector<32x32xf32>
    %74 = arith.addf %70, %73 : vector<32x32xf32>
    %c0_36 = arith.constant 0 : index
    %c0_37 = arith.constant 0 : index
    %c0_38 = arith.constant 0 : index
    %75 = vector.load %arg12[%c0_36, %c0_37, %c0_38] : memref<4x128x32xbf16, #tpu.memory_space<vmem>>, vector<1x128x32xbf16>
    %76 = vector.shape_cast %75 : vector<1x128x32xbf16> to vector<128x32xbf16>
    %cst_39 = arith.constant dense<0.000000e+00> : vector<32x32xf32>
    %77 = tpu.matmul %59, %76, %cst_39 {dimension_numbers = #tpu.dot_dimension_numbers<[1], [0], [0], [1], [0, 0, 1, 1], [], []>} : vector<32x128xbf16>, vector<128x32xbf16>, vector<32x32xf32> -> vector<32x32xf32>
    %c0_40 = arith.constant 0 : index
    %c0_41 = arith.constant 0 : index
    %c0_42 = arith.constant 0 : index
    %78 = vector.load %arg13[%c0_40, %c0_41, %c0_42] : memref<4x1x32xf32, #tpu.memory_space<vmem>>, vector<1x1x32xf32>
    %79 = vector.shape_cast %78 : vector<1x1x32xf32> to vector<1x32xf32>
    %80 = vector.broadcast %79 : vector<1x32xf32> to vector<32x32xf32>
    %81 = arith.addf %77, %80 : vector<32x32xf32>
    %82 = vector.shape_cast %67 : vector<32x32xf32> to vector<2x16x32xf32>
    %83 = vector.shape_cast %74 : vector<32x32xf32> to vector<2x16x32xf32>
    %84 = vector.shape_cast %81 : vector<32x32xf32> to vector<2x16x32xf32>
    "tpu.trace_start"() <{level = 10 : i32, message = "bqd,bkd->bqk"}> : () -> ()
    %cst_43 = arith.constant dense<0.000000e+00> : vector<2x16x16xf32>
    %85 = tpu.matmul %82, %83, %cst_43 {dimension_numbers = #tpu.dot_dimension_numbers<[2], [2], [1], [1], [0, 0, 0, 1, 1, 1], [0], [0]>} : vector<2x16x32xf32>, vector<2x16x32xf32>, vector<2x16x16xf32> -> vector<2x16x16xf32>
    "tpu.trace_stop"() : () -> ()
    %cst_44 = arith.constant 0.176776692 : f32
    %86 = vector.broadcast %cst_44 : f32 to vector<2x16x16xf32>
    %87 = arith.mulf %85, %86 : vector<2x16x16xf32>
    %88 = vector.broadcast %58 : vector<2x1x16xf32> to vector<2x16x16xf32>
    %89 = arith.addf %87, %88 : vector<2x16x16xf32>
    %cst_45 = arith.constant dense<0xFF800000> : vector<2x16xf32>
    %90 = vector.multi_reduction <maximumf>, %89, %cst_45 [2] : vector<2x16x16xf32> to vector<2x16xf32>
    %91 = vector.shape_cast %90 : vector<2x16xf32> to vector<2x16x1xf32>
    %92 = vector.broadcast %91 : vector<2x16x1xf32> to vector<2x16x16xf32>
    %93 = arith.subf %89, %92 : vector<2x16x16xf32>
    %94 = math.exp %93 : vector<2x16x16xf32>
    %cst_46 = arith.constant dense<0.000000e+00> : vector<2x16xf32>
    %95 = vector.multi_reduction <add>, %94, %cst_46 [2] : vector<2x16x16xf32> to vector<2x16xf32>
    %96 = vector.shape_cast %95 : vector<2x16xf32> to vector<2x16x1xf32>
    %97 = vector.broadcast %96 : vector<2x16x1xf32> to vector<2x16x16xf32>
    %98 = arith.divf %94, %97 : vector<2x16x16xf32>
    "tpu.trace_start"() <{level = 10 : i32, message = "bqk,bkd->bqd"}> : () -> ()
    %cst_47 = arith.constant dense<0.000000e+00> : vector<2x16x32xf32>
    %99 = tpu.matmul %98, %84, %cst_47 {dimension_numbers = #tpu.dot_dimension_numbers<[2], [1], [1], [2], [0, 0, 0, 1, 1, 2], [0], [0]>} : vector<2x16x16xf32>, vector<2x16x32xf32>, vector<2x16x32xf32> -> vector<2x16x32xf32>
    "tpu.trace_stop"() : () -> ()
    %100 = vector.shape_cast %99 : vector<2x16x32xf32> to vector<32x32xf32>
    %101 = arith.truncf %100 : vector<32x32xf32> to vector<32x32xbf16>
    %c0_48 = arith.constant 0 : index
    %c0_49 = arith.constant 0 : index
    %c0_50 = arith.constant 0 : index
    %102 = vector.load %arg14[%c0_48, %c0_49, %c0_50] : memref<4x32x128xbf16, #tpu.memory_space<vmem>>, vector<1x32x128xbf16>
    %103 = vector.shape_cast %102 : vector<1x32x128xbf16> to vector<32x128xbf16>
    %cst_51 = arith.constant dense<0.000000e+00> : vector<32x128xf32>
    %104 = tpu.matmul %101, %103, %cst_51 {dimension_numbers = #tpu.dot_dimension_numbers<[1], [0], [0], [1], [0, 0, 1, 1], [], []>} : vector<32x32xbf16>, vector<32x128xbf16>, vector<32x128xf32> -> vector<32x128xf32>
    %105 = arith.addf %60, %104 : vector<32x128xf32>
    %c1_52 = arith.constant 1 : index
    %c0_53 = arith.constant 0 : index
    %c0_54 = arith.constant 0 : index
    %106 = vector.load %arg8[%c1_52, %c0_53, %c0_54] : memref<4x128x32xbf16, #tpu.memory_space<vmem>>, vector<1x128x32xbf16>
    %107 = vector.shape_cast %106 : vector<1x128x32xbf16> to vector<128x32xbf16>
    %cst_55 = arith.constant dense<0.000000e+00> : vector<32x32xf32>
    %108 = tpu.matmul %59, %107, %cst_55 {dimension_numbers = #tpu.dot_dimension_numbers<[1], [0], [0], [1], [0, 0, 1, 1], [], []>} : vector<32x128xbf16>, vector<128x32xbf16>, vector<32x32xf32> -> vector<32x32xf32>
    %c1_56 = arith.constant 1 : index
    %c0_57 = arith.constant 0 : index
    %c0_58 = arith.constant 0 : index
    %109 = vector.load %arg9[%c1_56, %c0_57, %c0_58] : memref<4x1x32xf32, #tpu.memory_space<vmem>>, vector<1x1x32xf32>
    %110 = vector.shape_cast %109 : vector<1x1x32xf32> to vector<1x32xf32>
    %111 = vector.broadcast %110 : vector<1x32xf32> to vector<32x32xf32>
    %112 = arith.addf %108, %111 : vector<32x32xf32>
    %c1_59 = arith.constant 1 : index
    %c0_60 = arith.constant 0 : index
    %c0_61 = arith.constant 0 : index
    %113 = vector.load %arg10[%c1_59, %c0_60, %c0_61] : memref<4x128x32xbf16, #tpu.memory_space<vmem>>, vector<1x128x32xbf16>
    %114 = vector.shape_cast %113 : vector<1x128x32xbf16> to vector<128x32xbf16>
    %cst_62 = arith.constant dense<0.000000e+00> : vector<32x32xf32>
    %115 = tpu.matmul %59, %114, %cst_62 {dimension_numbers = #tpu.dot_dimension_numbers<[1], [0], [0], [1], [0, 0, 1, 1], [], []>} : vector<32x128xbf16>, vector<128x32xbf16>, vector<32x32xf32> -> vector<32x32xf32>
    %c1_63 = arith.constant 1 : index
    %c0_64 = arith.constant 0 : index
    %c0_65 = arith.constant 0 : index
    %116 = vector.load %arg11[%c1_63, %c0_64, %c0_65] : memref<4x1x32xf32, #tpu.memory_space<vmem>>, vector<1x1x32xf32>
    %117 = vector.shape_cast %116 : vector<1x1x32xf32> to vector<1x32xf32>
    %118 = vector.broadcast %117 : vector<1x32xf32> to vector<32x32xf32>
    %119 = arith.addf %115, %118 : vector<32x32xf32>
    %c1_66 = arith.constant 1 : index
    %c0_67 = arith.constant 0 : index
    %c0_68 = arith.constant 0 : index
    %120 = vector.load %arg12[%c1_66, %c0_67, %c0_68] : memref<4x128x32xbf16, #tpu.memory_space<vmem>>, vector<1x128x32xbf16>
    %121 = vector.shape_cast %120 : vector<1x128x32xbf16> to vector<128x32xbf16>
    %cst_69 = arith.constant dense<0.000000e+00> : vector<32x32xf32>
    %122 = tpu.matmul %59, %121, %cst_69 {dimension_numbers = #tpu.dot_dimension_numbers<[1], [0], [0], [1], [0, 0, 1, 1], [], []>} : vector<32x128xbf16>, vector<128x32xbf16>, vector<32x32xf32> -> vector<32x32xf32>
    %c1_70 = arith.constant 1 : index
    %c0_71 = arith.constant 0 : index
    %c0_72 = arith.constant 0 : index
    %123 = vector.load %arg13[%c1_70, %c0_71, %c0_72] : memref<4x1x32xf32, #tpu.memory_space<vmem>>, vector<1x1x32xf32>
    %124 = vector.shape_cast %123 : vector<1x1x32xf32> to vector<1x32xf32>
    %125 = vector.broadcast %124 : vector<1x32xf32> to vector<32x32xf32>
    %126 = arith.addf %122, %125 : vector<32x32xf32>
    %127 = vector.shape_cast %112 : vector<32x32xf32> to vector<2x16x32xf32>
    %128 = vector.shape_cast %119 : vector<32x32xf32> to vector<2x16x32xf32>
    %129 = vector.shape_cast %126 : vector<32x32xf32> to vector<2x16x32xf32>
    "tpu.trace_start"() <{level = 10 : i32, message = "bqd,bkd->bqk"}> : () -> ()
    %cst_73 = arith.constant dense<0.000000e+00> : vector<2x16x16xf32>
    %130 = tpu.matmul %127, %128, %cst_73 {dimension_numbers = #tpu.dot_dimension_numbers<[2], [2], [1], [1], [0, 0, 0, 1, 1, 1], [0], [0]>} : vector<2x16x32xf32>, vector<2x16x32xf32>, vector<2x16x16xf32> -> vector<2x16x16xf32>
    "tpu.trace_stop"() : () -> ()
    %cst_74 = arith.constant 0.176776692 : f32
    %131 = vector.broadcast %cst_74 : f32 to vector<2x16x16xf32>
    %132 = arith.mulf %130, %131 : vector<2x16x16xf32>
    %133 = vector.broadcast %58 : vector<2x1x16xf32> to vector<2x16x16xf32>
    %134 = arith.addf %132, %133 : vector<2x16x16xf32>
    %cst_75 = arith.constant dense<0xFF800000> : vector<2x16xf32>
    %135 = vector.multi_reduction <maximumf>, %134, %cst_75 [2] : vector<2x16x16xf32> to vector<2x16xf32>
    %136 = vector.shape_cast %135 : vector<2x16xf32> to vector<2x16x1xf32>
    %137 = vector.broadcast %136 : vector<2x16x1xf32> to vector<2x16x16xf32>
    %138 = arith.subf %134, %137 : vector<2x16x16xf32>
    %139 = math.exp %138 : vector<2x16x16xf32>
    %cst_76 = arith.constant dense<0.000000e+00> : vector<2x16xf32>
    %140 = vector.multi_reduction <add>, %139, %cst_76 [2] : vector<2x16x16xf32> to vector<2x16xf32>
    %141 = vector.shape_cast %140 : vector<2x16xf32> to vector<2x16x1xf32>
    %142 = vector.broadcast %141 : vector<2x16x1xf32> to vector<2x16x16xf32>
    %143 = arith.divf %139, %142 : vector<2x16x16xf32>
    "tpu.trace_start"() <{level = 10 : i32, message = "bqk,bkd->bqd"}> : () -> ()
    %cst_77 = arith.constant dense<0.000000e+00> : vector<2x16x32xf32>
    %144 = tpu.matmul %143, %129, %cst_77 {dimension_numbers = #tpu.dot_dimension_numbers<[2], [1], [1], [2], [0, 0, 0, 1, 1, 2], [0], [0]>} : vector<2x16x16xf32>, vector<2x16x32xf32>, vector<2x16x32xf32> -> vector<2x16x32xf32>
    "tpu.trace_stop"() : () -> ()
    %145 = vector.shape_cast %144 : vector<2x16x32xf32> to vector<32x32xf32>
    %146 = arith.truncf %145 : vector<32x32xf32> to vector<32x32xbf16>
    %c1_78 = arith.constant 1 : index
    %c0_79 = arith.constant 0 : index
    %c0_80 = arith.constant 0 : index
    %147 = vector.load %arg14[%c1_78, %c0_79, %c0_80] : memref<4x32x128xbf16, #tpu.memory_space<vmem>>, vector<1x32x128xbf16>
    %148 = vector.shape_cast %147 : vector<1x32x128xbf16> to vector<32x128xbf16>
    %cst_81 = arith.constant dense<0.000000e+00> : vector<32x128xf32>
    %149 = tpu.matmul %146, %148, %cst_81 {dimension_numbers = #tpu.dot_dimension_numbers<[1], [0], [0], [1], [0, 0, 1, 1], [], []>} : vector<32x32xbf16>, vector<32x128xbf16>, vector<32x128xf32> -> vector<32x128xf32>
    %150 = arith.addf %105, %149 : vector<32x128xf32>
    %c2 = arith.constant 2 : index
    %c0_82 = arith.constant 0 : index
    %c0_83 = arith.constant 0 : index
    %151 = vector.load %arg8[%c2, %c0_82, %c0_83] : memref<4x128x32xbf16, #tpu.memory_space<vmem>>, vector<1x128x32xbf16>
    %152 = vector.shape_cast %151 : vector<1x128x32xbf16> to vector<128x32xbf16>
    %cst_84 = arith.constant dense<0.000000e+00> : vector<32x32xf32>
    %153 = tpu.matmul %59, %152, %cst_84 {dimension_numbers = #tpu.dot_dimension_numbers<[1], [0], [0], [1], [0, 0, 1, 1], [], []>} : vector<32x128xbf16>, vector<128x32xbf16>, vector<32x32xf32> -> vector<32x32xf32>
    %c2_85 = arith.constant 2 : index
    %c0_86 = arith.constant 0 : index
    %c0_87 = arith.constant 0 : index
    %154 = vector.load %arg9[%c2_85, %c0_86, %c0_87] : memref<4x1x32xf32, #tpu.memory_space<vmem>>, vector<1x1x32xf32>
    %155 = vector.shape_cast %154 : vector<1x1x32xf32> to vector<1x32xf32>
    %156 = vector.broadcast %155 : vector<1x32xf32> to vector<32x32xf32>
    %157 = arith.addf %153, %156 : vector<32x32xf32>
    %c2_88 = arith.constant 2 : index
    %c0_89 = arith.constant 0 : index
    %c0_90 = arith.constant 0 : index
    %158 = vector.load %arg10[%c2_88, %c0_89, %c0_90] : memref<4x128x32xbf16, #tpu.memory_space<vmem>>, vector<1x128x32xbf16>
    %159 = vector.shape_cast %158 : vector<1x128x32xbf16> to vector<128x32xbf16>
    %cst_91 = arith.constant dense<0.000000e+00> : vector<32x32xf32>
    %160 = tpu.matmul %59, %159, %cst_91 {dimension_numbers = #tpu.dot_dimension_numbers<[1], [0], [0], [1], [0, 0, 1, 1], [], []>} : vector<32x128xbf16>, vector<128x32xbf16>, vector<32x32xf32> -> vector<32x32xf32>
    %c2_92 = arith.constant 2 : index
    %c0_93 = arith.constant 0 : index
    %c0_94 = arith.constant 0 : index
    %161 = vector.load %arg11[%c2_92, %c0_93, %c0_94] : memref<4x1x32xf32, #tpu.memory_space<vmem>>, vector<1x1x32xf32>
    %162 = vector.shape_cast %161 : vector<1x1x32xf32> to vector<1x32xf32>
    %163 = vector.broadcast %162 : vector<1x32xf32> to vector<32x32xf32>
    %164 = arith.addf %160, %163 : vector<32x32xf32>
    %c2_95 = arith.constant 2 : index
    %c0_96 = arith.constant 0 : index
    %c0_97 = arith.constant 0 : index
    %165 = vector.load %arg12[%c2_95, %c0_96, %c0_97] : memref<4x128x32xbf16, #tpu.memory_space<vmem>>, vector<1x128x32xbf16>
    %166 = vector.shape_cast %165 : vector<1x128x32xbf16> to vector<128x32xbf16>
    %cst_98 = arith.constant dense<0.000000e+00> : vector<32x32xf32>
    %167 = tpu.matmul %59, %166, %cst_98 {dimension_numbers = #tpu.dot_dimension_numbers<[1], [0], [0], [1], [0, 0, 1, 1], [], []>} : vector<32x128xbf16>, vector<128x32xbf16>, vector<32x32xf32> -> vector<32x32xf32>
    %c2_99 = arith.constant 2 : index
    %c0_100 = arith.constant 0 : index
    %c0_101 = arith.constant 0 : index
    %168 = vector.load %arg13[%c2_99, %c0_100, %c0_101] : memref<4x1x32xf32, #tpu.memory_space<vmem>>, vector<1x1x32xf32>
    %169 = vector.shape_cast %168 : vector<1x1x32xf32> to vector<1x32xf32>
    %170 = vector.broadcast %169 : vector<1x32xf32> to vector<32x32xf32>
    %171 = arith.addf %167, %170 : vector<32x32xf32>
    %172 = vector.shape_cast %157 : vector<32x32xf32> to vector<2x16x32xf32>
    %173 = vector.shape_cast %164 : vector<32x32xf32> to vector<2x16x32xf32>
    %174 = vector.shape_cast %171 : vector<32x32xf32> to vector<2x16x32xf32>
    "tpu.trace_start"() <{level = 10 : i32, message = "bqd,bkd->bqk"}> : () -> ()
    %cst_102 = arith.constant dense<0.000000e+00> : vector<2x16x16xf32>
    %175 = tpu.matmul %172, %173, %cst_102 {dimension_numbers = #tpu.dot_dimension_numbers<[2], [2], [1], [1], [0, 0, 0, 1, 1, 1], [0], [0]>} : vector<2x16x32xf32>, vector<2x16x32xf32>, vector<2x16x16xf32> -> vector<2x16x16xf32>
    "tpu.trace_stop"() : () -> ()
    %cst_103 = arith.constant 0.176776692 : f32
    %176 = vector.broadcast %cst_103 : f32 to vector<2x16x16xf32>
    %177 = arith.mulf %175, %176 : vector<2x16x16xf32>
    %178 = vector.broadcast %58 : vector<2x1x16xf32> to vector<2x16x16xf32>
    %179 = arith.addf %177, %178 : vector<2x16x16xf32>
    %cst_104 = arith.constant dense<0xFF800000> : vector<2x16xf32>
    %180 = vector.multi_reduction <maximumf>, %179, %cst_104 [2] : vector<2x16x16xf32> to vector<2x16xf32>
    %181 = vector.shape_cast %180 : vector<2x16xf32> to vector<2x16x1xf32>
    %182 = vector.broadcast %181 : vector<2x16x1xf32> to vector<2x16x16xf32>
    %183 = arith.subf %179, %182 : vector<2x16x16xf32>
    %184 = math.exp %183 : vector<2x16x16xf32>
    %cst_105 = arith.constant dense<0.000000e+00> : vector<2x16xf32>
    %185 = vector.multi_reduction <add>, %184, %cst_105 [2] : vector<2x16x16xf32> to vector<2x16xf32>
    %186 = vector.shape_cast %185 : vector<2x16xf32> to vector<2x16x1xf32>
    %187 = vector.broadcast %186 : vector<2x16x1xf32> to vector<2x16x16xf32>
    %188 = arith.divf %184, %187 : vector<2x16x16xf32>
    "tpu.trace_start"() <{level = 10 : i32, message = "bqk,bkd->bqd"}> : () -> ()
    %cst_106 = arith.constant dense<0.000000e+00> : vector<2x16x32xf32>
    %189 = tpu.matmul %188, %174, %cst_106 {dimension_numbers = #tpu.dot_dimension_numbers<[2], [1], [1], [2], [0, 0, 0, 1, 1, 2], [0], [0]>} : vector<2x16x16xf32>, vector<2x16x32xf32>, vector<2x16x32xf32> -> vector<2x16x32xf32>
    "tpu.trace_stop"() : () -> ()
    %190 = vector.shape_cast %189 : vector<2x16x32xf32> to vector<32x32xf32>
    %191 = arith.truncf %190 : vector<32x32xf32> to vector<32x32xbf16>
    %c2_107 = arith.constant 2 : index
    %c0_108 = arith.constant 0 : index
    %c0_109 = arith.constant 0 : index
    %192 = vector.load %arg14[%c2_107, %c0_108, %c0_109] : memref<4x32x128xbf16, #tpu.memory_space<vmem>>, vector<1x32x128xbf16>
    %193 = vector.shape_cast %192 : vector<1x32x128xbf16> to vector<32x128xbf16>
    %cst_110 = arith.constant dense<0.000000e+00> : vector<32x128xf32>
    %194 = tpu.matmul %191, %193, %cst_110 {dimension_numbers = #tpu.dot_dimension_numbers<[1], [0], [0], [1], [0, 0, 1, 1], [], []>} : vector<32x32xbf16>, vector<32x128xbf16>, vector<32x128xf32> -> vector<32x128xf32>
    %195 = arith.addf %150, %194 : vector<32x128xf32>
    %c3 = arith.constant 3 : index
    %c0_111 = arith.constant 0 : index
    %c0_112 = arith.constant 0 : index
    %196 = vector.load %arg8[%c3, %c0_111, %c0_112] : memref<4x128x32xbf16, #tpu.memory_space<vmem>>, vector<1x128x32xbf16>
    %197 = vector.shape_cast %196 : vector<1x128x32xbf16> to vector<128x32xbf16>
    %cst_113 = arith.constant dense<0.000000e+00> : vector<32x32xf32>
    %198 = tpu.matmul %59, %197, %cst_113 {dimension_numbers = #tpu.dot_dimension_numbers<[1], [0], [0], [1], [0, 0, 1, 1], [], []>} : vector<32x128xbf16>, vector<128x32xbf16>, vector<32x32xf32> -> vector<32x32xf32>
    %c3_114 = arith.constant 3 : index
    %c0_115 = arith.constant 0 : index
    %c0_116 = arith.constant 0 : index
    %199 = vector.load %arg9[%c3_114, %c0_115, %c0_116] : memref<4x1x32xf32, #tpu.memory_space<vmem>>, vector<1x1x32xf32>
    %200 = vector.shape_cast %199 : vector<1x1x32xf32> to vector<1x32xf32>
    %201 = vector.broadcast %200 : vector<1x32xf32> to vector<32x32xf32>
    %202 = arith.addf %198, %201 : vector<32x32xf32>
    %c3_117 = arith.constant 3 : index
    %c0_118 = arith.constant 0 : index
    %c0_119 = arith.constant 0 : index
    %203 = vector.load %arg10[%c3_117, %c0_118, %c0_119] : memref<4x128x32xbf16, #tpu.memory_space<vmem>>, vector<1x128x32xbf16>
    %204 = vector.shape_cast %203 : vector<1x128x32xbf16> to vector<128x32xbf16>
    %cst_120 = arith.constant dense<0.000000e+00> : vector<32x32xf32>
    %205 = tpu.matmul %59, %204, %cst_120 {dimension_numbers = #tpu.dot_dimension_numbers<[1], [0], [0], [1], [0, 0, 1, 1], [], []>} : vector<32x128xbf16>, vector<128x32xbf16>, vector<32x32xf32> -> vector<32x32xf32>
    %c3_121 = arith.constant 3 : index
    %c0_122 = arith.constant 0 : index
    %c0_123 = arith.constant 0 : index
    %206 = vector.load %arg11[%c3_121, %c0_122, %c0_123] : memref<4x1x32xf32, #tpu.memory_space<vmem>>, vector<1x1x32xf32>
    %207 = vector.shape_cast %206 : vector<1x1x32xf32> to vector<1x32xf32>
    %208 = vector.broadcast %207 : vector<1x32xf32> to vector<32x32xf32>
    %209 = arith.addf %205, %208 : vector<32x32xf32>
    %c3_124 = arith.constant 3 : index
    %c0_125 = arith.constant 0 : index
    %c0_126 = arith.constant 0 : index
    %210 = vector.load %arg12[%c3_124, %c0_125, %c0_126] : memref<4x128x32xbf16, #tpu.memory_space<vmem>>, vector<1x128x32xbf16>
    %211 = vector.shape_cast %210 : vector<1x128x32xbf16> to vector<128x32xbf16>
    %cst_127 = arith.constant dense<0.000000e+00> : vector<32x32xf32>
    %212 = tpu.matmul %59, %211, %cst_127 {dimension_numbers = #tpu.dot_dimension_numbers<[1], [0], [0], [1], [0, 0, 1, 1], [], []>} : vector<32x128xbf16>, vector<128x32xbf16>, vector<32x32xf32> -> vector<32x32xf32>
    %c3_128 = arith.constant 3 : index
    %c0_129 = arith.constant 0 : index
    %c0_130 = arith.constant 0 : index
    %213 = vector.load %arg13[%c3_128, %c0_129, %c0_130] : memref<4x1x32xf32, #tpu.memory_space<vmem>>, vector<1x1x32xf32>
    %214 = vector.shape_cast %213 : vector<1x1x32xf32> to vector<1x32xf32>
    %215 = vector.broadcast %214 : vector<1x32xf32> to vector<32x32xf32>
    %216 = arith.addf %212, %215 : vector<32x32xf32>
    %217 = vector.shape_cast %202 : vector<32x32xf32> to vector<2x16x32xf32>
    %218 = vector.shape_cast %209 : vector<32x32xf32> to vector<2x16x32xf32>
    %219 = vector.shape_cast %216 : vector<32x32xf32> to vector<2x16x32xf32>
    "tpu.trace_start"() <{level = 10 : i32, message = "bqd,bkd->bqk"}> : () -> ()
    %cst_131 = arith.constant dense<0.000000e+00> : vector<2x16x16xf32>
    %220 = tpu.matmul %217, %218, %cst_131 {dimension_numbers = #tpu.dot_dimension_numbers<[2], [2], [1], [1], [0, 0, 0, 1, 1, 1], [0], [0]>} : vector<2x16x32xf32>, vector<2x16x32xf32>, vector<2x16x16xf32> -> vector<2x16x16xf32>
    "tpu.trace_stop"() : () -> ()
    %cst_132 = arith.constant 0.176776692 : f32
    %221 = vector.broadcast %cst_132 : f32 to vector<2x16x16xf32>
    %222 = arith.mulf %220, %221 : vector<2x16x16xf32>
    %223 = vector.broadcast %58 : vector<2x1x16xf32> to vector<2x16x16xf32>
    %224 = arith.addf %222, %223 : vector<2x16x16xf32>
    %cst_133 = arith.constant dense<0xFF800000> : vector<2x16xf32>
    %225 = vector.multi_reduction <maximumf>, %224, %cst_133 [2] : vector<2x16x16xf32> to vector<2x16xf32>
    %226 = vector.shape_cast %225 : vector<2x16xf32> to vector<2x16x1xf32>
    %227 = vector.broadcast %226 : vector<2x16x1xf32> to vector<2x16x16xf32>
    %228 = arith.subf %224, %227 : vector<2x16x16xf32>
    %229 = math.exp %228 : vector<2x16x16xf32>
    %cst_134 = arith.constant dense<0.000000e+00> : vector<2x16xf32>
    %230 = vector.multi_reduction <add>, %229, %cst_134 [2] : vector<2x16x16xf32> to vector<2x16xf32>
    %231 = vector.shape_cast %230 : vector<2x16xf32> to vector<2x16x1xf32>
    %232 = vector.broadcast %231 : vector<2x16x1xf32> to vector<2x16x16xf32>
    %233 = arith.divf %229, %232 : vector<2x16x16xf32>
    "tpu.trace_start"() <{level = 10 : i32, message = "bqk,bkd->bqd"}> : () -> ()
    %cst_135 = arith.constant dense<0.000000e+00> : vector<2x16x32xf32>
    %234 = tpu.matmul %233, %219, %cst_135 {dimension_numbers = #tpu.dot_dimension_numbers<[2], [1], [1], [2], [0, 0, 0, 1, 1, 2], [0], [0]>} : vector<2x16x16xf32>, vector<2x16x32xf32>, vector<2x16x32xf32> -> vector<2x16x32xf32>
    "tpu.trace_stop"() : () -> ()
    %235 = vector.shape_cast %234 : vector<2x16x32xf32> to vector<32x32xf32>
    %236 = arith.truncf %235 : vector<32x32xf32> to vector<32x32xbf16>
    %c3_136 = arith.constant 3 : index
    %c0_137 = arith.constant 0 : index
    %c0_138 = arith.constant 0 : index
    %237 = vector.load %arg14[%c3_136, %c0_137, %c0_138] : memref<4x32x128xbf16, #tpu.memory_space<vmem>>, vector<1x32x128xbf16>
    %238 = vector.shape_cast %237 : vector<1x32x128xbf16> to vector<32x128xbf16>
    %cst_139 = arith.constant dense<0.000000e+00> : vector<32x128xf32>
    %239 = tpu.matmul %236, %238, %cst_139 {dimension_numbers = #tpu.dot_dimension_numbers<[1], [0], [0], [1], [0, 0, 1, 1], [], []>} : vector<32x32xbf16>, vector<32x128xbf16>, vector<32x128xf32> -> vector<32x128xf32>
    %240 = arith.addf %195, %239 : vector<32x128xf32>
    %c0_140 = arith.constant 0 : index
    %c0_141 = arith.constant 0 : index
    %241 = vector.load %arg15[%c0_140, %c0_141] : memref<1x128xf32, #tpu.memory_space<vmem>>, vector<1x128xf32>
    %242 = vector.broadcast %241 : vector<1x128xf32> to vector<32x128xf32>
    %243 = arith.addf %240, %242 : vector<32x128xf32>
    %244 = arith.addf %52, %243 : vector<32x128xf32>
    %c0_142 = arith.constant 0 : index
    %c0_143 = arith.constant 0 : index
    %245 = vector.load %arg16[%c0_142, %c0_143] : memref<1x128xf32, #tpu.memory_space<vmem>>, vector<1x128xf32>
    %c0_144 = arith.constant 0 : index
    %c0_145 = arith.constant 0 : index
    %246 = vector.load %arg17[%c0_144, %c0_145] : memref<1x128xf32, #tpu.memory_space<vmem>>, vector<1x128xf32>
    %cst_146 = arith.constant dense<0.000000e+00> : vector<32xf32>
    %247 = vector.multi_reduction <add>, %244, %cst_146 [1] : vector<32x128xf32> to vector<32xf32>
    %248 = vector.shape_cast %247 : vector<32xf32> to vector<32x1xf32>
    %cst_147 = arith.constant 1.280000e+02 : f32
    %249 = vector.broadcast %cst_147 : f32 to vector<32x1xf32>
    %250 = arith.divf %248, %249 : vector<32x1xf32>
    %251 = vector.broadcast %250 : vector<32x1xf32> to vector<32x128xf32>
    %252 = arith.subf %244, %251 : vector<32x128xf32>
    %253 = arith.mulf %252, %252 : vector<32x128xf32>
    %cst_148 = arith.constant dense<0.000000e+00> : vector<32xf32>
    %254 = vector.multi_reduction <add>, %253, %cst_148 [1] : vector<32x128xf32> to vector<32xf32>
    %255 = vector.shape_cast %254 : vector<32xf32> to vector<32x1xf32>
    %cst_149 = arith.constant 1.280000e+02 : f32
    %256 = vector.broadcast %cst_149 : f32 to vector<32x1xf32>
    %257 = arith.divf %255, %256 : vector<32x1xf32>
    %cst_150 = arith.constant 9.99999996E-13 : f32
    %258 = vector.broadcast %cst_150 : f32 to vector<32x1xf32>
    %259 = arith.addf %257, %258 : vector<32x1xf32>
    %260 = math.rsqrt %259 : vector<32x1xf32>
    %261 = vector.broadcast %260 : vector<32x1xf32> to vector<32x128xf32>
    %262 = arith.mulf %252, %261 : vector<32x128xf32>
    %263 = vector.broadcast %245 : vector<1x128xf32> to vector<32x128xf32>
    %264 = arith.mulf %262, %263 : vector<32x128xf32>
    %265 = vector.broadcast %246 : vector<1x128xf32> to vector<32x128xf32>
    %266 = arith.addf %264, %265 : vector<32x128xf32>
    %267 = arith.truncf %266 : vector<32x128xf32> to vector<32x128xbf16>
    %c0_151 = arith.constant 0 : index
    %c0_152 = arith.constant 0 : index
    %268 = vector.load %arg18[%c0_151, %c0_152] : memref<128x256xbf16, #tpu.memory_space<vmem>>, vector<128x256xbf16>
    %cst_153 = arith.constant dense<0.000000e+00> : vector<32x256xf32>
    %269 = tpu.matmul %267, %268, %cst_153 {dimension_numbers = #tpu.dot_dimension_numbers<[1], [0], [0], [1], [0, 0, 1, 1], [], []>} : vector<32x128xbf16>, vector<128x256xbf16>, vector<32x256xf32> -> vector<32x256xf32>
    %c0_154 = arith.constant 0 : index
    %c0_155 = arith.constant 0 : index
    %270 = vector.load %arg19[%c0_154, %c0_155] : memref<1x256xf32, #tpu.memory_space<vmem>>, vector<1x256xf32>
    %271 = vector.broadcast %270 : vector<1x256xf32> to vector<32x256xf32>
    %272 = arith.addf %269, %271 : vector<32x256xf32>
    %cst_156 = arith.constant 5.000000e-01 : f32
    %273 = vector.broadcast %cst_156 : f32 to vector<32x256xf32>
    %274 = arith.mulf %273, %272 : vector<32x256xf32>
    %cst_157 = arith.constant 4.471500e-02 : f32
    %275 = vector.broadcast %cst_157 : f32 to vector<32x256xf32>
    %276 = arith.mulf %275, %272 : vector<32x256xf32>
    %277 = arith.mulf %276, %272 : vector<32x256xf32>
    %278 = arith.mulf %277, %272 : vector<32x256xf32>
    %279 = arith.addf %272, %278 : vector<32x256xf32>
    %cst_158 = arith.constant 0.797884583 : f32
    %280 = vector.broadcast %cst_158 : f32 to vector<32x256xf32>
    %281 = arith.mulf %280, %279 : vector<32x256xf32>
    %282 = math.tanh %281 : vector<32x256xf32>
    %cst_159 = arith.constant 1.000000e+00 : f32
    %283 = vector.broadcast %cst_159 : f32 to vector<32x256xf32>
    %284 = arith.addf %283, %282 : vector<32x256xf32>
    %285 = arith.mulf %274, %284 : vector<32x256xf32>
    %286 = arith.truncf %285 : vector<32x256xf32> to vector<32x256xbf16>
    %c0_160 = arith.constant 0 : index
    %c0_161 = arith.constant 0 : index
    %287 = vector.load %arg20[%c0_160, %c0_161] : memref<256x128xbf16, #tpu.memory_space<vmem>>, vector<256x128xbf16>
    %cst_162 = arith.constant dense<0.000000e+00> : vector<32x128xf32>
    %288 = tpu.matmul %286, %287, %cst_162 {dimension_numbers = #tpu.dot_dimension_numbers<[1], [0], [0], [1], [0, 0, 1, 1], [], []>} : vector<32x256xbf16>, vector<256x128xbf16>, vector<32x128xf32> -> vector<32x128xf32>
    %c0_163 = arith.constant 0 : index
    %c0_164 = arith.constant 0 : index
    %289 = vector.load %arg21[%c0_163, %c0_164] : memref<1x128xf32, #tpu.memory_space<vmem>>, vector<1x128xf32>
    %290 = vector.broadcast %289 : vector<1x128xf32> to vector<32x128xf32>
    %291 = arith.addf %288, %290 : vector<32x128xf32>
    %292 = arith.addf %266, %291 : vector<32x128xf32>
    %c0_165 = arith.constant 0 : index
    %c0_166 = arith.constant 0 : index
    %293 = vector.load %arg22[%c0_165, %c0_166] : memref<1x128xf32, #tpu.memory_space<vmem>>, vector<1x128xf32>
    %c0_167 = arith.constant 0 : index
    %c0_168 = arith.constant 0 : index
    %294 = vector.load %arg23[%c0_167, %c0_168] : memref<1x128xf32, #tpu.memory_space<vmem>>, vector<1x128xf32>
    %cst_169 = arith.constant dense<0.000000e+00> : vector<32xf32>
    %295 = vector.multi_reduction <add>, %292, %cst_169 [1] : vector<32x128xf32> to vector<32xf32>
    %296 = vector.shape_cast %295 : vector<32xf32> to vector<32x1xf32>
    %cst_170 = arith.constant 1.280000e+02 : f32
    %297 = vector.broadcast %cst_170 : f32 to vector<32x1xf32>
    %298 = arith.divf %296, %297 : vector<32x1xf32>
    %299 = vector.broadcast %298 : vector<32x1xf32> to vector<32x128xf32>
    %300 = arith.subf %292, %299 : vector<32x128xf32>
    %301 = arith.mulf %300, %300 : vector<32x128xf32>
    %cst_171 = arith.constant dense<0.000000e+00> : vector<32xf32>
    %302 = vector.multi_reduction <add>, %301, %cst_171 [1] : vector<32x128xf32> to vector<32xf32>
    %303 = vector.shape_cast %302 : vector<32xf32> to vector<32x1xf32>
    %cst_172 = arith.constant 1.280000e+02 : f32
    %304 = vector.broadcast %cst_172 : f32 to vector<32x1xf32>
    %305 = arith.divf %303, %304 : vector<32x1xf32>
    %cst_173 = arith.constant 9.99999996E-13 : f32
    %306 = vector.broadcast %cst_173 : f32 to vector<32x1xf32>
    %307 = arith.addf %305, %306 : vector<32x1xf32>
    %308 = math.rsqrt %307 : vector<32x1xf32>
    %309 = vector.broadcast %308 : vector<32x1xf32> to vector<32x128xf32>
    %310 = arith.mulf %300, %309 : vector<32x128xf32>
    %311 = vector.broadcast %293 : vector<1x128xf32> to vector<32x128xf32>
    %312 = arith.mulf %310, %311 : vector<32x128xf32>
    %313 = vector.broadcast %294 : vector<1x128xf32> to vector<32x128xf32>
    %314 = arith.addf %312, %313 : vector<32x128xf32>
    %315 = arith.truncf %314 : vector<32x128xf32> to vector<32x128xbf16>
    %c0_174 = arith.constant 0 : index
    %c0_175 = arith.constant 0 : index
    %316 = vector.load %arg24[%c0_174, %c0_175] : memref<128x512xbf16, #tpu.memory_space<vmem>>, vector<128x512xbf16>
    %cst_176 = arith.constant dense<0.000000e+00> : vector<32x512xf32>
    %317 = tpu.matmul %315, %316, %cst_176 {dimension_numbers = #tpu.dot_dimension_numbers<[1], [0], [0], [1], [0, 0, 1, 1], [], []>} : vector<32x128xbf16>, vector<128x512xbf16>, vector<32x512xf32> -> vector<32x512xf32>
    %c0_177 = arith.constant 0 : index
    %c0_178 = arith.constant 0 : index
    %318 = vector.load %arg25[%c0_177, %c0_178] : memref<1x512xf32, #tpu.memory_space<vmem>>, vector<1x512xf32>
    %319 = vector.broadcast %318 : vector<1x512xf32> to vector<32x512xf32>
    %320 = arith.addf %317, %319 : vector<32x512xf32>
    %cst_179 = arith.constant dense<0xFF800000> : vector<32xf32>
    %321 = vector.multi_reduction <maximumf>, %320, %cst_179 [1] : vector<32x512xf32> to vector<32xf32>
    %322 = vector.shape_cast %321 : vector<32xf32> to vector<32x1xf32>
    %323 = vector.broadcast %322 : vector<32x1xf32> to vector<32x512xf32>
    %324 = arith.subf %320, %323 : vector<32x512xf32>
    %325 = math.exp %324 : vector<32x512xf32>
    %cst_180 = arith.constant dense<0.000000e+00> : vector<32xf32>
    %326 = vector.multi_reduction <add>, %325, %cst_180 [1] : vector<32x512xf32> to vector<32xf32>
    %327 = vector.shape_cast %326 : vector<32xf32> to vector<32x1xf32>
    %328 = math.log %327 : vector<32x1xf32>
    %329 = vector.broadcast %328 : vector<32x1xf32> to vector<32x512xf32>
    %330 = arith.subf %324, %329 : vector<32x512xf32>
    %c0_181 = arith.constant 0 : index
    %c0_182 = arith.constant 0 : index
    %331 = vector.load %arg26[%c0_181, %c0_182] : memref<32x512xf32, #tpu.memory_space<vmem>>, vector<32x512xf32>
    tpu.vector_store %arg26[%c0_181, %c0_182], %330 {strides = array<i32>} : memref<32x512xf32, #tpu.memory_space<vmem>>, vector<32x512xf32>,
    return
  }
  func.func @transform_0(%arg0: i32) -> (i32, i32) {
    %c0_i32 = arith.constant 0 : i32
    %c0_i32_0 = arith.constant 0 : i32
    %c0_i32_1 = arith.constant 0 : i32
    return %c0_i32, %c0_i32_0 : i32, i32
  }
  func.func @transform_1(%arg0: i32) -> (i32, i32) {
    %c0_i32 = arith.constant 0 : i32
    %c0_i32_0 = arith.constant 0 : i32
    %c0_i32_1 = arith.constant 0 : i32
    return %c0_i32, %c0_i32_0 : i32, i32
  }
  func.func @transform_2(%arg0: i32) -> (i32, i32) {
    %c0_i32 = arith.constant 0 : i32
    %c0_i32_0 = arith.constant 0 : i32
    %c0_i32_1 = arith.constant 0 : i32
    return %c0_i32, %c0_i32_0 : i32, i32
  }
  func.func @transform_3(%arg0: i32) -> (i32, i32) {
    %c0_i32 = arith.constant 0 : i32
    %c0_i32_0 = arith.constant 0 : i32
    %c0_i32_1 = arith.constant 0 : i32
    return %c0_i32, %c0_i32_0 : i32, i32
  }
  func.func @transform_4(%arg0: i32) -> (i32, i32) {
    %c0_i32 = arith.constant 0 : i32
    %c0_i32_0 = arith.constant 0 : i32
    %c0_i32_1 = arith.constant 0 : i32
    return %c0_i32, %c0_i32_0 : i32, i32
  }
  func.func @transform_5(%arg0: i32) -> (i32, i32) {
    %c0_i32 = arith.constant 0 : i32
    %c0_i32_0 = arith.constant 0 : i32
    %c0_i32_1 = arith.constant 0 : i32
    return %c0_i32, %c0_i32_0 : i32, i32
  }
  func.func @transform_6(%arg0: i32) -> (i32, i32) {
    %c0_i32 = arith.constant 0 : i32
    %c0_i32_0 = arith.constant 0 : i32
    %c0_i32_1 = arith.constant 0 : i32
    return %c0_i32, %c0_i32_0 : i32, i32
  }
  func.func @transform_7(%arg0: i32) -> (i32, i32, i32) {
    %c0_i32 = arith.constant 0 : i32
    %c0_i32_0 = arith.constant 0 : i32
    %c0_i32_1 = arith.constant 0 : i32
    %c0_i32_2 = arith.constant 0 : i32
    return %c0_i32, %c0_i32_0, %c0_i32_1 : i32, i32, i32
  }
  func.func @transform_8(%arg0: i32) -> (i32, i32, i32) {
    %c0_i32 = arith.constant 0 : i32
    %c0_i32_0 = arith.constant 0 : i32
    %c0_i32_1 = arith.constant 0 : i32
    %c0_i32_2 = arith.constant 0 : i32
    return %c0_i32, %c0_i32_0, %c0_i32_1 : i32, i32, i32
  }
  func.func @transform_9(%arg0: i32) -> (i32, i32, i32) {
    %c0_i32 = arith.constant 0 : i32
    %c0_i32_0 = arith.constant 0 : i32
    %c0_i32_1 = arith.constant 0 : i32
    %c0_i32_2 = arith.constant 0 : i32
    return %c0_i32, %c0_i32_0, %c0_i32_1 : i32, i32, i32
  }
  func.func @transform_10(%arg0: i32) -> (i32, i32, i32) {
    %c0_i32 = arith.constant 0 : i32
    %c0_i32_0 = arith.constant 0 : i32
    %c0_i32_1 = arith.constant 0 : i32
    %c0_i32_2 = arith.constant 0 : i32
    return %c0_i32, %c0_i32_0, %c0_i32_1 : i32, i32, i32
  }
  func.func @transform_11(%arg0: i32) -> (i32, i32, i32) {
    %c0_i32 = arith.constant 0 : i32
    %c0_i32_0 = arith.constant 0 : i32
    %c0_i32_1 = arith.constant 0 : i32
    %c0_i32_2 = arith.constant 0 : i32
    return %c0_i32, %c0_i32_0, %c0_i32_1 : i32, i32, i32
  }
  func.func @transform_12(%arg0: i32) -> (i32, i32, i32) {
    %c0_i32 = arith.constant 0 : i32
    %c0_i32_0 = arith.constant 0 : i32
    %c0_i32_1 = arith.constant 0 : i32
    %c0_i32_2 = arith.constant 0 : i32
    return %c0_i32, %c0_i32_0, %c0_i32_1 : i32, i32, i32
  }
  func.func @transform_13(%arg0: i32) -> (i32, i32, i32) {
    %c0_i32 = arith.constant 0 : i32
    %c0_i32_0 = arith.constant 0 : i32
    %c0_i32_1 = arith.constant 0 : i32
    %c0_i32_2 = arith.constant 0 : i32
    return %c0_i32, %c0_i32_0, %c0_i32_1 : i32, i32, i32
  }
  func.func @transform_14(%arg0: i32) -> (i32, i32) {
    %c0_i32 = arith.constant 0 : i32
    %c0_i32_0 = arith.constant 0 : i32
    %c0_i32_1 = arith.constant 0 : i32
    return %c0_i32, %c0_i32_0 : i32, i32
  }
  func.func @transform_15(%arg0: i32) -> (i32, i32) {
    %c0_i32 = arith.constant 0 : i32
    %c0_i32_0 = arith.constant 0 : i32
    %c0_i32_1 = arith.constant 0 : i32
    return %c0_i32, %c0_i32_0 : i32, i32
  }
  func.func @transform_16(%arg0: i32) -> (i32, i32) {
    %c0_i32 = arith.constant 0 : i32
    %c0_i32_0 = arith.constant 0 : i32
    %c0_i32_1 = arith.constant 0 : i32
    return %c0_i32, %c0_i32_0 : i32, i32
  }
  func.func @transform_17(%arg0: i32) -> (i32, i32) {
    %c0_i32 = arith.constant 0 : i32
    %c0_i32_0 = arith.constant 0 : i32
    %c0_i32_1 = arith.constant 0 : i32
    return %c0_i32, %c0_i32_0 : i32, i32
  }
  func.func @transform_18(%arg0: i32) -> (i32, i32) {
    %c0_i32 = arith.constant 0 : i32
    %c0_i32_0 = arith.constant 0 : i32
    %c0_i32_1 = arith.constant 0 : i32
    return %c0_i32, %c0_i32_0 : i32, i32
  }
  func.func @transform_19(%arg0: i32) -> (i32, i32) {
    %c0_i32 = arith.constant 0 : i32
    %c0_i32_0 = arith.constant 0 : i32
    %c0_i32_1 = arith.constant 0 : i32
    return %c0_i32, %c0_i32_0 : i32, i32
  }
  func.func @transform_20(%arg0: i32) -> (i32, i32) {
    %c0_i32 = arith.constant 0 : i32
    %c0_i32_0 = arith.constant 0 : i32
    %c0_i32_1 = arith.constant 0 : i32
    return %c0_i32, %c0_i32_0 : i32, i32
  }
  func.func @transform_21(%arg0: i32) -> (i32, i32) {
    %c0_i32 = arith.constant 0 : i32
    %c0_i32_0 = arith.constant 0 : i32
    %c0_i32_1 = arith.constant 0 : i32
    return %c0_i32, %c0_i32_0 : i32, i32
  }
  func.func @transform_22(%arg0: i32) -> (i32, i32) {
    %c0_i32 = arith.constant 0 : i32
    %c0_i32_0 = arith.constant 0 : i32
    %c0_i32_1 = arith.constant 0 : i32
    return %c0_i32, %c0_i32_0 : i32, i32
  }
  func.func @transform_23(%arg0: i32) -> (i32, i32) {
    %c0_i32 = arith.constant 0 : i32
    %c0_i32_0 = arith.constant 0 : i32
    %c0_i32_1 = arith.constant 0 : i32
    return %c0_i32, %c0_i32_0 : i32, i32
  }
  func.func @transform_24(%arg0: i32) -> (i32, i32) {
    %c0_i32 = arith.constant 0 : i32
    %c0_i32_0 = arith.constant 0 : i32
    %c0_i32_1 = arith.constant 0 : i32
    return %c0_i32, %c0_i32_0 : i32, i32
  }
  func.func @transform_25(%arg0: i32) -> (i32, i32) {
    %c0_i32 = arith.constant 0 : i32
    %c0_i32_0 = arith.constant 0 : i32
    %c0_i32_1 = arith.constant 0 : i32
    return %c0_i32, %c0_i32_0 : i32, i32
  }
}

</mosaic_0001>

<llo_original>
// kernel: kcbert_reconstruct_forward.1
$region0: #{kcbert_reconstruct_forward.1}
  #allocation0 [shape = 'u32[]', space=smem, size = 0x4, offset = 0x4, fixed_abs, tag = 'smem constant byte address 0x4 - core index']
  #allocation1 [shape = 'u32[144,128]{1,0:T(1,128)}', space=vmem, size = 0x12000, scoped, tag = 'internal scratch']
  %s0 = inlined_call_operand.vmem [shape: s32[2,16], index: 0, kind: input, shape index: {}]
  %s1 = inlined_call_operand.vmem [shape: s32[2,16], index: 1, kind: input, shape index: {}]
  %s2 = inlined_call_operand.vmem [shape: f32[512,128], index: 2, kind: input, shape index: {}]
  %s3 = inlined_call_operand.vmem [shape: f32[32,128], index: 3, kind: input, shape index: {}]
  %s4 = inlined_call_operand.vmem [shape: f32[2,128], index: 4, kind: input, shape index: {}]
  %s5 = inlined_call_operand.vmem [shape: f32[1,128], index: 5, kind: input, shape index: {}]
  %s6 = inlined_call_operand.vmem [shape: f32[1,128], index: 6, kind: input, shape index: {}]
  %s7 = inlined_call_operand.vmem [shape: bf16[4,128,32], index: 7, kind: input, shape index: {}]
  %s8 = inlined_call_operand.vmem [shape: f32[4,1,32], index: 8, kind: input, shape index: {}]
  %s9 = inlined_call_operand.vmem [shape: bf16[4,128,32], index: 9, kind: input, shape index: {}]
  %s10 = inlined_call_operand.vmem [shape: f32[4,1,32], index: 10, kind: input, shape index: {}]
  %s11 = inlined_call_operand.vmem [shape: bf16[4,128,32], index: 11, kind: input, shape index: {}]
  %s12 = inlined_call_operand.vmem [shape: f32[4,1,32], index: 12, kind: input, shape index: {}]
  %s13 = inlined_call_operand.vmem [shape: bf16[4,32,128], index: 13, kind: input, shape index: {}]
  %s14 = inlined_call_operand.vmem [shape: f32[1,128], index: 14, kind: input, shape index: {}]
  %s15 = inlined_call_operand.vmem [shape: f32[1,128], index: 15, kind: input, shape index: {}]
  %s16 = inlined_call_operand.vmem [shape: f32[1,128], index: 16, kind: input, shape index: {}]
  %s17 = inlined_call_operand.vmem [shape: bf16[128,256], index: 17, kind: input, shape index: {}]
  %s18 = inlined_call_operand.vmem [shape: f32[1,256], index: 18, kind: input, shape index: {}]
  %s19 = inlined_call_operand.vmem [shape: bf16[256,128], index: 19, kind: input, shape index: {}]
  %s20 = inlined_call_operand.vmem [shape: f32[1,128], index: 20, kind: input, shape index: {}]
  %s21 = inlined_call_operand.vmem [shape: f32[1,128], index: 21, kind: input, shape index: {}]
  %s22 = inlined_call_operand.vmem [shape: f32[1,128], index: 22, kind: input, shape index: {}]
  %s23 = inlined_call_operand.vmem [shape: bf16[128,512], index: 23, kind: input, shape index: {}]
  %s24 = inlined_call_operand.vmem [shape: f32[1,512], index: 24, kind: input, shape index: {}]
  %s25 = inlined_call_operand.hbm [shape: f32[32,512], index: 25, kind: output, shape index: {}]
  %s26 = sld [smem:[#allocation0]]
  $region110: #{kcbert_reconstruct_forward.1} parent=0
    _
  %s28 = ssub.s32 1, %s26
  %s29 = scalar_select 0, %s28, %s26
  $region1: #{kcbert_reconstruct_forward.1} parent=0
    #allocation2 [shape = 'u8[65536]{0}', space=vmem, size = 0x10000, scoped, tag = 'output window, operand 0, single buffered']
    #allocation3 [shape = 's32[1]{0}', space=sflag, size = 0x4, scoped, tag = 'scoped memory for kcbert_reconstruct_forward.1']
    %30 = vsyncpa [#allocation3], 0
    // Predicated region
    $region2: #{kcbert_reconstruct_forward.1} parent=1 // pred_check
      _
    $region3: #{kcbert_reconstruct_forward.1} parent=1 // pred_check_branch
      %32 = sbr.rel (0) target = $region5
    $region4: #{kcbert_reconstruct_forward.1} parent=1 // pred_region
      _
    $region5: #{kcbert_reconstruct_forward.1} parent=1 // pred_fallthru
      _
    // Predicated region
    $region6: #{kcbert_reconstruct_forward.1} parent=1 // pred_check
      _
    $region7: #{kcbert_reconstruct_forward.1} parent=1 // pred_check_branch
      %34 = sbr.rel (0) target = $region9
    $region8: #{kcbert_reconstruct_forward.1} parent=1 // pred_region
      _
    $region9: #{kcbert_reconstruct_forward.1} parent=1 // pred_fallthru
      _
    // Predicated region
    $region10: #{kcbert_reconstruct_forward.1} parent=1 // pred_check
      _
    $region11: #{kcbert_reconstruct_forward.1} parent=1 // pred_check_branch
      %36 = sbr.rel (0) target = $region13
    $region12: #{kcbert_reconstruct_forward.1} parent=1 // pred_region
      _
    $region13: #{kcbert_reconstruct_forward.1} parent=1 // pred_fallthru
      _
    // Predicated region
    $region14: #{kcbert_reconstruct_forward.1} parent=1 // pred_check
      _
    $region15: #{kcbert_reconstruct_forward.1} parent=1 // pred_check_branch
      %38 = sbr.rel (0) target = $region17
    $region16: #{kcbert_reconstruct_forward.1} parent=1 // pred_region
      _
    $region17: #{kcbert_reconstruct_forward.1} parent=1 // pred_fallthru
      _
    // Predicated region
    $region18: #{kcbert_reconstruct_forward.1} parent=1 // pred_check
      _
    $region19: #{kcbert_reconstruct_forward.1} parent=1 // pred_check_branch
      %40 = sbr.rel (0) target = $region21
    $region20: #{kcbert_reconstruct_forward.1} parent=1 // pred_region
      _
    $region21: #{kcbert_reconstruct_forward.1} parent=1 // pred_fallthru
      _
    // Predicated region
    $region22: #{kcbert_reconstruct_forward.1} parent=1 // pred_check
      _
    $region23: #{kcbert_reconstruct_forward.1} parent=1 // pred_check_branch
      %42 = sbr.rel (0) target = $region25
    $region24: #{kcbert_reconstruct_forward.1} parent=1 // pred_region
      _
    $region25: #{kcbert_reconstruct_forward.1} parent=1 // pred_fallthru
      _
    // Predicated region
    $region26: #{kcbert_reconstruct_forward.1} parent=1 // pred_check
      _
    $region27: #{kcbert_reconstruct_forward.1} parent=1 // pred_check_branch
      %44 = sbr.rel (0) target = $region29
    $region28: #{kcbert_reconstruct_forward.1} parent=1 // pred_region
      _
    $region29: #{kcbert_reconstruct_forward.1} parent=1 // pred_fallthru
      _
    // Predicated region
    $region30: #{kcbert_reconstruct_forward.1} parent=1 // pred_check
      _
    $region31: #{kcbert_reconstruct_forward.1} parent=1 // pred_check_branch
      %46 = sbr.rel (0) target = $region33
    $region32: #{kcbert_reconstruct_forward.1} parent=1 // pred_region
      _
    $region33: #{kcbert_reconstruct_forward.1} parent=1 // pred_fallthru
      _
    // Predicated region
    $region34: #{kcbert_reconstruct_forward.1} parent=1 // pred_check
      _
    $region35: #{kcbert_reconstruct_forward.1} parent=1 // pred_check_branch
      %48 = sbr.rel (0) target = $region37
    $region36: #{kcbert_reconstruct_forward.1} parent=1 // pred_region
      _
    $region37: #{kcbert_reconstruct_forward.1} parent=1 // pred_fallthru
      _
    // Predicated region
    $region38: #{kcbert_reconstruct_forward.1} parent=1 // pred_check
      _
    $region39: #{kcbert_reconstruct_forward.1} parent=1 // pred_check_branch
      %50 = sbr.rel (0) target = $region41
    $region40: #{kcbert_reconstruct_forward.1} parent=1 // pred_region
      _
    $region41: #{kcbert_reconstruct_forward.1} parent=1 // pred_fallthru
      _
    // Predicated region
    $region42: #{kcbert_reconstruct_forward.1} parent=1 // pred_check
      _
    $region43: #{kcbert_reconstruct_forward.1} parent=1 // pred_check_branch
      %52 = sbr.rel (0) target = $region45
    $region44: #{kcbert_reconstruct_forward.1} parent=1 // pred_region
      _
    $region45: #{kcbert_reconstruct_forward.1} parent=1 // pred_fallthru
      _
    // Predicated region
    $region46: #{kcbert_reconstruct_forward.1} parent=1 // pred_check
      _
    $region47: #{kcbert_reconstruct_forward.1} parent=1 // pred_check_branch
      %54 = sbr.rel (0) target = $region49
    $region48: #{kcbert_reconstruct_forward.1} parent=1 // pred_region
      _
    $region49: #{kcbert_reconstruct_forward.1} parent=1 // pred_fallthru
      _
    // Predicated region
    $region50: #{kcbert_reconstruct_forward.1} parent=1 // pred_check
      _
    $region51: #{kcbert_reconstruct_forward.1} parent=1 // pred_check_branch
      %56 = sbr.rel (0) target = $region53
    $region52: #{kcbert_reconstruct_forward.1} parent=1 // pred_region
      _
    $region53: #{kcbert_reconstruct_forward.1} parent=1 // pred_fallthru
      _
    // Predicated region
    $region54: #{kcbert_reconstruct_forward.1} parent=1 // pred_check
      _
    $region55: #{kcbert_reconstruct_forward.1} parent=1 // pred_check_branch
      %58 = sbr.rel (0) target = $region57
    $region56: #{kcbert_reconstruct_forward.1} parent=1 // pred_region
      _
    $region57: #{kcbert_reconstruct_forward.1} parent=1 // pred_fallthru
      _
    // Predicated region
    $region58: #{kcbert_reconstruct_forward.1} parent=1 // pred_check
      _
    $region59: #{kcbert_reconstruct_forward.1} parent=1 // pred_check_branch
      %60 = sbr.rel (0) target = $region61
    $region60: #{kcbert_reconstruct_forward.1} parent=1 // pred_region
      _
    $region61: #{kcbert_reconstruct_forward.1} parent=1 // pred_fallthru
      _
    // Predicated region
    $region62: #{kcbert_reconstruct_forward.1} parent=1 // pred_check
      _
    $region63: #{kcbert_reconstruct_forward.1} parent=1 // pred_check_branch
      %62 = sbr.rel (0) target = $region65
    $region64: #{kcbert_reconstruct_forward.1} parent=1 // pred_region
      _
    $region65: #{kcbert_reconstruct_forward.1} parent=1 // pred_fallthru
      _
    // Predicated region
    $region66: #{kcbert_reconstruct_forward.1} parent=1 // pred_check
      _
    $region67: #{kcbert_reconstruct_forward.1} parent=1 // pred_check_branch
      %64 = sbr.rel (0) target = $region69
    $region68: #{kcbert_reconstruct_forward.1} parent=1 // pred_region
      _
    $region69: #{kcbert_reconstruct_forward.1} parent=1 // pred_fallthru
      _
    // Predicated region
    $region70: #{kcbert_reconstruct_forward.1} parent=1 // pred_check
      _
    $region71: #{kcbert_reconstruct_forward.1} parent=1 // pred_check_branch
      %66 = sbr.rel (0) target = $region73
    $region72: #{kcbert_reconstruct_forward.1} parent=1 // pred_region
      _
    $region73: #{kcbert_reconstruct_forward.1} parent=1 // pred_fallthru
      _
    // Predicated region
    $region74: #{kcbert_reconstruct_forward.1} parent=1 // pred_check
      _
    $region75: #{kcbert_reconstruct_forward.1} parent=1 // pred_check_branch
      %68 = sbr.rel (0) target = $region77
    $region76: #{kcbert_reconstruct_forward.1} parent=1 // pred_region
      _
    $region77: #{kcbert_reconstruct_forward.1} parent=1 // pred_fallthru
      _
    // Predicated region
    $region78: #{kcbert_reconstruct_forward.1} parent=1 // pred_check
      _
    $region79: #{kcbert_reconstruct_forward.1} parent=1 // pred_check_branch
      %70 = sbr.rel (0) target = $region81
    $region80: #{kcbert_reconstruct_forward.1} parent=1 // pred_region
      _
    $region81: #{kcbert_reconstruct_forward.1} parent=1 // pred_fallthru
      _
    // Predicated region
    $region82: #{kcbert_reconstruct_forward.1} parent=1 // pred_check
      _
    $region83: #{kcbert_reconstruct_forward.1} parent=1 // pred_check_branch
      %72 = sbr.rel (0) target = $region85
    $region84: #{kcbert_reconstruct_forward.1} parent=1 // pred_region
      _
    $region85: #{kcbert_reconstruct_forward.1} parent=1 // pred_fallthru
      _
    // Predicated region
    $region86: #{kcbert_reconstruct_forward.1} parent=1 // pred_check
      _
    $region87: #{kcbert_reconstruct_forward.1} parent=1 // pred_check_branch
      %74 = sbr.rel (0) target = $region89
    $region88: #{kcbert_reconstruct_forward.1} parent=1 // pred_region
      _
    $region89: #{kcbert_reconstruct_forward.1} parent=1 // pred_fallthru
      _
    // Predicated region
    $region90: #{kcbert_reconstruct_forward.1} parent=1 // pred_check
      _
    $region91: #{kcbert_reconstruct_forward.1} parent=1 // pred_check_branch
      %76 = sbr.rel (0) target = $region93
    $region92: #{kcbert_reconstruct_forward.1} parent=1 // pred_region
      _
    $region93: #{kcbert_reconstruct_forward.1} parent=1 // pred_fallthru
      _
    // Predicated region
    $region94: #{kcbert_reconstruct_forward.1} parent=1 // pred_check
      _
    $region95: #{kcbert_reconstruct_forward.1} parent=1 // pred_check_branch
      %78 = sbr.rel (0) target = $region97
    $region96: #{kcbert_reconstruct_forward.1} parent=1 // pred_region
      _
    $region97: #{kcbert_reconstruct_forward.1} parent=1 // pred_fallthru
      _
    // Predicated region
    $region98: #{kcbert_reconstruct_forward.1} parent=1 // pred_check
      _
    $region99: #{kcbert_reconstruct_forward.1} parent=1 // pred_check_branch
      %80 = sbr.rel (0) target = $region101
    $region100: #{kcbert_reconstruct_forward.1} parent=1 // pred_region
      _
    $region101: #{kcbert_reconstruct_forward.1} parent=1 // pred_fallthru
      _
    %v82 = vld [vmem:[%s0] sm:$0x3]
    %v83 = vld [vmem:[%s1] sm:$0x3]
    %v84 = vlaneseq
    %v85 = vand.u32 %v84, 127
    %v86 = vadd.s32 %v85, 128
    %v87 = vadd.s32 %v85, 256
    %v88 = vadd.s32 %v85, 384
    %v89 = vlaneseq
    %v90 = vshrl.u32 %v89, 7
    %v91 = vsub.s32 0, %v90
    %v92 = vrot.slane %v82, %v91
    %94 = vbcast.lane.b32.xlu0 %v92, 256
    %v95 = vpop.permute.xlu0 %94
    %s97 = sor.u32 256, 8
    %98 = vbcast.lane.b32.xlu0 %v92, %s97
    %v99 = vpop.permute.xlu0 %98
    %v100 = vlaneseq
    %v101 = vshrl.u32 %v100, 7
    %v102 = vsub.s32 1, %v101
    %v103 = vrot.slane %v82, %v102
    %105 = vbcast.lane.b32.xlu0 %v103, 256
    %v106 = vpop.permute.xlu0 %105
    %s108 = sor.u32 256, 8
    %109 = vbcast.lane.b32.xlu0 %v103, %s108
    %v110 = vpop.permute.xlu0 %109
    %vm111 = vcmp.eq.s32.totalorder %v95, %v85
    %vm112 = vcmp.eq.s32.totalorder %v95, %v86
    %vm113 = vcmp.eq.s32.totalorder %v95, %v87
    %vm114 = vcmp.eq.s32.totalorder %v95, %v88
    %vm115 = vcmp.eq.s32.totalorder %v99, %v85
    %vm116 = vcmp.eq.s32.totalorder %v99, %v86
    %vm117 = vcmp.eq.s32.totalorder %v99, %v87
    %vm118 = vcmp.eq.s32.totalorder %v99, %v88
    %vm119 = vcmp.eq.s32.totalorder %v106, %v85
    %vm120 = vcmp.eq.s32.totalorder %v106, %v86
    %vm121 = vcmp.eq.s32.totalorder %v106, %v87
    %vm122 = vcmp.eq.s32.totalorder %v106, %v88
    %vm123 = vcmp.eq.s32.totalorder %v110, %v85
    %vm124 = vcmp.eq.s32.totalorder %v110, %v86
    %vm125 = vcmp.eq.s32.totalorder %v110, %v87
    %vm126 = vcmp.eq.s32.totalorder %v110, %v88
    %v127 = vsel %vm111, 1, 0
    %v128 = vsel %vm112, 1, 0
    %v129 = vsel %vm113, 1, 0
    %v130 = vsel %vm114, 1, 0
    %v131 = vsel %vm115, 1, 0
    %v132 = vsel %vm116, 1, 0
    %v133 = vsel %vm117, 1, 0
    %v134 = vsel %vm118, 1, 0
    %v135 = vsel %vm119, 1, 0
    %v136 = vsel %vm120, 1, 0
    %v137 = vsel %vm121, 1, 0
    %v138 = vsel %vm122, 1, 0
    %v139 = vsel %vm123, 1, 0
    %v140 = vsel %vm124, 1, 0
    %v141 = vsel %vm125, 1, 0
    %v142 = vsel %vm126, 1, 0
    %v143 = vcvt.s32.f32 %v127
    %v144 = vcvt.s32.f32 %v128
    %v145 = vcvt.s32.f32 %v129
    %v146 = vcvt.s32.f32 %v130
    %v147 = vcvt.s32.f32 %v131
    %v148 = vcvt.s32.f32 %v132
    %v149 = vcvt.s32.f32 %v133
    %v150 = vcvt.s32.f32 %v134
    %v151 = vcvt.s32.f32 %v135
    %v152 = vcvt.s32.f32 %v136
    %v153 = vcvt.s32.f32 %v137
    %v154 = vcvt.s32.f32 %v138
    %v155 = vcvt.s32.f32 %v139
    %v156 = vcvt.s32.f32 %v140
    %v157 = vcvt.s32.f32 %v141
    %v158 = vcvt.s32.f32 %v142
    %v159 = vld [vmem:[%s2] sm:$0xff]
    %v160 = vld [vmem:[%s2 + $0x8] sm:$0xff]
    %v161 = vld [vmem:[%s2 + $0x10] sm:$0xff]
    %v162 = vld [vmem:[%s2 + $0x18] sm:$0xff]
    %v163 = vld [vmem:[%s2 + $0x20] sm:$0xff]
    %v164 = vld [vmem:[%s2 + $0x28] sm:$0xff]
    %v165 = vld [vmem:[%s2 + $0x30] sm:$0xff]
    %v166 = vld [vmem:[%s2 + $0x38] sm:$0xff]
    %v167 = vld [vmem:[%s2 + $0x40] sm:$0xff]
    %v168 = vld [vmem:[%s2 + $0x48] sm:$0xff]
    %v169 = vld [vmem:[%s2 + $0x50] sm:$0xff]
    %v170 = vld [vmem:[%s2 + $0x58] sm:$0xff]
    %v171 = vld [vmem:[%s2 + $0x60] sm:$0xff]
    %v172 = vld [vmem:[%s2 + $0x68] sm:$0xff]
    %v173 = vld [vmem:[%s2 + $0x70] sm:$0xff]
    %v174 = vld [vmem:[%s2 + $0x78] sm:$0xff]
    %v175 = vld [vmem:[%s2 + $0x80] sm:$0xff]
    %v176 = vld [vmem:[%s2 + $0x88] sm:$0xff]
    %v177 = vld [vmem:[%s2 + $0x90] sm:$0xff]
    %v178 = vld [vmem:[%s2 + $0x98] sm:$0xff]
    %v179 = vld [vmem:[%s2 + $0xa0] sm:$0xff]
    %v180 = vld [vmem:[%s2 + $0xa8] sm:$0xff]
    %v181 = vld [vmem:[%s2 + $0xb0] sm:$0xff]
    %v182 = vld [vmem:[%s2 + $0xb8] sm:$0xff]
    %v183 = vld [vmem:[%s2 + $0xc0] sm:$0xff]
    %v184 = vld [vmem:[%s2 + $0xc8] sm:$0xff]
    %v185 = vld [vmem:[%s2 + $0xd0] sm:$0xff]
    %v186 = vld [vmem:[%s2 + $0xd8] sm:$0xff]
    %v187 = vld [vmem:[%s2 + $0xe0] sm:$0xff]
    %v188 = vld [vmem:[%s2 + $0xe8] sm:$0xff]
    %v189 = vld [vmem:[%s2 + $0xf0] sm:$0xff]
    %v190 = vld [vmem:[%s2 + $0xf8] sm:$0xff]
    %v191 = vld [vmem:[%s2 + $0x100] sm:$0xff]
    %v192 = vld [vmem:[%s2 + $0x108] sm:$0xff]
    %v193 = vld [vmem:[%s2 + $0x110] sm:$0xff]
    %v194 = vld [vmem:[%s2 + $0x118] sm:$0xff]
    %v195 = vld [vmem:[%s2 + $0x120] sm:$0xff]
    %v196 = vld [vmem:[%s2 + $0x128] sm:$0xff]
    %v197 = vld [vmem:[%s2 + $0x130] sm:$0xff]
    %v198 = vld [vmem:[%s2 + $0x138] sm:$0xff]
    %v199 = vld [vmem:[%s2 + $0x140] sm:$0xff]
    %v200 = vld [vmem:[%s2 + $0x148] sm:$0xff]
    %v201 = vld [vmem:[%s2 + $0x150] sm:$0xff]
    %v202 = vld [vmem:[%s2 + $0x158] sm:$0xff]
    %v203 = vld [vmem:[%s2 + $0x160] sm:$0xff]
    %v204 = vld [vmem:[%s2 + $0x168] sm:$0xff]
    %v205 = vld [vmem:[%s2 + $0x170] sm:$0xff]
    %v206 = vld [vmem:[%s2 + $0x178] sm:$0xff]
    %v207 = vld [vmem:[%s2 + $0x180] sm:$0xff]
    %v208 = vld [vmem:[%s2 + $0x188] sm:$0xff]
    %v209 = vld [vmem:[%s2 + $0x190] sm:$0xff]
    %v210 = vld [vmem:[%s2 + $0x198] sm:$0xff]
    %v211 = vld [vmem:[%s2 + $0x1a0] sm:$0xff]
    %v212 = vld [vmem:[%s2 + $0x1a8] sm:$0xff]
    %v213 = vld [vmem:[%s2 + $0x1b0] sm:$0xff]
    %v214 = vld [vmem:[%s2 + $0x1b8] sm:$0xff]
    %v215 = vld [vmem:[%s2 + $0x1c0] sm:$0xff]
    %v216 = vld [vmem:[%s2 + $0x1c8] sm:$0xff]
    %v217 = vld [vmem:[%s2 + $0x1d0] sm:$0xff]
    %v218 = vld [vmem:[%s2 + $0x1d8] sm:$0xff]
    %v219 = vld [vmem:[%s2 + $0x1e0] sm:$0xff]
    %v220 = vld [vmem:[%s2 + $0x1e8] sm:$0xff]
    %v221 = vld [vmem:[%s2 + $0x1f0] sm:$0xff]
    %v222 = vld [vmem:[%s2 + $0x1f8] sm:$0xff]
    %v223 = vld [vmem:[%s3] sm:$0xff]
    %v224 = vld [vmem:[%s3 + $0x8] sm:$0xff]
    %v225 = vld [vmem:[%s4] sm:$0x1]
    %v226 = vld [vmem:[%s4 + $0x1] sm:$0x1]
    %v227 = vlaneseq
    %v228 = vshrl.u32 %v227, 7
    %v229 = vsub.s32 0, %v228
    %v230 = vrot.slane %v83, %v229
    %232 = vbcast.lane.b32.xlu0 %v230, 256
    %v233 = vpop.permute.xlu0 %232
    %s235 = sor.u32 256, 8
    %236 = vbcast.lane.b32.xlu0 %v230, %s235
    %v237 = vpop.permute.xlu0 %236
    %v238 = vlaneseq
    %v239 = vshrl.u32 %v238, 7
    %v240 = vsub.s32 1, %v239
    %v241 = vrot.slane %v83, %v240
    %243 = vbcast.lane.b32.xlu0 %v241, 256
    %v244 = vpop.permute.xlu0 %243
    %s246 = sor.u32 256, 8
    %247 = vbcast.lane.b32.xlu0 %v241, %s246
    %v248 = vpop.permute.xlu0 %247
    %v249 = vcvt.s32.f32 %v233
    %v250 = vcvt.s32.f32 %v237
    %v251 = vcvt.s32.f32 %v244
    %v252 = vcvt.s32.f32 %v248
    %v253 = vsub.f32 %v226, %v225
    %v254 = vlaneseq
    %v255 = vshrl.u32 %v254, 7
    %v256 = vsub.s32 0, %v255
    %v257 = vrot.slane %v253, %v256
    %v258 = vmul.f32 %v249, %v257
    %v259 = vmul.f32 %v250, %v257
    %v260 = vmul.f32 %v251, %v257
    %v261 = vmul.f32 %v252, %v257
    %v262 = vlaneseq
    %v263 = vshrl.u32 %v262, 7
    %v264 = vsub.s32 0, %v263
    %v265 = vrot.slane %v225, %v264
    %v266 = vadd.f32 %v265, %v258
    %v267 = vadd.f32 %v265, %v259
    %v268 = vadd.f32 %v265, %v260
    %v269 = vadd.f32 %v265, %v261
    %270 = vmatprep.subr.mxu0 0.0
    %271 = vmatpush1.msra.mxu0 %v174
    %272 = vmatprep.subr.mxu0 0.0
    %273 = vmatpush1.msra.mxu0 %v173
    %274 = vmatprep.subr.mxu0 0.0
    %275 = vmatpush1.msra.mxu0 %v172
    %276 = vmatprep.subr.mxu0 0.0
    %277 = vmatpush1.msra.mxu0 %v171
    %278 = vmatprep.subr.mxu0 0.0
    %279 = vmatpush1.msra.mxu0 %v170
    %280 = vmatprep.subr.mxu0 0.0
    %281 = vmatpush1.msra.mxu0 %v169
    %282 = vmatprep.subr.mxu0 0.0
    %283 = vmatpush1.msra.mxu0 %v168
    %284 = vmatprep.subr.mxu0 0.0
    %285 = vmatpush1.msra.mxu0 %v167
    %286 = vmatprep.subr.mxu0 0.0
    %287 = vmatpush1.msra.mxu0 %v166
    %288 = vmatprep.subr.mxu0 0.0
    %289 = vmatpush1.msra.mxu0 %v165
    %290 = vmatprep.subr.mxu0 0.0
    %291 = vmatpush1.msra.mxu0 %v164
    %292 = vmatprep.subr.mxu0 0.0
    %293 = vmatpush1.msra.mxu0 %v163
    %294 = vmatprep.subr.mxu0 0.0
    %295 = vmatpush1.msra.mxu0 %v162
    %296 = vmatprep.subr.mxu0 0.0
    %297 = vmatpush1.msra.mxu0 %v161
    %298 = vmatprep.subr.mxu0 0.0
    %299 = vmatpush1.msra.mxu0 %v160
    %300 = vmatprep.subr.mxu0 0.0
    %301 = vmatpush1.msra.mxu0 %v159
    %302 = vmatprep.subr.mxu0 0.0
    %303 = vmatpush2.msra.mxu0 %v190
    %304 = vmatprep.subr.mxu0 0.0
    %305 = vmatpush2.msra.mxu0 %v189
    %306 = vmatprep.subr.mxu0 0.0
    %307 = vmatpush2.msra.mxu0 %v188
    %308 = vmatprep.subr.mxu0 0.0
    %309 = vmatpush2.msra.mxu0 %v187
    %310 = vmatprep.subr.mxu0 0.0
    %311 = vmatpush2.msra.mxu0 %v186
    %312 = vmatprep.subr.mxu0 0.0
    %313 = vmatpush2.msra.mxu0 %v185
    %314 = vmatprep.subr.mxu0 0.0
    %315 = vmatpush2.msra.mxu0 %v184
    %316 = vmatprep.subr.mxu0 0.0
    %317 = vmatpush2.msra.mxu0 %v183
    %318 = vmatprep.subr.mxu0 0.0
    %319 = vmatpush2.msra.mxu0 %v182
    %320 = vmatprep.subr.mxu0 0.0
    %321 = vmatpush2.msra.mxu0 %v181
    %322 = vmatprep.subr.mxu0 0.0
    %323 = vmatpush2.msra.mxu0 %v180
    %324 = vmatprep.subr.mxu0 0.0
    %325 = vmatpush2.msra.mxu0 %v179
    %326 = vmatprep.subr.mxu0 0.0
    %327 = vmatpush2.msra.mxu0 %v178
    %328 = vmatprep.subr.mxu0 0.0
    %329 = vmatpush2.msra.mxu0 %v177
    %330 = vmatprep.subr.mxu0 0.0
    %331 = vmatpush2.msra.mxu0 %v176
    %332 = vmatprep.subr.mxu0 0.0
    %333 = vmatpush2.msra.mxu0 %v175
    %334 = vmatprep.mubr.f32.mxu0 %v144
    %335 = vmatmul.mubr.f32.gmra.mxu0 %v143
    %v336 = vpop.f32.mrf.mxu0
    %v337 = vadd.f32 %v223, %v336
    %v338 = vpop.f32.mrf.mxu0
    %339 = vmatprep.mubr.f32.mxu0 %v148
    %340 = vmatmul.mubr.f32.gmra.mxu0 %v147
    %v341 = vpop.f32.mrf.mxu0
    %v342 = vadd.f32 %v224, %v341
    %v343 = vpop.f32.mrf.mxu0
    %344 = vmatprep.mubr.f32.mxu0 %v152
    %345 = vmatmul.mubr.f32.gmra.mxu0 %v151
    %v346 = vpop.f32.mrf.mxu0
    %v347 = vadd.f32 %v223, %v346
    %v348 = vpop.f32.mrf.mxu0
    %349 = vmatprep.mubr.f32.mxu0 %v156
    %350 = vmatmul.mubr.f32.gmra.mxu0 %v155
    %v351 = vpop.f32.mrf.mxu0
    %v352 = vadd.f32 %v224, %v351
    %v353 = vpop.f32.mrf.mxu0
    %354 = vdwg.mxu0
    %355 = vmatprep.subr.mxu0 0.0
    %356 = vmatpush1.msra.mxu0 %v206
    %357 = vmatprep.subr.mxu0 0.0
    %358 = vmatpush1.msra.mxu0 %v205
    %359 = vmatprep.subr.mxu0 0.0
    %360 = vmatpush1.msra.mxu0 %v204
    %361 = vmatprep.subr.mxu0 0.0
    %362 = vmatpush1.msra.mxu0 %v203
    %363 = vmatprep.subr.mxu0 0.0
    %364 = vmatpush1.msra.mxu0 %v202
    %365 = vmatprep.subr.mxu0 0.0
    %366 = vmatpush1.msra.mxu0 %v201
    %367 = vmatprep.subr.mxu0 0.0
    %368 = vmatpush1.msra.mxu0 %v200
    %369 = vmatprep.subr.mxu0 0.0
    %370 = vmatpush1.msra.mxu0 %v199
    %371 = vmatprep.subr.mxu0 0.0
    %372 = vmatpush1.msra.mxu0 %v198
    %373 = vmatprep.subr.mxu0 0.0
    %374 = vmatpush1.msra.mxu0 %v197
    %375 = vmatprep.subr.mxu0 0.0
    %376 = vmatpush1.msra.mxu0 %v196
    %377 = vmatprep.subr.mxu0 0.0
    %378 = vmatpush1.msra.mxu0 %v195
    %379 = vmatprep.subr.mxu0 0.0
    %380 = vmatpush1.msra.mxu0 %v194
    %381 = vmatprep.subr.mxu0 0.0
    %382 = vmatpush1.msra.mxu0 %v193
    %383 = vmatprep.subr.mxu0 0.0
    %384 = vmatpush1.msra.mxu0 %v192
    %385 = vmatprep.subr.mxu0 0.0
    %386 = vmatpush1.msra.mxu0 %v191
    %387 = vmatprep.subr.mxu0 0.0
    %388 = vmatpush2.msra.mxu0 %v222
    %389 = vmatprep.subr.mxu0 0.0
    %390 = vmatpush2.msra.mxu0 %v221
    %391 = vmatprep.subr.mxu0 0.0
    %392 = vmatpush2.msra.mxu0 %v220
    %393 = vmatprep.subr.mxu0 0.0
    %394 = vmatpush2.msra.mxu0 %v219
    %395 = vmatprep.subr.mxu0 0.0
    %396 = vmatpush2.msra.mxu0 %v218
    %397 = vmatprep.subr.mxu0 0.0
    %398 = vmatpush2.msra.mxu0 %v217
    %399 = vmatprep.subr.mxu0 0.0
    %400 = vmatpush2.msra.mxu0 %v216
    %401 = vmatprep.subr.mxu0 0.0
    %402 = vmatpush2.msra.mxu0 %v215
    %403 = vmatprep.subr.mxu0 0.0
    %404 = vmatpush2.msra.mxu0 %v214
    %405 = vmatprep.subr.mxu0 0.0
    %406 = vmatpush2.msra.mxu0 %v213
    %407 = vmatprep.subr.mxu0 0.0
    %408 = vmatpush2.msra.mxu0 %v212
    %409 = vmatprep.subr.mxu0 0.0
    %410 = vmatpush2.msra.mxu0 %v211
    %411 = vmatprep.subr.mxu0 0.0
    %412 = vmatpush2.msra.mxu0 %v210
    %413 = vmatprep.subr.mxu0 0.0
    %414 = vmatpush2.msra.mxu0 %v209
    %415 = vmatprep.subr.mxu0 0.0
    %416 = vmatpush2.msra.mxu0 %v208
    %417 = vmatprep.subr.mxu0 0.0
    %418 = vmatpush2.msra.mxu0 %v207
    %419 = vmatprep.mubr.f32.mxu0 %v146
    %420 = vmatmul.mubr.f32.gmra.mxu0 %v145
    %v421 = vpop.f32.mrf.mxu0
    %v422 = vadd.f32 %v337, %v421
    %v423 = vpop.f32.mrf.mxu0
    %424 = vmatprep.mubr.f32.mxu0 %v150
    %425 = vmatmul.mubr.f32.gmra.mxu0 %v149
    %v426 = vpop.f32.mrf.mxu0
    %v427 = vadd.f32 %v342, %v426
    %v428 = vpop.f32.mrf.mxu0
    %429 = vmatprep.mubr.f32.mxu0 %v154
    %430 = vmatmul.mubr.f32.gmra.mxu0 %v153
    %v431 = vpop.f32.mrf.mxu0
    %v432 = vadd.f32 %v347, %v431
    %v433 = vpop.f32.mrf.mxu0
    %434 = vmatprep.mubr.f32.mxu0 %v158
    %435 = vmatmul.mubr.f32.gmra.mxu0 %v157
    %v436 = vpop.f32.mrf.mxu0
    %v437 = vadd.f32 %v352, %v436
    %v438 = vpop.f32.mrf.mxu0
    %439 = vdwg.mxu0
    %v440 = vadd.f32 %v422, %v266
    %v441 = vadd.f32 %v427, %v267
    %v442 = vadd.f32 %v432, %v268
    %v443 = vadd.f32 %v437, %v269
    %v444 = vld [vmem:[%s5] sm:$0x1]
    %v445 = vld [vmem:[%s6] sm:$0x1]
    %446 = vadd.xlane.f32.xlu0 %v440
    %v447 = vpop.xlane.xlu0 %446
    %448 = vadd.xlane.f32.xlu0 %v441
    %v449 = vpop.xlane.xlu0 %448
    %450 = vadd.xlane.f32.xlu0 %v442
    %v451 = vpop.xlane.xlu0 %450
    %452 = vadd.xlane.f32.xlu0 %v443
    %v453 = vpop.xlane.xlu0 %452
    %v454 = vrcp.pop 128.0
    %v455 = vmul.f32 %v447, %v454
    %v456 = vmul.f32 %v449, %v454
    %v457 = vmul.f32 %v451, %v454
    %v458 = vmul.f32 %v453, %v454
    %v459 = vsub.f32 %v440, %v455
    %v460 = vsub.f32 %v441, %v456
    %v461 = vsub.f32 %v442, %v457
    %v462 = vsub.f32 %v443, %v458
    %v463 = vmul.f32 %v459, %v459
    %v464 = vmul.f32 %v460, %v460
    %v465 = vmul.f32 %v461, %v461
    %v466 = vmul.f32 %v462, %v462
    %467 = vadd.xlane.f32.xlu0 %v463
    %v468 = vpop.xlane.xlu0 %467
    %469 = vadd.xlane.f32.xlu0 %v464
    %v470 = vpop.xlane.xlu0 %469
    %471 = vadd.xlane.f32.xlu0 %v465
    %v472 = vpop.xlane.xlu0 %471
    %473 = vadd.xlane.f32.xlu0 %v466
    %v474 = vpop.xlane.xlu0 %473
    %v475 = vmul.f32 %v468, %v454
    %v476 = vmul.f32 %v470, %v454
    %v477 = vmul.f32 %v472, %v454
    %v478 = vmul.f32 %v474, %v454
    %v479 = vadd.f32 %v475, 1e-12
    %v480 = vadd.f32 %v476, 1e-12
    %v481 = vadd.f32 %v477, 1e-12
    %v482 = vadd.f32 %v478, 1e-12
    %v483 = vrsqrt.pop %v479
    %v484 = vrsqrt.pop %v480
    %v485 = vrsqrt.pop %v481
    %v486 = vrsqrt.pop %v482
    %v487 = vmul.f32 %v459, %v483
    %v488 = vmul.f32 %v460, %v484
    %v489 = vmul.f32 %v461, %v485
    %v490 = vmul.f32 %v462, %v486
    %v492 = vlaneseq
    %v493 = vshrl.u32 %v492, 7
    %v494 = vsub.s32 0, %v493
    %v495 = vrot.slane %v444, %v494
    %v497 = vmul.f32 %v487, %v495
    %v498 = vmul.f32 %v488, %v495
    %v499 = vmul.f32 %v489, %v495
    %v500 = vmul.f32 %v490, %v495
    %v502 = vlaneseq
    %v503 = vshrl.u32 %v502, 7
    %v504 = vsub.s32 0, %v503
    %v505 = vrot.slane %v445, %v504
    %v507 = vadd.f32 %v497, %v505
    %v508 = vadd.f32 %v498, %v505
    %v509 = vadd.f32 %v499, %v505
    %v510 = vadd.f32 %v500, %v505
    %vm511 = vcmp.eq.s32.totalorder %v82, 0
    %v512 = vsel %vm511, -10000.0, 0.0
    %v515 = vunpack.c.l.s4 1966171168
    %v516 = vunpack.c.0.s8 %v515
    %v517 = vlaneseq
    %v518 = vshrl.u32 %v517, 7
    %v519 = vsub.s32 %v516, %v518
    %v520 = vrot.slane %v512, %v519
    %v521 = vcombine.high %v520, %v520
    %v523 = vunpack.c.l.s4 1966171168
    %v524 = vunpack.c.0.s8 %v523
    %v525 = vlaneseq
    %v526 = vshrl.u32 %v525, 7
    %v527 = vsub.s32 %v524, %v526
    %v528 = vrot.slane %v520, %v527
    %v530 = vunpack.c.l.s4 1966171168
    %v531 = vunpack.c.0.s8 %v530
    %v532 = vlaneseq
    %v533 = vshrl.u32 %v532, 7
    %v534 = vsub.s32 %v531, %v533
    %v535 = vrot.slane %v521, %v534
    %v536 = vpack.c.bf16 %v508, %v507
    %v537 = vpack.c.bf16 %v510, %v509
    %v538 = vld [vmem:[%s7] sm:$0xf]
    %v539 = vld [vmem:[%s7 + $0x4] sm:$0xf]
    %v540 = vld [vmem:[%s7 + $0x8] sm:$0xf]
    %v541 = vld [vmem:[%s7 + $0xc] sm:$0xf]
    %v542 = vld [vmem:[%s7 + $0x10] sm:$0xf]
    %v543 = vld [vmem:[%s7 + $0x14] sm:$0xf]
    %v544 = vld [vmem:[%s7 + $0x18] sm:$0xf]
    %v545 = vld [vmem:[%s7 + $0x1c] sm:$0xf]
    %v546 = vld [vmem:[%s7 + $0x20] sm:$0xf]
    %v547 = vld [vmem:[%s7 + $0x24] sm:$0xf]
    %v548 = vld [vmem:[%s7 + $0x28] sm:$0xf]
    %v549 = vld [vmem:[%s7 + $0x2c] sm:$0xf]
    %v550 = vld [vmem:[%s7 + $0x30] sm:$0xf]
    %v551 = vld [vmem:[%s7 + $0x34] sm:$0xf]
    %v552 = vld [vmem:[%s7 + $0x38] sm:$0xf]
    %v553 = vld [vmem:[%s7 + $0x3c] sm:$0xf]
    %v554 = vld [vmem:[%s8] sm:$0x1]
    %v556 = vlaneseq
    %v557 = vshrl.u32 %v556, 7
    %v558 = vsub.s32 0, %v557
    %v559 = vrot.slane %v554, %v558
    %v577 = vunpack.c.l.b16 %v538
    %v578 = vunpack.c.l.b16 %v539
    %v579 = vunpack.c.l.b16 %v540
    %v580 = vunpack.c.l.b16 %v541
    %v581 = vunpack.c.l.b16 %v542
    %v582 = vunpack.c.l.b16 %v543
    %v583 = vunpack.c.l.b16 %v544
    %v584 = vunpack.c.l.b16 %v545
    %v585 = vunpack.c.l.b16 %v546
    %v586 = vunpack.c.l.b16 %v547
    %v587 = vunpack.c.l.b16 %v548
    %v588 = vunpack.c.l.b16 %v549
    %v589 = vunpack.c.l.b16 %v550
    %v590 = vunpack.c.l.b16 %v551
    %v591 = vunpack.c.l.b16 %v552
    %v592 = vunpack.c.l.b16 %v553
    %v593 = vpack.c.b16 %v578, %v577
    %v594 = vpack.c.b16 %v580, %v579
    %v595 = vpack.c.b16 %v582, %v581
    %v596 = vpack.c.b16 %v584, %v583
    %v597 = vpack.c.b16 %v586, %v585
    %v598 = vpack.c.b16 %v588, %v587
    %v599 = vpack.c.b16 %v590, %v589
    %v600 = vpack.c.b16 %v592, %v591
    %609 = vmatprep.subr.bf16.mxu0 0
    %610 = vmatpush1.bf16.msra.mxu0 %v600
    %611 = vmatprep.subr.bf16.mxu0 0
    %612 = vmatpush1.bf16.msra.mxu0 %v599
    %613 = vmatprep.subr.bf16.mxu0 0
    %614 = vmatpush1.bf16.msra.mxu0 %v598
    %615 = vmatprep.subr.bf16.mxu0 0
    %616 = vmatpush1.bf16.msra.mxu0 %v597
    %617 = vmatprep.subr.bf16.mxu0 0
    %618 = vmatpush1.bf16.msra.mxu0 %v596
    %619 = vmatprep.subr.bf16.mxu0 0
    %620 = vmatpush1.bf16.msra.mxu0 %v595
    %621 = vmatprep.subr.bf16.mxu0 0
    %622 = vmatpush1.bf16.msra.mxu0 %v594
    %623 = vmatprep.subr.bf16.mxu0 0
    %624 = vmatpush1.bf16.msra.mxu0 %v593
    %625 = vmatprep.subr.bf16.mxu0 0
    %626 = vmatpush2.bf16.msra.mxu0 0
    %627 = vmatprep.subr.bf16.mxu0 0
    %628 = vmatpush2.bf16.msra.mxu0 0
    %629 = vmatprep.subr.bf16.mxu0 0
    %630 = vmatpush2.bf16.msra.mxu0 0
    %631 = vmatprep.subr.bf16.mxu0 0
    %632 = vmatpush2.bf16.msra.mxu0 0
    %633 = vmatprep.subr.bf16.mxu0 0
    %634 = vmatpush2.bf16.msra.mxu0 0
    %635 = vmatprep.subr.bf16.mxu0 0
    %636 = vmatpush2.bf16.msra.mxu0 0
    %637 = vmatprep.subr.bf16.mxu0 0
    %638 = vmatpush2.bf16.msra.mxu0 0
    %639 = vmatprep.subr.bf16.mxu0 0
    %640 = vmatpush2.bf16.msra.mxu0 0
    %641 = vmatprep.mubr.bf16.mxu0 0
    %642 = vmatmul.mubr.bf16.gmra.mxu0 %v536
    %v643 = vpop.f32.mrf.mxu0
    %v644 = vadd.f32 %v559, %v643
    %v645 = vpop.f32.mrf.mxu0
    %v646 = vpop.f32.mrf.mxu0
    %v647 = vadd.f32 %v559, %v646
    %v648 = vpop.f32.mrf.mxu0
    %649 = vmatprep.mubr.bf16.mxu0 0
    %650 = vmatmul.mubr.bf16.gmra.mxu0 %v537
    %v651 = vpop.f32.mrf.mxu0
    %v652 = vadd.f32 %v559, %v651
    %v653 = vpop.f32.mrf.mxu0
    %v654 = vpop.f32.mrf.mxu0
    %v655 = vadd.f32 %v559, %v654
    %v656 = vpop.f32.mrf.mxu0
    %657 = vdwg.mxu0
    %v658 = vld [vmem:[%s9] sm:$0xf]
    %v659 = vld [vmem:[%s9 + $0x4] sm:$0xf]
    %v660 = vld [vmem:[%s9 + $0x8] sm:$0xf]
    %v661 = vld [vmem:[%s9 + $0xc] sm:$0xf]
    %v662 = vld [vmem:[%s9 + $0x10] sm:$0xf]
    %v663 = vld [vmem:[%s9 + $0x14] sm:$0xf]
    %v664 = vld [vmem:[%s9 + $0x18] sm:$0xf]
    %v665 = vld [vmem:[%s9 + $0x1c] sm:$0xf]
    %v666 = vld [vmem:[%s9 + $0x20] sm:$0xf]
    %v667 = vld [vmem:[%s9 + $0x24] sm:$0xf]
    %v668 = vld [vmem:[%s9 + $0x28] sm:$0xf]
    %v669 = vld [vmem:[%s9 + $0x2c] sm:$0xf]
    %v670 = vld [vmem:[%s9 + $0x30] sm:$0xf]
    %v671 = vld [vmem:[%s9 + $0x34] sm:$0xf]
    %v672 = vld [vmem:[%s9 + $0x38] sm:$0xf]
    %v673 = vld [vmem:[%s9 + $0x3c] sm:$0xf]
    %v674 = vld [vmem:[%s10] sm:$0x1]
    %v676 = vlaneseq
    %v677 = vshrl.u32 %v676, 7
    %v678 = vsub.s32 0, %v677
    %v679 = vrot.slane %v674, %v678
    %v697 = vunpack.c.l.b16 %v658
    %v698 = vunpack.c.l.b16 %v659
    %v699 = vunpack.c.l.b16 %v660
    %v700 = vunpack.c.l.b16 %v661
    %v701 = vunpack.c.l.b16 %v662
    %v702 = vunpack.c.l.b16 %v663
    %v703 = vunpack.c.l.b16 %v664
    %v704 = vunpack.c.l.b16 %v665
    %v705 = vunpack.c.l.b16 %v666
    %v706 = vunpack.c.l.b16 %v667
    %v707 = vunpack.c.l.b16 %v668
    %v708 = vunpack.c.l.b16 %v669
    %v709 = vunpack.c.l.b16 %v670
    %v710 = vunpack.c.l.b16 %v671
    %v711 = vunpack.c.l.b16 %v672
    %v712 = vunpack.c.l.b16 %v673
    %v713 = vpack.c.b16 %v698, %v697
    %v714 = vpack.c.b16 %v700, %v699
    %v715 = vpack.c.b16 %v702, %v701
    %v716 = vpack.c.b16 %v704, %v703
    %v717 = vpack.c.b16 %v706, %v705
    %v718 = vpack.c.b16 %v708, %v707
    %v719 = vpack.c.b16 %v710, %v709
    %v720 = vpack.c.b16 %v712, %v711
    %729 = vmatprep.subr.bf16.mxu0 0
    %730 = vmatpush1.bf16.msra.mxu0 %v720
    %731 = vmatprep.subr.bf16.mxu0 0
    %732 = vmatpush1.bf16.msra.mxu0 %v719
    %733 = vmatprep.subr.bf16.mxu0 0
    %734 = vmatpush1.bf16.msra.mxu0 %v718
    %735 = vmatprep.subr.bf16.mxu0 0
    %736 = vmatpush1.bf16.msra.mxu0 %v717
    %737 = vmatprep.subr.bf16.mxu0 0
    %738 = vmatpush1.bf16.msra.mxu0 %v716
    %739 = vmatprep.subr.bf16.mxu0 0
    %740 = vmatpush1.bf16.msra.mxu0 %v715
    %741 = vmatprep.subr.bf16.mxu0 0
    %742 = vmatpush1.bf16.msra.mxu0 %v714
    %743 = vmatprep.subr.bf16.mxu0 0
    %744 = vmatpush1.bf16.msra.mxu0 %v713
    %745 = vmatprep.subr.bf16.mxu0 0
    %746 = vmatpush2.bf16.msra.mxu0 0
    %747 = vmatprep.subr.bf16.mxu0 0
    %748 = vmatpush2.bf16.msra.mxu0 0
    %749 = vmatprep.subr.bf16.mxu0 0
    %750 = vmatpush2.bf16.msra.mxu0 0
    %751 = vmatprep.subr.bf16.mxu0 0
    %752 = vmatpush2.bf16.msra.mxu0 0
    %753 = vmatprep.subr.bf16.mxu0 0
    %754 = vmatpush2.bf16.msra.mxu0 0
    %755 = vmatprep.subr.bf16.mxu0 0
    %756 = vmatpush2.bf16.msra.mxu0 0
    %757 = vmatprep.subr.bf16.mxu0 0
    %758 = vmatpush2.bf16.msra.mxu0 0
    %759 = vmatprep.subr.bf16.mxu0 0
    %760 = vmatpush2.bf16.msra.mxu0 0
    %761 = vmatprep.mubr.bf16.mxu0 0
    %762 = vmatmul.mubr.bf16.gmra.mxu0 %v536
    %v763 = vpop.f32.mrf.mxu0
    %v764 = vadd.f32 %v679, %v763
    %v765 = vpop.f32.mrf.mxu0
    %v766 = vpop.f32.mrf.mxu0
    %v767 = vadd.f32 %v679, %v766
    %v768 = vpop.f32.mrf.mxu0
    %769 = vmatprep.mubr.bf16.mxu0 0
    %770 = vmatmul.mubr.bf16.gmra.mxu0 %v537
    %v771 = vpop.f32.mrf.mxu0
    %v772 = vadd.f32 %v679, %v771
    %v773 = vpop.f32.mrf.mxu0
    %v774 = vpop.f32.mrf.mxu0
    %v775 = vadd.f32 %v679, %v774
    %v776 = vpop.f32.mrf.mxu0
    %777 = vdwg.mxu0
    %v778 = vld [vmem:[%s11] sm:$0xf]
    %v779 = vld [vmem:[%s11 + $0x4] sm:$0xf]
    %v780 = vld [vmem:[%s11 + $0x8] sm:$0xf]
    %v781 = vld [vmem:[%s11 + $0xc] sm:$0xf]
    %v782 = vld [vmem:[%s11 + $0x10] sm:$0xf]
    %v783 = vld [vmem:[%s11 + $0x14] sm:$0xf]
    %v784 = vld [vmem:[%s11 + $0x18] sm:$0xf]
    %v785 = vld [vmem:[%s11 + $0x1c] sm:$0xf]
    %v786 = vld [vmem:[%s11 + $0x20] sm:$0xf]
    %v787 = vld [vmem:[%s11 + $0x24] sm:$0xf]
    %v788 = vld [vmem:[%s11 + $0x28] sm:$0xf]
    %v789 = vld [vmem:[%s11 + $0x2c] sm:$0xf]
    %v790 = vld [vmem:[%s11 + $0x30] sm:$0xf]
    %v791 = vld [vmem:[%s11 + $0x34] sm:$0xf]
    %v792 = vld [vmem:[%s11 + $0x38] sm:$0xf]
    %v793 = vld [vmem:[%s11 + $0x3c] sm:$0xf]
    %v794 = vld [vmem:[%s12] sm:$0x1]
    %v796 = vlaneseq
    %v797 = vshrl.u32 %v796, 7
    %v798 = vsub.s32 0, %v797
    %v799 = vrot.slane %v794, %v798
    %v817 = vunpack.c.l.b16 %v778
    %v818 = vunpack.c.l.b16 %v779
    %v819 = vunpack.c.l.b16 %v780
    %v820 = vunpack.c.l.b16 %v781
    %v821 = vunpack.c.l.b16 %v782
    %v822 = vunpack.c.l.b16 %v783
    %v823 = vunpack.c.l.b16 %v784
    %v824 = vunpack.c.l.b16 %v785
    %v825 = vunpack.c.l.b16 %v786
    %v826 = vunpack.c.l.b16 %v787
    %v827 = vunpack.c.l.b16 %v788
    %v828 = vunpack.c.l.b16 %v789
    %v829 = vunpack.c.l.b16 %v790
    %v830 = vunpack.c.l.b16 %v791
    %v831 = vunpack.c.l.b16 %v792
    %v832 = vunpack.c.l.b16 %v793
    %v833 = vpack.c.b16 %v818, %v817
    %v834 = vpack.c.b16 %v820, %v819
    %v835 = vpack.c.b16 %v822, %v821
    %v836 = vpack.c.b16 %v824, %v823
    %v837 = vpack.c.b16 %v826, %v825
    %v838 = vpack.c.b16 %v828, %v827
    %v839 = vpack.c.b16 %v830, %v829
    %v840 = vpack.c.b16 %v832, %v831
    %849 = vmatprep.subr.bf16.mxu0 0
    %850 = vmatpush1.bf16.msra.mxu0 %v840
    %851 = vmatprep.subr.bf16.mxu0 0
    %852 = vmatpush1.bf16.msra.mxu0 %v839
    %853 = vmatprep.subr.bf16.mxu0 0
    %854 = vmatpush1.bf16.msra.mxu0 %v838
    %855 = vmatprep.subr.bf16.mxu0 0
    %856 = vmatpush1.bf16.msra.mxu0 %v837
    %857 = vmatprep.subr.bf16.mxu0 0
    %858 = vmatpush1.bf16.msra.mxu0 %v836
    %859 = vmatprep.subr.bf16.mxu0 0
    %860 = vmatpush1.bf16.msra.mxu0 %v835
    %861 = vmatprep.subr.bf16.mxu0 0
    %862 = vmatpush1.bf16.msra.mxu0 %v834
    %863 = vmatprep.subr.bf16.mxu0 0
    %864 = vmatpush1.bf16.msra.mxu0 %v833
    %865 = vmatprep.subr.bf16.mxu0 0
    %866 = vmatpush2.bf16.msra.mxu0 0
    %867 = vmatprep.subr.bf16.mxu0 0
    %868 = vmatpush2.bf16.msra.mxu0 0
    %869 = vmatprep.subr.bf16.mxu0 0
    %870 = vmatpush2.bf16.msra.mxu0 0
    %871 = vmatprep.subr.bf16.mxu0 0
    %872 = vmatpush2.bf16.msra.mxu0 0
    %873 = vmatprep.subr.bf16.mxu0 0
    %874 = vmatpush2.bf16.msra.mxu0 0
    %875 = vmatprep.subr.bf16.mxu0 0
    %876 = vmatpush2.bf16.msra.mxu0 0
    %877 = vmatprep.subr.bf16.mxu0 0
    %878 = vmatpush2.bf16.msra.mxu0 0
    %879 = vmatprep.subr.bf16.mxu0 0
    %880 = vmatpush2.bf16.msra.mxu0 0
    %881 = vmatprep.mubr.bf16.mxu0 0
    %882 = vmatmul.mubr.bf16.gmra.mxu0 %v536
    %v883 = vpop.f32.mrf.mxu0
    %v884 = vadd.f32 %v799, %v883
    %v885 = vpop.f32.mrf.mxu0
    %v886 = vpop.f32.mrf.mxu0
    %v887 = vadd.f32 %v799, %v886
    %v888 = vpop.f32.mrf.mxu0
    %889 = vmatprep.mubr.bf16.mxu0 0
    %890 = vmatmul.mubr.bf16.gmra.mxu0 %v537
    %v891 = vpop.f32.mrf.mxu0
    %v892 = vadd.f32 %v799, %v891
    %v893 = vpop.f32.mrf.mxu0
    %v894 = vpop.f32.mrf.mxu0
    %v895 = vadd.f32 %v799, %v894
    %v896 = vpop.f32.mrf.mxu0
    %897 = vdwg.mxu0
    %vm898 = vcmask 261120
    %v900 = vsel %vm898, %v644, 0
    %v903 = vsel %vm898, %v647, 0
    %v906 = vsel %vm898, %v764, 0
    %v909 = vsel %vm898, %v767, 0
    %911 = vmatprep.subr.mxu0 0.0
    %912 = vmatpush1.xpose.msra.mxu0 0.0
    %913 = vmatprep.subr.mxu0 0.0
    %914 = vmatpush1.xpose.msra.mxu0 0.0
    %915 = vmatprep.subr.mxu0 0.0
    %916 = vmatpush1.xpose.msra.mxu0 0.0
    %917 = vmatprep.subr.mxu0 0.0
    %918 = vmatpush1.xpose.msra.mxu0 0.0
    %919 = vmatprep.subr.mxu0 0.0
    %920 = vmatpush1.xpose.msra.mxu0 0.0
    %921 = vmatprep.subr.mxu0 0.0
    %922 = vmatpush1.xpose.msra.mxu0 0.0
    %923 = vmatprep.subr.mxu0 0.0
    %924 = vmatpush1.xpose.msra.mxu0 0.0
    %925 = vmatprep.subr.mxu0 0.0
    %926 = vmatpush1.xpose.msra.mxu0 0.0
    %927 = vmatprep.subr.mxu0 0.0
    %928 = vmatpush1.xpose.msra.mxu0 0.0
    %929 = vmatprep.subr.mxu0 0.0
    %930 = vmatpush1.xpose.msra.mxu0 0.0
    %931 = vmatprep.subr.mxu0 0.0
    %932 = vmatpush1.xpose.msra.mxu0 0.0
    %933 = vmatprep.subr.mxu0 0.0
    %934 = vmatpush1.xpose.msra.mxu0 0.0
    %935 = vmatprep.subr.mxu0 0.0
    %936 = vmatpush1.xpose.msra.mxu0 0.0
    %937 = vmatprep.subr.mxu0 0.0
    %938 = vmatpush1.xpose.msra.mxu0 0.0
    %939 = vmatprep.subr.mxu0 0.0
    %940 = vmatpush1.xpose.msra.mxu0 %v909
    %941 = vmatprep.subr.mxu0 0.0
    %942 = vmatpush1.xpose.msra.mxu0 %v906
    %943 = vmatprep.subr.mxu0 0.0
    %944 = vmatpush2.xpose.msra.mxu0 0.0
    %945 = vmatprep.subr.mxu0 0.0
    %946 = vmatpush2.xpose.msra.mxu0 0.0
    %947 = vmatprep.subr.mxu0 0.0
    %948 = vmatpush2.xpose.msra.mxu0 0.0
    %949 = vmatprep.subr.mxu0 0.0
    %950 = vmatpush2.xpose.msra.mxu0 0.0
    %951 = vmatprep.subr.mxu0 0.0
    %952 = vmatpush2.xpose.msra.mxu0 0.0
    %953 = vmatprep.subr.mxu0 0.0
    %954 = vmatpush2.xpose.msra.mxu0 0.0
    %955 = vmatprep.subr.mxu0 0.0
    %956 = vmatpush2.xpose.msra.mxu0 0.0
    %957 = vmatprep.subr.mxu0 0.0
    %958 = vmatpush2.xpose.msra.mxu0 0.0
    %959 = vmatprep.subr.mxu0 0.0
    %960 = vmatpush2.xpose.msra.mxu0 0.0
    %961 = vmatprep.subr.mxu0 0.0
    %962 = vmatpush2.xpose.msra.mxu0 0.0
    %963 = vmatprep.subr.mxu0 0.0
    %964 = vmatpush2.xpose.msra.mxu0 0.0
    %965 = vmatprep.subr.mxu0 0.0
    %966 = vmatpush2.xpose.msra.mxu0 0.0
    %967 = vmatprep.subr.mxu0 0.0
    %968 = vmatpush2.xpose.msra.mxu0 0.0
    %969 = vmatprep.subr.mxu0 0.0
    %970 = vmatpush2.xpose.msra.mxu0 0.0
    %971 = vmatprep.subr.mxu0 0.0
    %972 = vmatpush2.xpose.msra.mxu0 0.0
    %973 = vmatprep.subr.mxu0 0.0
    %974 = vmatpush2.xpose.msra.mxu0 0.0
    %975 = vmatprep.mubr.f32.mxu0 0.0
    %976 = vmatmul.mubr.f32.gmra.mxu0 %v900
    %v977 = vpop.f32.mrf.mxu0
    %v978 = vadd.f32 0.0, %v977
    %v979 = vpop.f32.mrf.mxu0
    %980 = vmatprep.mubr.f32.mxu0 0.0
    %981 = vmatmul.mubr.f32.gmra.mxu0 %v903
    %v982 = vpop.f32.mrf.mxu0
    %v983 = vadd.f32 0.0, %v982
    %v984 = vpop.f32.mrf.mxu0
    %985 = vdwg.mxu0
    %v987 = vsel %vm898, %v652, 0
    %v990 = vsel %vm898, %v655, 0
    %v993 = vsel %vm898, %v772, 0
    %v996 = vsel %vm898, %v775, 0
    %998 = vmatprep.subr.mxu0 0.0
    %999 = vmatpush1.xpose.msra.mxu0 0.0
    %1000 = vmatprep.subr.mxu0 0.0
    %1001 = vmatpush1.xpose.msra.mxu0 0.0
    %1002 = vmatprep.subr.mxu0 0.0
    %1003 = vmatpush1.xpose.msra.mxu0 0.0
    %1004 = vmatprep.subr.mxu0 0.0
    %1005 = vmatpush1.xpose.msra.mxu0 0.0
    %1006 = vmatprep.subr.mxu0 0.0
    %1007 = vmatpush1.xpose.msra.mxu0 0.0
    %1008 = vmatprep.subr.mxu0 0.0
    %1009 = vmatpush1.xpose.msra.mxu0 0.0
    %1010 = vmatprep.subr.mxu0 0.0
    %1011 = vmatpush1.xpose.msra.mxu0 0.0
    %1012 = vmatprep.subr.mxu0 0.0
    %1013 = vmatpush1.xpose.msra.mxu0 0.0
    %1014 = vmatprep.subr.mxu0 0.0
    %1015 = vmatpush1.xpose.msra.mxu0 0.0
    %1016 = vmatprep.subr.mxu0 0.0
    %1017 = vmatpush1.xpose.msra.mxu0 0.0
    %1018 = vmatprep.subr.mxu0 0.0
    %1019 = vmatpush1.xpose.msra.mxu0 0.0
    %1020 = vmatprep.subr.mxu0 0.0
    %1021 = vmatpush1.xpose.msra.mxu0 0.0
    %1022 = vmatprep.subr.mxu0 0.0
    %1023 = vmatpush1.xpose.msra.mxu0 0.0
    %1024 = vmatprep.subr.mxu0 0.0
    %1025 = vmatpush1.xpose.msra.mxu0 0.0
    %1026 = vmatprep.subr.mxu0 0.0
    %1027 = vmatpush1.xpose.msra.mxu0 %v996
    %1028 = vmatprep.subr.mxu0 0.0
    %1029 = vmatpush1.xpose.msra.mxu0 %v993
    %1030 = vmatprep.subr.mxu0 0.0
    %1031 = vmatpush2.xpose.msra.mxu0 0.0
    %1032 = vmatprep.subr.mxu0 0.0
    %1033 = vmatpush2.xpose.msra.mxu0 0.0
    %1034 = vmatprep.subr.mxu0 0.0
    %1035 = vmatpush2.xpose.msra.mxu0 0.0
    %1036 = vmatprep.subr.mxu0 0.0
    %1037 = vmatpush2.xpose.msra.mxu0 0.0
    %1038 = vmatprep.subr.mxu0 0.0
    %1039 = vmatpush2.xpose.msra.mxu0 0.0
    %1040 = vmatprep.subr.mxu0 0.0
    %1041 = vmatpush2.xpose.msra.mxu0 0.0
    %1042 = vmatprep.subr.mxu0 0.0
    %1043 = vmatpush2.xpose.msra.mxu0 0.0
    %1044 = vmatprep.subr.mxu0 0.0
    %1045 = vmatpush2.xpose.msra.mxu0 0.0
    %1046 = vmatprep.subr.mxu0 0.0
    %1047 = vmatpush2.xpose.msra.mxu0 0.0
    %1048 = vmatprep.subr.mxu0 0.0
    %1049 = vmatpush2.xpose.msra.mxu0 0.0
    %1050 = vmatprep.subr.mxu0 0.0
    %1051 = vmatpush2.xpose.msra.mxu0 0.0
    %1052 = vmatprep.subr.mxu0 0.0
    %1053 = vmatpush2.xpose.msra.mxu0 0.0
    %1054 = vmatprep.subr.mxu0 0.0
    %1055 = vmatpush2.xpose.msra.mxu0 0.0
    %1056 = vmatprep.subr.mxu0 0.0
    %1057 = vmatpush2.xpose.msra.mxu0 0.0
    %1058 = vmatprep.subr.mxu0 0.0
    %1059 = vmatpush2.xpose.msra.mxu0 0.0
    %1060 = vmatprep.subr.mxu0 0.0
    %1061 = vmatpush2.xpose.msra.mxu0 0.0
    %1062 = vmatprep.mubr.f32.mxu0 0.0
    %1063 = vmatmul.mubr.f32.gmra.mxu0 %v987
    %v1064 = vpop.f32.mrf.mxu0
    %v1065 = vadd.f32 0.0, %v1064
    %v1066 = vpop.f32.mrf.mxu0
    %1067 = vmatprep.mubr.f32.mxu0 0.0
    %1068 = vmatmul.mubr.f32.gmra.mxu0 %v990
    %v1069 = vpop.f32.mrf.mxu0
    %v1070 = vadd.f32 0.0, %v1069
    %v1071 = vpop.f32.mrf.mxu0
    %1072 = vdwg.mxu0
    %v1073 = vmul.f32 %v978, 0.17677669
    %v1074 = vmul.f32 %v983, 0.17677669
    %v1075 = vmul.f32 %v1065, 0.17677669
    %v1076 = vmul.f32 %v1070, 0.17677669
    %v1077 = vlaneseq
    %v1078 = vshrl.u32 %v1077, 7
    %v1079 = vsub.s32 0, %v1078
    %v1080 = vrot.slane %v528, %v1079
    %v1081 = vlaneseq
    %v1082 = vshrl.u32 %v1081, 7
    %v1083 = vsub.s32 0, %v1082
    %v1084 = vrot.slane %v535, %v1083
    %v1087 = vadd.f32 %v1073, %v1080
    %v1088 = vadd.f32 %v1074, %v1080
    %v1089 = vadd.f32 %v1075, %v1084
    %v1090 = vadd.f32 %v1076, %v1084
    %vm1091 = vcmask 130048
    %v1092 = vsel %vm1091, %v1087, -inf
    %1093 = vmax.xlane.f32.xlu0 %v1092
    %v1094 = vpop.xlane.xlu0 %1093
    %v1095 = vsel %vm1091, %v1088, -inf
    %1096 = vmax.xlane.f32.xlu0 %v1095
    %v1097 = vpop.xlane.xlu0 %1096
    %v1098 = vsel %vm1091, %v1089, -inf
    %1099 = vmax.xlane.f32.xlu0 %v1098
    %v1100 = vpop.xlane.xlu0 %1099
    %v1101 = vsel %vm1091, %v1090, -inf
    %1102 = vmax.xlane.f32.xlu0 %v1101
    %v1103 = vpop.xlane.xlu0 %1102
    %v1104 = vsub.f32 %v1087, %v1094
    %v1105 = vsub.f32 %v1088, %v1097
    %v1106 = vsub.f32 %v1089, %v1100
    %v1107 = vsub.f32 %v1090, %v1103
    %v1108 = vmul.f32 %v1104, 1.442695
    %v1109 = vpow.pop %v1108
    %v1110 = vmul.f32 %v1105, 1.442695
    %v1111 = vpow.pop %v1110
    %v1112 = vmul.f32 %v1106, 1.442695
    %v1113 = vpow.pop %v1112
    %v1114 = vmul.f32 %v1107, 1.442695
    %v1115 = vpow.pop %v1114
    %v1116 = vsel %vm1091, %v1109, 0.0
    %1117 = vadd.xlane.f32.xlu0 %v1116
    %v1118 = vpop.xlane.xlu0 %1117
    %v1119 = vsel %vm1091, %v1111, 0.0
    %1120 = vadd.xlane.f32.xlu0 %v1119
    %v1121 = vpop.xlane.xlu0 %1120
    %v1122 = vsel %vm1091, %v1113, 0.0
    %1123 = vadd.xlane.f32.xlu0 %v1122
    %v1124 = vpop.xlane.xlu0 %1123
    %v1125 = vsel %vm1091, %v1115, 0.0
    %1126 = vadd.xlane.f32.xlu0 %v1125
    %v1127 = vpop.xlane.xlu0 %1126
    %v1128 = vrcp.pop %v1118
    %v1129 = vmul.f32 %v1109, %v1128
    %v1130 = vrcp.pop %v1121
    %v1131 = vmul.f32 %v1111, %v1130
    %v1132 = vrcp.pop %v1124
    %v1133 = vmul.f32 %v1113, %v1132
    %v1134 = vrcp.pop %v1127
    %v1135 = vmul.f32 %v1115, %v1134
    %v1137 = vsel %vm1091, %v1129, 0
    %v1140 = vsel %vm1091, %v1131, 0
    %1142 = vmatprep.subr.mxu0 0.0
    %1143 = vmatpush1.msra.mxu0 0.0
    %1144 = vmatprep.subr.mxu0 0.0
    %1145 = vmatpush1.msra.mxu0 0.0
    %1146 = vmatprep.subr.mxu0 0.0
    %1147 = vmatpush1.msra.mxu0 0.0
    %1148 = vmatprep.subr.mxu0 0.0
    %1149 = vmatpush1.msra.mxu0 0.0
    %1150 = vmatprep.subr.mxu0 0.0
    %1151 = vmatpush1.msra.mxu0 0.0
    %1152 = vmatprep.subr.mxu0 0.0
    %1153 = vmatpush1.msra.mxu0 0.0
    %1154 = vmatprep.subr.mxu0 0.0
    %1155 = vmatpush1.msra.mxu0 0.0
    %1156 = vmatprep.subr.mxu0 0.0
    %1157 = vmatpush1.msra.mxu0 0.0
    %1158 = vmatprep.subr.mxu0 0.0
    %1159 = vmatpush1.msra.mxu0 0.0
    %1160 = vmatprep.subr.mxu0 0.0
    %1161 = vmatpush1.msra.mxu0 0.0
    %1162 = vmatprep.subr.mxu0 0.0
    %1163 = vmatpush1.msra.mxu0 0.0
    %1164 = vmatprep.subr.mxu0 0.0
    %1165 = vmatpush1.msra.mxu0 0.0
    %1166 = vmatprep.subr.mxu0 0.0
    %1167 = vmatpush1.msra.mxu0 0.0
    %1168 = vmatprep.subr.mxu0 0.0
    %1169 = vmatpush1.msra.mxu0 0.0
    %1170 = vmatprep.subr.mxu0 0.0
    %1171 = vmatpush1.msra.mxu0 %v887
    %1172 = vmatprep.subr.mxu0 0.0
    %1173 = vmatpush1.msra.mxu0 %v884
    %1174 = vmatprep.subr.mxu0 0.0
    %1175 = vmatpush2.msra.mxu0 0.0
    %1176 = vmatprep.subr.mxu0 0.0
    %1177 = vmatpush2.msra.mxu0 0.0
    %1178 = vmatprep.subr.mxu0 0.0
    %1179 = vmatpush2.msra.mxu0 0.0
    %1180 = vmatprep.subr.mxu0 0.0
    %1181 = vmatpush2.msra.mxu0 0.0
    %1182 = vmatprep.subr.mxu0 0.0
    %1183 = vmatpush2.msra.mxu0 0.0
    %1184 = vmatprep.subr.mxu0 0.0
    %1185 = vmatpush2.msra.mxu0 0.0
    %1186 = vmatprep.subr.mxu0 0.0
    %1187 = vmatpush2.msra.mxu0 0.0
    %1188 = vmatprep.subr.mxu0 0.0
    %1189 = vmatpush2.msra.mxu0 0.0
    %1190 = vmatprep.subr.mxu0 0.0
    %1191 = vmatpush2.msra.mxu0 0.0
    %1192 = vmatprep.subr.mxu0 0.0
    %1193 = vmatpush2.msra.mxu0 0.0
    %1194 = vmatprep.subr.mxu0 0.0
    %1195 = vmatpush2.msra.mxu0 0.0
    %1196 = vmatprep.subr.mxu0 0.0
    %1197 = vmatpush2.msra.mxu0 0.0
    %1198 = vmatprep.subr.mxu0 0.0
    %1199 = vmatpush2.msra.mxu0 0.0
    %1200 = vmatprep.subr.mxu0 0.0
    %1201 = vmatpush2.msra.mxu0 0.0
    %1202 = vmatprep.subr.mxu0 0.0
    %1203 = vmatpush2.msra.mxu0 0.0
    %1204 = vmatprep.subr.mxu0 0.0
    %1205 = vmatpush2.msra.mxu0 0.0
    %1206 = vmatprep.mubr.f32.mxu0 0.0
    %1207 = vmatmul.mubr.f32.gmra.mxu0 %v1137
    %v1208 = vpop.f32.mrf.mxu0
    %v1209 = vadd.f32 0.0, %v1208
    %v1210 = vpop.f32.mrf.mxu0
    %1211 = vmatprep.mubr.f32.mxu0 0.0
    %1212 = vmatmul.mubr.f32.gmra.mxu0 %v1140
    %v1213 = vpop.f32.mrf.mxu0
    %v1214 = vadd.f32 0.0, %v1213
    %v1215 = vpop.f32.mrf.mxu0
    %1216 = vdwg.mxu0
    %v1218 = vsel %vm1091, %v1133, 0
    %v1221 = vsel %vm1091, %v1135, 0
    %1223 = vmatprep.subr.mxu0 0.0
    %1224 = vmatpush1.msra.mxu0 0.0
    %1225 = vmatprep.subr.mxu0 0.0
    %1226 = vmatpush1.msra.mxu0 0.0
    %1227 = vmatprep.subr.mxu0 0.0
    %1228 = vmatpush1.msra.mxu0 0.0
    %1229 = vmatprep.subr.mxu0 0.0
    %1230 = vmatpush1.msra.mxu0 0.0
    %1231 = vmatprep.subr.mxu0 0.0
    %1232 = vmatpush1.msra.mxu0 0.0
    %1233 = vmatprep.subr.mxu0 0.0
    %1234 = vmatpush1.msra.mxu0 0.0
    %1235 = vmatprep.subr.mxu0 0.0
    %1236 = vmatpush1.msra.mxu0 0.0
    %1237 = vmatprep.subr.mxu0 0.0
    %1238 = vmatpush1.msra.mxu0 0.0
    %1239 = vmatprep.subr.mxu0 0.0
    %1240 = vmatpush1.msra.mxu0 0.0
    %1241 = vmatprep.subr.mxu0 0.0
    %1242 = vmatpush1.msra.mxu0 0.0
    %1243 = vmatprep.subr.mxu0 0.0
    %1244 = vmatpush1.msra.mxu0 0.0
    %1245 = vmatprep.subr.mxu0 0.0
    %1246 = vmatpush1.msra.mxu0 0.0
    %1247 = vmatprep.subr.mxu0 0.0
    %1248 = vmatpush1.msra.mxu0 0.0
    %1249 = vmatprep.subr.mxu0 0.0
    %1250 = vmatpush1.msra.mxu0 0.0
    %1251 = vmatprep.subr.mxu0 0.0
    %1252 = vmatpush1.msra.mxu0 %v895
    %1253 = vmatprep.subr.mxu0 0.0
    %1254 = vmatpush1.msra.mxu0 %v892
    %1255 = vmatprep.subr.mxu0 0.0
    %1256 = vmatpush2.msra.mxu0 0.0
    %1257 = vmatprep.subr.mxu0 0.0
    %1258 = vmatpush2.msra.mxu0 0.0
    %1259 = vmatprep.subr.mxu0 0.0
    %1260 = vmatpush2.msra.mxu0 0.0
    %1261 = vmatprep.subr.mxu0 0.0
    %1262 = vmatpush2.msra.mxu0 0.0
    %1263 = vmatprep.subr.mxu0 0.0
    %1264 = vmatpush2.msra.mxu0 0.0
    %1265 = vmatprep.subr.mxu0 0.0
    %1266 = vmatpush2.msra.mxu0 0.0
    %1267 = vmatprep.subr.mxu0 0.0
    %1268 = vmatpush2.msra.mxu0 0.0
    %1269 = vmatprep.subr.mxu0 0.0
    %1270 = vmatpush2.msra.mxu0 0.0
    %1271 = vmatprep.subr.mxu0 0.0
    %1272 = vmatpush2.msra.mxu0 0.0
    %1273 = vmatprep.subr.mxu0 0.0
    %1274 = vmatpush2.msra.mxu0 0.0
    %1275 = vmatprep.subr.mxu0 0.0
    %1276 = vmatpush2.msra.mxu0 0.0
    %1277 = vmatprep.subr.mxu0 0.0
    %1278 = vmatpush2.msra.mxu0 0.0
    %1279 = vmatprep.subr.mxu0 0.0
    %1280 = vmatpush2.msra.mxu0 0.0
    %1281 = vmatprep.subr.mxu0 0.0
    %1282 = vmatpush2.msra.mxu0 0.0
    %1283 = vmatprep.subr.mxu0 0.0
    %1284 = vmatpush2.msra.mxu0 0.0
    %1285 = vmatprep.subr.mxu0 0.0
    %1286 = vmatpush2.msra.mxu0 0.0
    %1287 = vmatprep.mubr.f32.mxu0 0.0
    %1288 = vmatmul.mubr.f32.gmra.mxu0 %v1218
    %v1289 = vpop.f32.mrf.mxu0
    %v1290 = vadd.f32 0.0, %v1289
    %v1291 = vpop.f32.mrf.mxu0
    %1292 = vmatprep.mubr.f32.mxu0 0.0
    %1293 = vmatmul.mubr.f32.gmra.mxu0 %v1221
    %v1294 = vpop.f32.mrf.mxu0
    %v1295 = vadd.f32 0.0, %v1294
    %v1296 = vpop.f32.mrf.mxu0
    %1297 = vdwg.mxu0
    %v1298 = vpack.c.bf16 %v1214, %v1209
    %v1299 = vpack.c.bf16 %v1295, %v1290
    %v1300 = vld [vmem:[%s13] sm:$0xf]
    %v1301 = vld [vmem:[%s13 + $0x4] sm:$0xf]
    %v1302 = vld [vmem:[%s13 + $0x8] sm:$0xf]
    %v1303 = vld [vmem:[%s13 + $0xc] sm:$0xf]
    %s1304 = scalar_lea.vmem %s7, 64
    %v1305 = vld [vmem:[%s1304] sm:$0xf]
    %v1306 = vld [vmem:[%s1304 + $0x4] sm:$0xf]
    %v1307 = vld [vmem:[%s1304 + $0x8] sm:$0xf]
    %v1308 = vld [vmem:[%s1304 + $0xc] sm:$0xf]
    %v1309 = vld [vmem:[%s1304 + $0x10] sm:$0xf]
    %v1310 = vld [vmem:[%s1304 + $0x14] sm:$0xf]
    %v1311 = vld [vmem:[%s1304 + $0x18] sm:$0xf]
    %v1312 = vld [vmem:[%s1304 + $0x1c] sm:$0xf]
    %v1313 = vld [vmem:[%s1304 + $0x20] sm:$0xf]
    %v1314 = vld [vmem:[%s1304 + $0x24] sm:$0xf]
    %v1315 = vld [vmem:[%s1304 + $0x28] sm:$0xf]
    %v1316 = vld [vmem:[%s1304 + $0x2c] sm:$0xf]
    %v1317 = vld [vmem:[%s1304 + $0x30] sm:$0xf]
    %v1318 = vld [vmem:[%s1304 + $0x34] sm:$0xf]
    %v1319 = vld [vmem:[%s1304 + $0x38] sm:$0xf]
    %v1320 = vld [vmem:[%s1304 + $0x3c] sm:$0xf]
    %s1321 = scalar_lea.vmem %s8, 1
    %v1322 = vld [vmem:[%s1321] sm:$0x1]
    %v1324 = vlaneseq
    %v1325 = vshrl.u32 %v1324, 7
    %v1326 = vsub.s32 0, %v1325
    %v1327 = vrot.slane %v1322, %v1326
    %v1345 = vunpack.c.l.b16 %v1305
    %v1346 = vunpack.c.l.b16 %v1306
    %v1347 = vunpack.c.l.b16 %v1307
    %v1348 = vunpack.c.l.b16 %v1308
    %v1349 = vunpack.c.l.b16 %v1309
    %v1350 = vunpack.c.l.b16 %v1310
    %v1351 = vunpack.c.l.b16 %v1311
    %v1352 = vunpack.c.l.b16 %v1312
    %v1353 = vunpack.c.l.b16 %v1313
    %v1354 = vunpack.c.l.b16 %v1314
    %v1355 = vunpack.c.l.b16 %v1315
    %v1356 = vunpack.c.l.b16 %v1316
    %v1357 = vunpack.c.l.b16 %v1317
    %v1358 = vunpack.c.l.b16 %v1318
    %v1359 = vunpack.c.l.b16 %v1319
    %v1360 = vunpack.c.l.b16 %v1320
    %v1361 = vpack.c.b16 %v1346, %v1345
    %v1362 = vpack.c.b16 %v1348, %v1347
    %v1363 = vpack.c.b16 %v1350, %v1349
    %v1364 = vpack.c.b16 %v1352, %v1351
    %v1365 = vpack.c.b16 %v1354, %v1353
    %v1366 = vpack.c.b16 %v1356, %v1355
    %v1367 = vpack.c.b16 %v1358, %v1357
    %v1368 = vpack.c.b16 %v1360, %v1359
    %1377 = vmatprep.subr.bf16.mxu0 0
    %1378 = vmatpush1.bf16.msra.mxu0 %v1368
    %1379 = vmatprep.subr.bf16.mxu0 0
    %1380 = vmatpush1.bf16.msra.mxu0 %v1367
    %1381 = vmatprep.subr.bf16.mxu0 0
    %1382 = vmatpush1.bf16.msra.mxu0 %v1366
    %1383 = vmatprep.subr.bf16.mxu0 0
    %1384 = vmatpush1.bf16.msra.mxu0 %v1365
    %1385 = vmatprep.subr.bf16.mxu0 0
    %1386 = vmatpush1.bf16.msra.mxu0 %v1364
    %1387 = vmatprep.subr.bf16.mxu0 0
    %1388 = vmatpush1.bf16.msra.mxu0 %v1363
    %1389 = vmatprep.subr.bf16.mxu0 0
    %1390 = vmatpush1.bf16.msra.mxu0 %v1362
    %1391 = vmatprep.subr.bf16.mxu0 0
    %1392 = vmatpush1.bf16.msra.mxu0 %v1361
    %1393 = vmatprep.subr.bf16.mxu0 0
    %1394 = vmatpush2.bf16.msra.mxu0 0
    %1395 = vmatprep.subr.bf16.mxu0 0
    %1396 = vmatpush2.bf16.msra.mxu0 0
    %1397 = vmatprep.subr.bf16.mxu0 0
    %1398 = vmatpush2.bf16.msra.mxu0 0
    %1399 = vmatprep.subr.bf16.mxu0 0
    %1400 = vmatpush2.bf16.msra.mxu0 0
    %1401 = vmatprep.subr.bf16.mxu0 0
    %1402 = vmatpush2.bf16.msra.mxu0 0
    %1403 = vmatprep.subr.bf16.mxu0 0
    %1404 = vmatpush2.bf16.msra.mxu0 0
    %1405 = vmatprep.subr.bf16.mxu0 0
    %1406 = vmatpush2.bf16.msra.mxu0 0
    %1407 = vmatprep.subr.bf16.mxu0 0
    %1408 = vmatpush2.bf16.msra.mxu0 0
    %1409 = vmatprep.mubr.bf16.mxu0 0
    %1410 = vmatmul.mubr.bf16.gmra.mxu0 %v536
    %v1411 = vpop.f32.mrf.mxu0
    %v1412 = vadd.f32 %v1327, %v1411
    %v1413 = vpop.f32.mrf.mxu0
    %v1414 = vpop.f32.mrf.mxu0
    %v1415 = vadd.f32 %v1327, %v1414
    %v1416 = vpop.f32.mrf.mxu0
    %1417 = vmatprep.mubr.bf16.mxu0 0
    %1418 = vmatmul.mubr.bf16.gmra.mxu0 %v537
    %v1419 = vpop.f32.mrf.mxu0
    %v1420 = vadd.f32 %v1327, %v1419
    %v1421 = vpop.f32.mrf.mxu0
    %v1422 = vpop.f32.mrf.mxu0
    %v1423 = vadd.f32 %v1327, %v1422
    %v1424 = vpop.f32.mrf.mxu0
    %1425 = vdwg.mxu0
    %s1426 = scalar_lea.vmem %s9, 64
    %v1427 = vld [vmem:[%s1426] sm:$0xf]
    %v1428 = vld [vmem:[%s1426 + $0x4] sm:$0xf]
    %v1429 = vld [vmem:[%s1426 + $0x8] sm:$0xf]
    %v1430 = vld [vmem:[%s1426 + $0xc] sm:$0xf]
    %v1431 = vld [vmem:[%s1426 + $0x10] sm:$0xf]
    %v1432 = vld [vmem:[%s1426 + $0x14] sm:$0xf]
    %v1433 = vld [vmem:[%s1426 + $0x18] sm:$0xf]
    %v1434 = vld [vmem:[%s1426 + $0x1c] sm:$0xf]
    %v1435 = vld [vmem:[%s1426 + $0x20] sm:$0xf]
    %v1436 = vld [vmem:[%s1426 + $0x24] sm:$0xf]
    %v1437 = vld [vmem:[%s1426 + $0x28] sm:$0xf]
    %v1438 = vld [vmem:[%s1426 + $0x2c] sm:$0xf]
    %v1439 = vld [vmem:[%s1426 + $0x30] sm:$0xf]
    %v1440 = vld [vmem:[%s1426 + $0x34] sm:$0xf]
    %v1441 = vld [vmem:[%s1426 + $0x38] sm:$0xf]
    %v1442 = vld [vmem:[%s1426 + $0x3c] sm:$0xf]
    %s1443 = scalar_lea.vmem %s10, 1
    %v1444 = vld [vmem:[%s1443] sm:$0x1]
    %v1446 = vlaneseq
    %v1447 = vshrl.u32 %v1446, 7
    %v1448 = vsub.s32 0, %v1447
    %v1449 = vrot.slane %v1444, %v1448
    %v1467 = vunpack.c.l.b16 %v1427
    %v1468 = vunpack.c.l.b16 %v1428
    %v1469 = vunpack.c.l.b16 %v1429
    %v1470 = vunpack.c.l.b16 %v1430
    %v1471 = vunpack.c.l.b16 %v1431
    %v1472 = vunpack.c.l.b16 %v1432
    %v1473 = vunpack.c.l.b16 %v1433
    %v1474 = vunpack.c.l.b16 %v1434
    %v1475 = vunpack.c.l.b16 %v1435
    %v1476 = vunpack.c.l.b16 %v1436
    %v1477 = vunpack.c.l.b16 %v1437
    %v1478 = vunpack.c.l.b16 %v1438
    %v1479 = vunpack.c.l.b16 %v1439
    %v1480 = vunpack.c.l.b16 %v1440
    %v1481 = vunpack.c.l.b16 %v1441
    %v1482 = vunpack.c.l.b16 %v1442
    %v1483 = vpack.c.b16 %v1468, %v1467
    %v1484 = vpack.c.b16 %v1470, %v1469
    %v1485 = vpack.c.b16 %v1472, %v1471
    %v1486 = vpack.c.b16 %v1474, %v1473
    %v1487 = vpack.c.b16 %v1476, %v1475
    %v1488 = vpack.c.b16 %v1478, %v1477
    %v1489 = vpack.c.b16 %v1480, %v1479
    %v1490 = vpack.c.b16 %v1482, %v1481
    %1499 = vmatprep.subr.bf16.mxu0 0
    %1500 = vmatpush1.bf16.msra.mxu0 %v1490
    %1501 = vmatprep.subr.bf16.mxu0 0
    %1502 = vmatpush1.bf16.msra.mxu0 %v1489
    %1503 = vmatprep.subr.bf16.mxu0 0
    %1504 = vmatpush1.bf16.msra.mxu0 %v1488
    %1505 = vmatprep.subr.bf16.mxu0 0
    %1506 = vmatpush1.bf16.msra.mxu0 %v1487
    %1507 = vmatprep.subr.bf16.mxu0 0
    %1508 = vmatpush1.bf16.msra.mxu0 %v1486
    %1509 = vmatprep.subr.bf16.mxu0 0
    %1510 = vmatpush1.bf16.msra.mxu0 %v1485
    %1511 = vmatprep.subr.bf16.mxu0 0
    %1512 = vmatpush1.bf16.msra.mxu0 %v1484
    %1513 = vmatprep.subr.bf16.mxu0 0
    %1514 = vmatpush1.bf16.msra.mxu0 %v1483
    %1515 = vmatprep.subr.bf16.mxu0 0
    %1516 = vmatpush2.bf16.msra.mxu0 0
    %1517 = vmatprep.subr.bf16.mxu0 0
    %1518 = vmatpush2.bf16.msra.mxu0 0
    %1519 = vmatprep.subr.bf16.mxu0 0
    %1520 = vmatpush2.bf16.msra.mxu0 0
    %1521 = vmatprep.subr.bf16.mxu0 0
    %1522 = vmatpush2.bf16.msra.mxu0 0
    %1523 = vmatprep.subr.bf16.mxu0 0
    %1524 = vmatpush2.bf16.msra.mxu0 0
    %1525 = vmatprep.subr.bf16.mxu0 0
    %1526 = vmatpush2.bf16.msra.mxu0 0
    %1527 = vmatprep.subr.bf16.mxu0 0
    %1528 = vmatpush2.bf16.msra.mxu0 0
    %1529 = vmatprep.subr.bf16.mxu0 0
    %1530 = vmatpush2.bf16.msra.mxu0 0
    %1531 = vmatprep.mubr.bf16.mxu0 0
    %1532 = vmatmul.mubr.bf16.gmra.mxu0 %v536
    %v1533 = vpop.f32.mrf.mxu0
    %v1534 = vadd.f32 %v1449, %v1533
    %v1535 = vpop.f32.mrf.mxu0
    %v1536 = vpop.f32.mrf.mxu0
    %v1537 = vadd.f32 %v1449, %v1536
    %v1538 = vpop.f32.mrf.mxu0
    %1539 = vmatprep.mubr.bf16.mxu0 0
    %1540 = vmatmul.mubr.bf16.gmra.mxu0 %v537
    %v1541 = vpop.f32.mrf.mxu0
    %v1542 = vadd.f32 %v1449, %v1541
    %v1543 = vpop.f32.mrf.mxu0
    %v1544 = vpop.f32.mrf.mxu0
    %v1545 = vadd.f32 %v1449, %v1544
    %v1546 = vpop.f32.mrf.mxu0
    %1547 = vdwg.mxu0
    %s1548 = scalar_lea.vmem %s11, 64
    %v1549 = vld [vmem:[%s1548] sm:$0xf]
    %v1550 = vld [vmem:[%s1548 + $0x4] sm:$0xf]
    %v1551 = vld [vmem:[%s1548 + $0x8] sm:$0xf]
    %v1552 = vld [vmem:[%s1548 + $0xc] sm:$0xf]
    %v1553 = vld [vmem:[%s1548 + $0x10] sm:$0xf]
    %v1554 = vld [vmem:[%s1548 + $0x14] sm:$0xf]
    %v1555 = vld [vmem:[%s1548 + $0x18] sm:$0xf]
    %v1556 = vld [vmem:[%s1548 + $0x1c] sm:$0xf]
    %v1557 = vld [vmem:[%s1548 + $0x20] sm:$0xf]
    %v1558 = vld [vmem:[%s1548 + $0x24] sm:$0xf]
    %v1559 = vld [vmem:[%s1548 + $0x28] sm:$0xf]
    %v1560 = vld [vmem:[%s1548 + $0x2c] sm:$0xf]
    %v1561 = vld [vmem:[%s1548 + $0x30] sm:$0xf]
    %v1562 = vld [vmem:[%s1548 + $0x34] sm:$0xf]
    %v1563 = vld [vmem:[%s1548 + $0x38] sm:$0xf]
    %v1564 = vld [vmem:[%s1548 + $0x3c] sm:$0xf]
    %s1565 = scalar_lea.vmem %s12, 1
    %v1566 = vld [vmem:[%s1565] sm:$0x1]
    %v1568 = vlaneseq
    %v1569 = vshrl.u32 %v1568, 7
    %v1570 = vsub.s32 0, %v1569
    %v1571 = vrot.slane %v1566, %v1570
    %v1589 = vunpack.c.l.b16 %v1549
    %v1590 = vunpack.c.l.b16 %v1550
    %v1591 = vunpack.c.l.b16 %v1551
    %v1592 = vunpack.c.l.b16 %v1552
    %v1593 = vunpack.c.l.b16 %v1553
    %v1594 = vunpack.c.l.b16 %v1554
    %v1595 = vunpack.c.l.b16 %v1555
    %v1596 = vunpack.c.l.b16 %v1556
    %v1597 = vunpack.c.l.b16 %v1557
    %v1598 = vunpack.c.l.b16 %v1558
    %v1599 = vunpack.c.l.b16 %v1559
    %v1600 = vunpack.c.l.b16 %v1560
    %v1601 = vunpack.c.l.b16 %v1561
    %v1602 = vunpack.c.l.b16 %v1562
    %v1603 = vunpack.c.l.b16 %v1563
    %v1604 = vunpack.c.l.b16 %v1564
    %v1605 = vpack.c.b16 %v1590, %v1589
    %v1606 = vpack.c.b16 %v1592, %v1591
    %v1607 = vpack.c.b16 %v1594, %v1593
    %v1608 = vpack.c.b16 %v1596, %v1595
    %v1609 = vpack.c.b16 %v1598, %v1597
    %v1610 = vpack.c.b16 %v1600, %v1599
    %v1611 = vpack.c.b16 %v1602, %v1601
    %v1612 = vpack.c.b16 %v1604, %v1603
    %1621 = vmatprep.subr.bf16.mxu0 0
    %1622 = vmatpush1.bf16.msra.mxu0 %v1612
    %1623 = vmatprep.subr.bf16.mxu0 0
    %1624 = vmatpush1.bf16.msra.mxu0 %v1611
    %1625 = vmatprep.subr.bf16.mxu0 0
    %1626 = vmatpush1.bf16.msra.mxu0 %v1610
    %1627 = vmatprep.subr.bf16.mxu0 0
    %1628 = vmatpush1.bf16.msra.mxu0 %v1609
    %1629 = vmatprep.subr.bf16.mxu0 0
    %1630 = vmatpush1.bf16.msra.mxu0 %v1608
    %1631 = vmatprep.subr.bf16.mxu0 0
    %1632 = vmatpush1.bf16.msra.mxu0 %v1607
    %1633 = vmatprep.subr.bf16.mxu0 0
    %1634 = vmatpush1.bf16.msra.mxu0 %v1606
    %1635 = vmatprep.subr.bf16.mxu0 0
    %1636 = vmatpush1.bf16.msra.mxu0 %v1605
    %1637 = vmatprep.subr.bf16.mxu0 0
    %1638 = vmatpush2.bf16.msra.mxu0 0
    %1639 = vmatprep.subr.bf16.mxu0 0
    %1640 = vmatpush2.bf16.msra.mxu0 0
    %1641 = vmatprep.subr.bf16.mxu0 0
    %1642 = vmatpush2.bf16.msra.mxu0 0
    %1643 = vmatprep.subr.bf16.mxu0 0
    %1644 = vmatpush2.bf16.msra.mxu0 0
    %1645 = vmatprep.subr.bf16.mxu0 0
    %1646 = vmatpush2.bf16.msra.mxu0 0
    %1647 = vmatprep.subr.bf16.mxu0 0
    %1648 = vmatpush2.bf16.msra.mxu0 0
    %1649 = vmatprep.subr.bf16.mxu0 0
    %1650 = vmatpush2.bf16.msra.mxu0 0
    %1651 = vmatprep.subr.bf16.mxu0 0
    %1652 = vmatpush2.bf16.msra.mxu0 0
    %1653 = vmatprep.mubr.bf16.mxu0 0
    %1654 = vmatmul.mubr.bf16.gmra.mxu0 %v536
    %v1655 = vpop.f32.mrf.mxu0
    %v1656 = vadd.f32 %v1571, %v1655
    %v1657 = vpop.f32.mrf.mxu0
    %v1658 = vpop.f32.mrf.mxu0
    %v1659 = vadd.f32 %v1571, %v1658
    %v1660 = vpop.f32.mrf.mxu0
    %1661 = vmatprep.mubr.bf16.mxu0 0
    %1662 = vmatmul.mubr.bf16.gmra.mxu0 %v537
    %v1663 = vpop.f32.mrf.mxu0
    %v1664 = vadd.f32 %v1571, %v1663
    %v1665 = vpop.f32.mrf.mxu0
    %v1666 = vpop.f32.mrf.mxu0
    %v1667 = vadd.f32 %v1571, %v1666
    %v1668 = vpop.f32.mrf.mxu0
    %1669 = vdwg.mxu0
    %v1671 = vsel %vm898, %v1412, 0
    %v1674 = vsel %vm898, %v1415, 0
    %v1677 = vsel %vm898, %v1534, 0
    %v1680 = vsel %vm898, %v1537, 0
    %1682 = vmatprep.subr.mxu0 0.0
    %1683 = vmatpush1.xpose.msra.mxu0 0.0
    %1684 = vmatprep.subr.mxu0 0.0
    %1685 = vmatpush1.xpose.msra.mxu0 0.0
    %1686 = vmatprep.subr.mxu0 0.0
    %1687 = vmatpush1.xpose.msra.mxu0 0.0
    %1688 = vmatprep.subr.mxu0 0.0
    %1689 = vmatpush1.xpose.msra.mxu0 0.0
    %1690 = vmatprep.subr.mxu0 0.0
    %1691 = vmatpush1.xpose.msra.mxu0 0.0
    %1692 = vmatprep.subr.mxu0 0.0
    %1693 = vmatpush1.xpose.msra.mxu0 0.0
    %1694 = vmatprep.subr.mxu0 0.0
    %1695 = vmatpush1.xpose.msra.mxu0 0.0
    %1696 = vmatprep.subr.mxu0 0.0
    %1697 = vmatpush1.xpose.msra.mxu0 0.0
    %1698 = vmatprep.subr.mxu0 0.0
    %1699 = vmatpush1.xpose.msra.mxu0 0.0
    %1700 = vmatprep.subr.mxu0 0.0
    %1701 = vmatpush1.xpose.msra.mxu0 0.0
    %1702 = vmatprep.subr.mxu0 0.0
    %1703 = vmatpush1.xpose.msra.mxu0 0.0
    %1704 = vmatprep.subr.mxu0 0.0
    %1705 = vmatpush1.xpose.msra.mxu0 0.0
    %1706 = vmatprep.subr.mxu0 0.0
    %1707 = vmatpush1.xpose.msra.mxu0 0.0
    %1708 = vmatprep.subr.mxu0 0.0
    %1709 = vmatpush1.xpose.msra.mxu0 0.0
    %1710 = vmatprep.subr.mxu0 0.0
    %1711 = vmatpush1.xpose.msra.mxu0 %v1680
    %1712 = vmatprep.subr.mxu0 0.0
    %1713 = vmatpush1.xpose.msra.mxu0 %v1677
    %1714 = vmatprep.subr.mxu0 0.0
    %1715 = vmatpush2.xpose.msra.mxu0 0.0
    %1716 = vmatprep.subr.mxu0 0.0
    %1717 = vmatpush2.xpose.msra.mxu0 0.0
    %1718 = vmatprep.subr.mxu0 0.0
    %1719 = vmatpush2.xpose.msra.mxu0 0.0
    %1720 = vmatprep.subr.mxu0 0.0
    %1721 = vmatpush2.xpose.msra.mxu0 0.0
    %1722 = vmatprep.subr.mxu0 0.0
    %1723 = vmatpush2.xpose.msra.mxu0 0.0
    %1724 = vmatprep.subr.mxu0 0.0
    %1725 = vmatpush2.xpose.msra.mxu0 0.0
    %1726 = vmatprep.subr.mxu0 0.0
    %1727 = vmatpush2.xpose.msra.mxu0 0.0
    %1728 = vmatprep.subr.mxu0 0.0
    %1729 = vmatpush2.xpose.msra.mxu0 0.0
    %1730 = vmatprep.subr.mxu0 0.0
    %1731 = vmatpush2.xpose.msra.mxu0 0.0
    %1732 = vmatprep.subr.mxu0 0.0
    %1733 = vmatpush2.xpose.msra.mxu0 0.0
    %1734 = vmatprep.subr.mxu0 0.0
    %1735 = vmatpush2.xpose.msra.mxu0 0.0
    %1736 = vmatprep.subr.mxu0 0.0
    %1737 = vmatpush2.xpose.msra.mxu0 0.0
    %1738 = vmatprep.subr.mxu0 0.0
    %1739 = vmatpush2.xpose.msra.mxu0 0.0
    %1740 = vmatprep.subr.mxu0 0.0
    %1741 = vmatpush2.xpose.msra.mxu0 0.0
    %1742 = vmatprep.subr.mxu0 0.0
    %1743 = vmatpush2.xpose.msra.mxu0 0.0
    %1744 = vmatprep.subr.mxu0 0.0
    %1745 = vmatpush2.xpose.msra.mxu0 0.0
    %1746 = vmatprep.mubr.f32.mxu0 0.0
    %1747 = vmatmul.mubr.f32.gmra.mxu0 %v1671
    %v1748 = vpop.f32.mrf.mxu0
    %v1749 = vadd.f32 0.0, %v1748
    %v1750 = vpop.f32.mrf.mxu0
    %1751 = vmatprep.mubr.f32.mxu0 0.0
    %1752 = vmatmul.mubr.f32.gmra.mxu0 %v1674
    %v1753 = vpop.f32.mrf.mxu0
    %v1754 = vadd.f32 0.0, %v1753
    %v1755 = vpop.f32.mrf.mxu0
    %1756 = vdwg.mxu0
    %v1758 = vsel %vm898, %v1420, 0
    %v1761 = vsel %vm898, %v1423, 0
    %v1764 = vsel %vm898, %v1542, 0
    %v1767 = vsel %vm898, %v1545, 0
    %1769 = vmatprep.subr.mxu0 0.0
    %1770 = vmatpush1.xpose.msra.mxu0 0.0
    %1771 = vmatprep.subr.mxu0 0.0
    %1772 = vmatpush1.xpose.msra.mxu0 0.0
    %1773 = vmatprep.subr.mxu0 0.0
    %1774 = vmatpush1.xpose.msra.mxu0 0.0
    %1775 = vmatprep.subr.mxu0 0.0
    %1776 = vmatpush1.xpose.msra.mxu0 0.0
    %1777 = vmatprep.subr.mxu0 0.0
    %1778 = vmatpush1.xpose.msra.mxu0 0.0
    %1779 = vmatprep.subr.mxu0 0.0
    %1780 = vmatpush1.xpose.msra.mxu0 0.0
    %1781 = vmatprep.subr.mxu0 0.0
    %1782 = vmatpush1.xpose.msra.mxu0 0.0
    %1783 = vmatprep.subr.mxu0 0.0
    %1784 = vmatpush1.xpose.msra.mxu0 0.0
    %1785 = vmatprep.subr.mxu0 0.0
    %1786 = vmatpush1.xpose.msra.mxu0 0.0
    %1787 = vmatprep.subr.mxu0 0.0
    %1788 = vmatpush1.xpose.msra.mxu0 0.0
    %1789 = vmatprep.subr.mxu0 0.0
    %1790 = vmatpush1.xpose.msra.mxu0 0.0
    %1791 = vmatprep.subr.mxu0 0.0
    %1792 = vmatpush1.xpose.msra.mxu0 0.0
    %1793 = vmatprep.subr.mxu0 0.0
    %1794 = vmatpush1.xpose.msra.mxu0 0.0
    %1795 = vmatprep.subr.mxu0 0.0
    %1796 = vmatpush1.xpose.msra.mxu0 0.0
    %1797 = vmatprep.subr.mxu0 0.0
    %1798 = vmatpush1.xpose.msra.mxu0 %v1767
    %1799 = vmatprep.subr.mxu0 0.0
    %1800 = vmatpush1.xpose.msra.mxu0 %v1764
    %1801 = vmatprep.subr.mxu0 0.0
    %1802 = vmatpush2.xpose.msra.mxu0 0.0
    %1803 = vmatprep.subr.mxu0 0.0
    %1804 = vmatpush2.xpose.msra.mxu0 0.0
    %1805 = vmatprep.subr.mxu0 0.0
    %1806 = vmatpush2.xpose.msra.mxu0 0.0
    %1807 = vmatprep.subr.mxu0 0.0
    %1808 = vmatpush2.xpose.msra.mxu0 0.0
    %1809 = vmatprep.subr.mxu0 0.0
    %1810 = vmatpush2.xpose.msra.mxu0 0.0
    %1811 = vmatprep.subr.mxu0 0.0
    %1812 = vmatpush2.xpose.msra.mxu0 0.0
    %1813 = vmatprep.subr.mxu0 0.0
    %1814 = vmatpush2.xpose.msra.mxu0 0.0
    %1815 = vmatprep.subr.mxu0 0.0
    %1816 = vmatpush2.xpose.msra.mxu0 0.0
    %1817 = vmatprep.subr.mxu0 0.0
    %1818 = vmatpush2.xpose.msra.mxu0 0.0
    %1819 = vmatprep.subr.mxu0 0.0
    %1820 = vmatpush2.xpose.msra.mxu0 0.0
    %1821 = vmatprep.subr.mxu0 0.0
    %1822 = vmatpush2.xpose.msra.mxu0 0.0
    %1823 = vmatprep.subr.mxu0 0.0
    %1824 = vmatpush2.xpose.msra.mxu0 0.0
    %1825 = vmatprep.subr.mxu0 0.0
    %1826 = vmatpush2.xpose.msra.mxu0 0.0
    %1827 = vmatprep.subr.mxu0 0.0
    %1828 = vmatpush2.xpose.msra.mxu0 0.0
    %1829 = vmatprep.subr.mxu0 0.0
    %1830 = vmatpush2.xpose.msra.mxu0 0.0
    %1831 = vmatprep.subr.mxu0 0.0
    %1832 = vmatpush2.xpose.msra.mxu0 0.0
    %1833 = vmatprep.mubr.f32.mxu0 0.0
    %1834 = vmatmul.mubr.f32.gmra.mxu0 %v1758
    %v1835 = vpop.f32.mrf.mxu0
    %v1836 = vadd.f32 0.0, %v1835
    %v1837 = vpop.f32.mrf.mxu0
    %1838 = vmatprep.mubr.f32.mxu0 0.0
    %1839 = vmatmul.mubr.f32.gmra.mxu0 %v1761
    %v1840 = vpop.f32.mrf.mxu0
    %v1841 = vadd.f32 0.0, %v1840
    %v1842 = vpop.f32.mrf.mxu0
    %1843 = vdwg.mxu0
    %v1844 = vmul.f32 %v1749, 0.17677669
    %v1845 = vmul.f32 %v1754, 0.17677669
    %v1846 = vmul.f32 %v1836, 0.17677669
    %v1847 = vmul.f32 %v1841, 0.17677669
    %v1848 = vadd.f32 %v1844, %v1080
    %v1849 = vadd.f32 %v1845, %v1080
    %v1850 = vadd.f32 %v1846, %v1084
    %v1851 = vadd.f32 %v1847, %v1084
    %v1852 = vsel %vm1091, %v1848, -inf
    %1853 = vmax.xlane.f32.xlu0 %v1852
    %v1854 = vpop.xlane.xlu0 %1853
    %v1855 = vsel %vm1091, %v1849, -inf
    %1856 = vmax.xlane.f32.xlu0 %v1855
    %v1857 = vpop.xlane.xlu0 %1856
    %v1858 = vsel %vm1091, %v1850, -inf
    %1859 = vmax.xlane.f32.xlu0 %v1858
    %v1860 = vpop.xlane.xlu0 %1859
    %v1861 = vsel %vm1091, %v1851, -inf
    %1862 = vmax.xlane.f32.xlu0 %v1861
    %v1863 = vpop.xlane.xlu0 %1862
    %v1864 = vsub.f32 %v1848, %v1854
    %v1865 = vsub.f32 %v1849, %v1857
    %v1866 = vsub.f32 %v1850, %v1860
    %v1867 = vsub.f32 %v1851, %v1863
    %v1868 = vmul.f32 %v1864, 1.442695
    %v1869 = vpow.pop %v1868
    %v1870 = vmul.f32 %v1865, 1.442695
    %v1871 = vpow.pop %v1870
    %v1872 = vmul.f32 %v1866, 1.442695
    %v1873 = vpow.pop %v1872
    %v1874 = vmul.f32 %v1867, 1.442695
    %v1875 = vpow.pop %v1874
    %v1876 = vsel %vm1091, %v1869, 0.0
    %1877 = vadd.xlane.f32.xlu0 %v1876
    %v1878 = vpop.xlane.xlu0 %1877
    %v1879 = vsel %vm1091, %v1871, 0.0
    %1880 = vadd.xlane.f32.xlu0 %v1879
    %v1881 = vpop.xlane.xlu0 %1880
    %v1882 = vsel %vm1091, %v1873, 0.0
    %1883 = vadd.xlane.f32.xlu0 %v1882
    %v1884 = vpop.xlane.xlu0 %1883
    %v1885 = vsel %vm1091, %v1875, 0.0
    %1886 = vadd.xlane.f32.xlu0 %v1885
    %v1887 = vpop.xlane.xlu0 %1886
    %v1888 = vrcp.pop %v1878
    %v1889 = vmul.f32 %v1869, %v1888
    %v1890 = vrcp.pop %v1881
    %v1891 = vmul.f32 %v1871, %v1890
    %v1892 = vrcp.pop %v1884
    %v1893 = vmul.f32 %v1873, %v1892
    %v1894 = vrcp.pop %v1887
    %v1895 = vmul.f32 %v1875, %v1894
    %v1897 = vsel %vm1091, %v1889, 0
    %v1900 = vsel %vm1091, %v1891, 0
    %1902 = vmatprep.subr.mxu0 0.0
    %1903 = vmatpush1.msra.mxu0 0.0
    %1904 = vmatprep.subr.mxu0 0.0
    %1905 = vmatpush1.msra.mxu0 0.0
    %1906 = vmatprep.subr.mxu0 0.0
    %1907 = vmatpush1.msra.mxu0 0.0
    %1908 = vmatprep.subr.mxu0 0.0
    %1909 = vmatpush1.msra.mxu0 0.0
    %1910 = vmatprep.subr.mxu0 0.0
    %1911 = vmatpush1.msra.mxu0 0.0
    %1912 = vmatprep.subr.mxu0 0.0
    %1913 = vmatpush1.msra.mxu0 0.0
    %1914 = vmatprep.subr.mxu0 0.0
    %1915 = vmatpush1.msra.mxu0 0.0
    %1916 = vmatprep.subr.mxu0 0.0
    %1917 = vmatpush1.msra.mxu0 0.0
    %1918 = vmatprep.subr.mxu0 0.0
    %1919 = vmatpush1.msra.mxu0 0.0
    %1920 = vmatprep.subr.mxu0 0.0
    %1921 = vmatpush1.msra.mxu0 0.0
    %1922 = vmatprep.subr.mxu0 0.0
    %1923 = vmatpush1.msra.mxu0 0.0
    %1924 = vmatprep.subr.mxu0 0.0
    %1925 = vmatpush1.msra.mxu0 0.0
    %1926 = vmatprep.subr.mxu0 0.0
    %1927 = vmatpush1.msra.mxu0 0.0
    %1928 = vmatprep.subr.mxu0 0.0
    %1929 = vmatpush1.msra.mxu0 0.0
    %1930 = vmatprep.subr.mxu0 0.0
    %1931 = vmatpush1.msra.mxu0 %v1659
    %1932 = vmatprep.subr.mxu0 0.0
    %1933 = vmatpush1.msra.mxu0 %v1656
    %1934 = vmatprep.subr.mxu0 0.0
    %1935 = vmatpush2.msra.mxu0 0.0
    %1936 = vmatprep.subr.mxu0 0.0
    %1937 = vmatpush2.msra.mxu0 0.0
    %1938 = vmatprep.subr.mxu0 0.0
    %1939 = vmatpush2.msra.mxu0 0.0
    %1940 = vmatprep.subr.mxu0 0.0
    %1941 = vmatpush2.msra.mxu0 0.0
    %1942 = vmatprep.subr.mxu0 0.0
    %1943 = vmatpush2.msra.mxu0 0.0
    %1944 = vmatprep.subr.mxu0 0.0
    %1945 = vmatpush2.msra.mxu0 0.0
    %1946 = vmatprep.subr.mxu0 0.0
    %1947 = vmatpush2.msra.mxu0 0.0
    %1948 = vmatprep.subr.mxu0 0.0
    %1949 = vmatpush2.msra.mxu0 0.0
    %1950 = vmatprep.subr.mxu0 0.0
    %1951 = vmatpush2.msra.mxu0 0.0
    %1952 = vmatprep.subr.mxu0 0.0
    %1953 = vmatpush2.msra.mxu0 0.0
    %1954 = vmatprep.subr.mxu0 0.0
    %1955 = vmatpush2.msra.mxu0 0.0
    %1956 = vmatprep.subr.mxu0 0.0
    %1957 = vmatpush2.msra.mxu0 0.0
    %1958 = vmatprep.subr.mxu0 0.0
    %1959 = vmatpush2.msra.mxu0 0.0
    %1960 = vmatprep.subr.mxu0 0.0
    %1961 = vmatpush2.msra.mxu0 0.0
    %1962 = vmatprep.subr.mxu0 0.0
    %1963 = vmatpush2.msra.mxu0 0.0
    %1964 = vmatprep.subr.mxu0 0.0
    %1965 = vmatpush2.msra.mxu0 0.0
    %1966 = vmatprep.mubr.f32.mxu0 0.0
    %1967 = vmatmul.mubr.f32.gmra.mxu0 %v1897
    %v1968 = vpop.f32.mrf.mxu0
    %v1969 = vadd.f32 0.0, %v1968
    %v1970 = vpop.f32.mrf.mxu0
    %1971 = vmatprep.mubr.f32.mxu0 0.0
    %1972 = vmatmul.mubr.f32.gmra.mxu0 %v1900
    %v1973 = vpop.f32.mrf.mxu0
    %v1974 = vadd.f32 0.0, %v1973
    %v1975 = vpop.f32.mrf.mxu0
    %1976 = vdwg.mxu0
    %v1978 = vsel %vm1091, %v1893, 0
    %v1981 = vsel %vm1091, %v1895, 0
    %1983 = vmatprep.subr.mxu0 0.0
    %1984 = vmatpush1.msra.mxu0 0.0
    %1985 = vmatprep.subr.mxu0 0.0
    %1986 = vmatpush1.msra.mxu0 0.0
    %1987 = vmatprep.subr.mxu0 0.0
    %1988 = vmatpush1.msra.mxu0 0.0
    %1989 = vmatprep.subr.mxu0 0.0
    %1990 = vmatpush1.msra.mxu0 0.0
    %1991 = vmatprep.subr.mxu0 0.0
    %1992 = vmatpush1.msra.mxu0 0.0
    %1993 = vmatprep.subr.mxu0 0.0
    %1994 = vmatpush1.msra.mxu0 0.0
    %1995 = vmatprep.subr.mxu0 0.0
    %1996 = vmatpush1.msra.mxu0 0.0
    %1997 = vmatprep.subr.mxu0 0.0
    %1998 = vmatpush1.msra.mxu0 0.0
    %1999 = vmatprep.subr.mxu0 0.0
    %2000 = vmatpush1.msra.mxu0 0.0
    %2001 = vmatprep.subr.mxu0 0.0
    %2002 = vmatpush1.msra.mxu0 0.0
    %2003 = vmatprep.subr.mxu0 0.0
    %2004 = vmatpush1.msra.mxu0 0.0
    %2005 = vmatprep.subr.mxu0 0.0
    %2006 = vmatpush1.msra.mxu0 0.0
    %2007 = vmatprep.subr.mxu0 0.0
    %2008 = vmatpush1.msra.mxu0 0.0
    %2009 = vmatprep.subr.mxu0 0.0
    %2010 = vmatpush1.msra.mxu0 0.0
    %2011 = vmatprep.subr.mxu0 0.0
    %2012 = vmatpush1.msra.mxu0 %v1667
    %2013 = vmatprep.subr.mxu0 0.0
    %2014 = vmatpush1.msra.mxu0 %v1664
    %2015 = vmatprep.subr.mxu0 0.0
    %2016 = vmatpush2.msra.mxu0 0.0
    %2017 = vmatprep.subr.mxu0 0.0
    %2018 = vmatpush2.msra.mxu0 0.0
    %2019 = vmatprep.subr.mxu0 0.0
    %2020 = vmatpush2.msra.mxu0 0.0
    %2021 = vmatprep.subr.mxu0 0.0
    %2022 = vmatpush2.msra.mxu0 0.0
    %2023 = vmatprep.subr.mxu0 0.0
    %2024 = vmatpush2.msra.mxu0 0.0
    %2025 = vmatprep.subr.mxu0 0.0
    %2026 = vmatpush2.msra.mxu0 0.0
    %2027 = vmatprep.subr.mxu0 0.0
    %2028 = vmatpush2.msra.mxu0 0.0
    %2029 = vmatprep.subr.mxu0 0.0
    %2030 = vmatpush2.msra.mxu0 0.0
    %2031 = vmatprep.subr.mxu0 0.0
    %2032 = vmatpush2.msra.mxu0 0.0
    %2033 = vmatprep.subr.mxu0 0.0
    %2034 = vmatpush2.msra.mxu0 0.0
    %2035 = vmatprep.subr.mxu0 0.0
    %2036 = vmatpush2.msra.mxu0 0.0
    %2037 = vmatprep.subr.mxu0 0.0
    %2038 = vmatpush2.msra.mxu0 0.0
    %2039 = vmatprep.subr.mxu0 0.0
    %2040 = vmatpush2.msra.mxu0 0.0
    %2041 = vmatprep.subr.mxu0 0.0
    %2042 = vmatpush2.msra.mxu0 0.0
    %2043 = vmatprep.subr.mxu0 0.0
    %2044 = vmatpush2.msra.mxu0 0.0
    %2045 = vmatprep.subr.mxu0 0.0
    %2046 = vmatpush2.msra.mxu0 0.0
    %2047 = vmatprep.mubr.f32.mxu0 0.0
    %2048 = vmatmul.mubr.f32.gmra.mxu0 %v1978
    %v2049 = vpop.f32.mrf.mxu0
    %v2050 = vadd.f32 0.0, %v2049
    %v2051 = vpop.f32.mrf.mxu0
    %2052 = vmatprep.mubr.f32.mxu0 0.0
    %2053 = vmatmul.mubr.f32.gmra.mxu0 %v1981
    %v2054 = vpop.f32.mrf.mxu0
    %v2055 = vadd.f32 0.0, %v2054
    %v2056 = vpop.f32.mrf.mxu0
    %2057 = vdwg.mxu0
    %v2058 = vpack.c.bf16 %v1974, %v1969
    %v2059 = vpack.c.bf16 %v2055, %v2050
    %s2060 = scalar_lea.vmem %s13, 16
    %v2061 = vld [vmem:[%s2060] sm:$0xf]
    %v2062 = vld [vmem:[%s2060 + $0x4] sm:$0xf]
    %v2063 = vld [vmem:[%s2060 + $0x8] sm:$0xf]
    %v2064 = vld [vmem:[%s2060 + $0xc] sm:$0xf]
    %v2069 = vunpack.c.l.b16 %v2061
    %v2070 = vunpack.c.l.b16 %v2062
    %v2071 = vunpack.c.l.b16 %v2063
    %v2072 = vunpack.c.l.b16 %v2064
    %v2073 = vpack.c.b16 %v2070, %v2069
    %v2074 = vpack.c.b16 %v2072, %v2071
    %v2078 = vsel %vm898, %v2058, 0
    %v2081 = vsel %vm898, %v2059, 0
    %2083 = vmatprep.subr.bf16.mxu0 0
    %2084 = vmatpush1.bf16.msra.mxu0 0
    %2085 = vmatprep.subr.bf16.mxu0 0
    %2086 = vmatpush1.bf16.msra.mxu0 0
    %2087 = vmatprep.subr.bf16.mxu0 0
    %2088 = vmatpush1.bf16.msra.mxu0 0
    %2089 = vmatprep.subr.bf16.mxu0 0
    %2090 = vmatpush1.bf16.msra.mxu0 0
    %2091 = vmatprep.subr.bf16.mxu0 0
    %2092 = vmatpush1.bf16.msra.mxu0 0
    %2093 = vmatprep.subr.bf16.mxu0 0
    %2094 = vmatpush1.bf16.msra.mxu0 0
    %2095 = vmatprep.subr.bf16.mxu0 0
    %2096 = vmatpush1.bf16.msra.mxu0 %v2074
    %2097 = vmatprep.subr.bf16.mxu0 0
    %2098 = vmatpush1.bf16.msra.mxu0 %v2073
    %2099 = vmatprep.subr.bf16.mxu0 0
    %2100 = vmatpush2.bf16.msra.mxu0 0
    %2101 = vmatprep.subr.bf16.mxu0 0
    %2102 = vmatpush2.bf16.msra.mxu0 0
    %2103 = vmatprep.subr.bf16.mxu0 0
    %2104 = vmatpush2.bf16.msra.mxu0 0
    %2105 = vmatprep.subr.bf16.mxu0 0
    %2106 = vmatpush2.bf16.msra.mxu0 0
    %2107 = vmatprep.subr.bf16.mxu0 0
    %2108 = vmatpush2.bf16.msra.mxu0 0
    %2109 = vmatprep.subr.bf16.mxu0 0
    %2110 = vmatpush2.bf16.msra.mxu0 0
    %2111 = vmatprep.subr.bf16.mxu0 0
    %2112 = vmatpush2.bf16.msra.mxu0 0
    %2113 = vmatprep.subr.bf16.mxu0 0
    %2114 = vmatpush2.bf16.msra.mxu0 0
    %2115 = vmatprep.mubr.bf16.mxu0 0
    %2116 = vmatmul.mubr.bf16.gmra.mxu0 %v2078
    %v2117 = vpop.f32.mrf.mxu0
    %v2118 = vadd.f32 0.0, %v2117
    %v2119 = vpop.f32.mrf.mxu0
    %v2120 = vpop.f32.mrf.mxu0
    %v2121 = vadd.f32 0.0, %v2120
    %v2122 = vpop.f32.mrf.mxu0
    %2123 = vmatprep.mubr.bf16.mxu0 0
    %2124 = vmatmul.mubr.bf16.gmra.mxu0 %v2081
    %v2125 = vpop.f32.mrf.mxu0
    %v2126 = vadd.f32 0.0, %v2125
    %v2127 = vpop.f32.mrf.mxu0
    %v2128 = vpop.f32.mrf.mxu0
    %v2129 = vadd.f32 0.0, %v2128
    %v2130 = vpop.f32.mrf.mxu0
    %2131 = vdwg.mxu0
    %v2136 = vunpack.c.l.b16 %v1300
    %v2137 = vunpack.c.l.b16 %v1301
    %v2138 = vunpack.c.l.b16 %v1302
    %v2139 = vunpack.c.l.b16 %v1303
    %v2140 = vpack.c.b16 %v2137, %v2136
    %v2141 = vpack.c.b16 %v2139, %v2138
    %v2145 = vsel %vm898, %v1298, 0
    %v2148 = vsel %vm898, %v1299, 0
    %2150 = vmatprep.subr.bf16.mxu0 0
    %2151 = vmatpush1.bf16.msra.mxu0 0
    %2152 = vmatprep.subr.bf16.mxu0 0
    %2153 = vmatpush1.bf16.msra.mxu0 0
    %2154 = vmatprep.subr.bf16.mxu0 0
    %2155 = vmatpush1.bf16.msra.mxu0 0
    %2156 = vmatprep.subr.bf16.mxu0 0
    %2157 = vmatpush1.bf16.msra.mxu0 0
    %2158 = vmatprep.subr.bf16.mxu0 0
    %2159 = vmatpush1.bf16.msra.mxu0 0
    %2160 = vmatprep.subr.bf16.mxu0 0
    %2161 = vmatpush1.bf16.msra.mxu0 0
    %2162 = vmatprep.subr.bf16.mxu0 0
    %2163 = vmatpush1.bf16.msra.mxu0 %v2141
    %2164 = vmatprep.subr.bf16.mxu0 0
    %2165 = vmatpush1.bf16.msra.mxu0 %v2140
    %2166 = vmatprep.subr.bf16.mxu0 0
    %2167 = vmatpush2.bf16.msra.mxu0 0
    %2168 = vmatprep.subr.bf16.mxu0 0
    %2169 = vmatpush2.bf16.msra.mxu0 0
    %2170 = vmatprep.subr.bf16.mxu0 0
    %2171 = vmatpush2.bf16.msra.mxu0 0
    %2172 = vmatprep.subr.bf16.mxu0 0
    %2173 = vmatpush2.bf16.msra.mxu0 0
    %2174 = vmatprep.subr.bf16.mxu0 0
    %2175 = vmatpush2.bf16.msra.mxu0 0
    %2176 = vmatprep.subr.bf16.mxu0 0
    %2177 = vmatpush2.bf16.msra.mxu0 0
    %2178 = vmatprep.subr.bf16.mxu0 0
    %2179 = vmatpush2.bf16.msra.mxu0 0
    %2180 = vmatprep.subr.bf16.mxu0 0
    %2181 = vmatpush2.bf16.msra.mxu0 0
    %2182 = vmatprep.mubr.bf16.mxu0 0
    %2183 = vmatmul.mubr.bf16.gmra.mxu0 %v2145
    %v2184 = vpop.f32.mrf.mxu0
    %v2185 = vadd.f32 %v2118, %v2184
    %v2186 = vpop.f32.mrf.mxu0
    %v2187 = vpop.f32.mrf.mxu0
    %v2188 = vadd.f32 %v2121, %v2187
    %v2189 = vpop.f32.mrf.mxu0
    %2190 = vmatprep.mubr.bf16.mxu0 0
    %2191 = vmatmul.mubr.bf16.gmra.mxu0 %v2148
    %v2192 = vpop.f32.mrf.mxu0
    %v2193 = vadd.f32 %v2126, %v2192
    %v2194 = vpop.f32.mrf.mxu0
    %v2195 = vpop.f32.mrf.mxu0
    %v2196 = vadd.f32 %v2129, %v2195
    %v2197 = vpop.f32.mrf.mxu0
    %2198 = vdwg.mxu0
    %s2199 = scalar_lea.vmem %s7, 128
    %v2200 = vld [vmem:[%s2199] sm:$0xf]
    %v2201 = vld [vmem:[%s2199 + $0x4] sm:$0xf]
    %v2202 = vld [vmem:[%s2199 + $0x8] sm:$0xf]
    %v2203 = vld [vmem:[%s2199 + $0xc] sm:$0xf]
    %v2204 = vld [vmem:[%s2199 + $0x10] sm:$0xf]
    %v2205 = vld [vmem:[%s2199 + $0x14] sm:$0xf]
    %v2206 = vld [vmem:[%s2199 + $0x18] sm:$0xf]
    %v2207 = vld [vmem:[%s2199 + $0x1c] sm:$0xf]
    %v2208 = vld [vmem:[%s2199 + $0x20] sm:$0xf]
    %v2209 = vld [vmem:[%s2199 + $0x24] sm:$0xf]
    %v2210 = vld [vmem:[%s2199 + $0x28] sm:$0xf]
    %v2211 = vld [vmem:[%s2199 + $0x2c] sm:$0xf]
    %v2212 = vld [vmem:[%s2199 + $0x30] sm:$0xf]
    %v2213 = vld [vmem:[%s2199 + $0x34] sm:$0xf]
    %v2214 = vld [vmem:[%s2199 + $0x38] sm:$0xf]
    %v2215 = vld [vmem:[%s2199 + $0x3c] sm:$0xf]
    %s2216 = scalar_lea.vmem %s8, 2
    %v2217 = vld [vmem:[%s2216] sm:$0x1]
    %v2219 = vlaneseq
    %v2220 = vshrl.u32 %v2219, 7
    %v2221 = vsub.s32 0, %v2220
    %v2222 = vrot.slane %v2217, %v2221
    %v2240 = vunpack.c.l.b16 %v2200
    %v2241 = vunpack.c.l.b16 %v2201
    %v2242 = vunpack.c.l.b16 %v2202
    %v2243 = vunpack.c.l.b16 %v2203
    %v2244 = vunpack.c.l.b16 %v2204
    %v2245 = vunpack.c.l.b16 %v2205
    %v2246 = vunpack.c.l.b16 %v2206
    %v2247 = vunpack.c.l.b16 %v2207
    %v2248 = vunpack.c.l.b16 %v2208
    %v2249 = vunpack.c.l.b16 %v2209
    %v2250 = vunpack.c.l.b16 %v2210
    %v2251 = vunpack.c.l.b16 %v2211
    %v2252 = vunpack.c.l.b16 %v2212
    %v2253 = vunpack.c.l.b16 %v2213
    %v2254 = vunpack.c.l.b16 %v2214
    %v2255 = vunpack.c.l.b16 %v2215
    %v2256 = vpack.c.b16 %v2241, %v2240
    %v2257 = vpack.c.b16 %v2243, %v2242
    %v2258 = vpack.c.b16 %v2245, %v2244
    %v2259 = vpack.c.b16 %v2247, %v2246
    %v2260 = vpack.c.b16 %v2249, %v2248
    %v2261 = vpack.c.b16 %v2251, %v2250
    %v2262 = vpack.c.b16 %v2253, %v2252
    %v2263 = vpack.c.b16 %v2255, %v2254
    %2272 = vmatprep.subr.bf16.mxu0 0
    %2273 = vmatpush1.bf16.msra.mxu0 %v2263
    %2274 = vmatprep.subr.bf16.mxu0 0
    %2275 = vmatpush1.bf16.msra.mxu0 %v2262
    %2276 = vmatprep.subr.bf16.mxu0 0
    %2277 = vmatpush1.bf16.msra.mxu0 %v2261
    %2278 = vmatprep.subr.bf16.mxu0 0
    %2279 = vmatpush1.bf16.msra.mxu0 %v2260
    %2280 = vmatprep.subr.bf16.mxu0 0
    %2281 = vmatpush1.bf16.msra.mxu0 %v2259
    %2282 = vmatprep.subr.bf16.mxu0 0
    %2283 = vmatpush1.bf16.msra.mxu0 %v2258
    %2284 = vmatprep.subr.bf16.mxu0 0
    %2285 = vmatpush1.bf16.msra.mxu0 %v2257
    %2286 = vmatprep.subr.bf16.mxu0 0
    %2287 = vmatpush1.bf16.msra.mxu0 %v2256
    %2288 = vmatprep.subr.bf16.mxu0 0
    %2289 = vmatpush2.bf16.msra.mxu0 0
    %2290 = vmatprep.subr.bf16.mxu0 0
    %2291 = vmatpush2.bf16.msra.mxu0 0
    %2292 = vmatprep.subr.bf16.mxu0 0
    %2293 = vmatpush2.bf16.msra.mxu0 0
    %2294 = vmatprep.subr.bf16.mxu0 0
    %2295 = vmatpush2.bf16.msra.mxu0 0
    %2296 = vmatprep.subr.bf16.mxu0 0
    %2297 = vmatpush2.bf16.msra.mxu0 0
    %2298 = vmatprep.subr.bf16.mxu0 0
    %2299 = vmatpush2.bf16.msra.mxu0 0
    %2300 = vmatprep.subr.bf16.mxu0 0
    %2301 = vmatpush2.bf16.msra.mxu0 0
    %2302 = vmatprep.subr.bf16.mxu0 0
    %2303 = vmatpush2.bf16.msra.mxu0 0
    %2304 = vmatprep.mubr.bf16.mxu0 0
    %2305 = vmatmul.mubr.bf16.gmra.mxu0 %v536
    %v2306 = vpop.f32.mrf.mxu0
    %v2307 = vadd.f32 %v2222, %v2306
    %v2308 = vpop.f32.mrf.mxu0
    %v2309 = vpop.f32.mrf.mxu0
    %v2310 = vadd.f32 %v2222, %v2309
    %v2311 = vpop.f32.mrf.mxu0
    %2312 = vmatprep.mubr.bf16.mxu0 0
    %2313 = vmatmul.mubr.bf16.gmra.mxu0 %v537
    %v2314 = vpop.f32.mrf.mxu0
    %v2315 = vadd.f32 %v2222, %v2314
    %v2316 = vpop.f32.mrf.mxu0
    %v2317 = vpop.f32.mrf.mxu0
    %v2318 = vadd.f32 %v2222, %v2317
    %v2319 = vpop.f32.mrf.mxu0
    %2320 = vdwg.mxu0
    %s2321 = scalar_lea.vmem %s9, 128
    %v2322 = vld [vmem:[%s2321] sm:$0xf]
    %v2323 = vld [vmem:[%s2321 + $0x4] sm:$0xf]
    %v2324 = vld [vmem:[%s2321 + $0x8] sm:$0xf]
    %v2325 = vld [vmem:[%s2321 + $0xc] sm:$0xf]
    %v2326 = vld [vmem:[%s2321 + $0x10] sm:$0xf]
    %v2327 = vld [vmem:[%s2321 + $0x14] sm:$0xf]
    %v2328 = vld [vmem:[%s2321 + $0x18] sm:$0xf]
    %v2329 = vld [vmem:[%s2321 + $0x1c] sm:$0xf]
    %v2330 = vld [vmem:[%s2321 + $0x20] sm:$0xf]
    %v2331 = vld [vmem:[%s2321 + $0x24] sm:$0xf]
    %v2332 = vld [vmem:[%s2321 + $0x28] sm:$0xf]
    %v2333 = vld [vmem:[%s2321 + $0x2c] sm:$0xf]
    %v2334 = vld [vmem:[%s2321 + $0x30] sm:$0xf]
    %v2335 = vld [vmem:[%s2321 + $0x34] sm:$0xf]
    %v2336 = vld [vmem:[%s2321 + $0x38] sm:$0xf]
    %v2337 = vld [vmem:[%s2321 + $0x3c] sm:$0xf]
    %s2338 = scalar_lea.vmem %s10, 2
    %v2339 = vld [vmem:[%s2338] sm:$0x1]
    %v2341 = vlaneseq
    %v2342 = vshrl.u32 %v2341, 7
    %v2343 = vsub.s32 0, %v2342
    %v2344 = vrot.slane %v2339, %v2343
    %v2362 = vunpack.c.l.b16 %v2322
    %v2363 = vunpack.c.l.b16 %v2323
    %v2364 = vunpack.c.l.b16 %v2324
    %v2365 = vunpack.c.l.b16 %v2325
    %v2366 = vunpack.c.l.b16 %v2326
    %v2367 = vunpack.c.l.b16 %v2327
    %v2368 = vunpack.c.l.b16 %v2328
    %v2369 = vunpack.c.l.b16 %v2329
    %v2370 = vunpack.c.l.b16 %v2330
    %v2371 = vunpack.c.l.b16 %v2331
    %v2372 = vunpack.c.l.b16 %v2332
    %v2373 = vunpack.c.l.b16 %v2333
    %v2374 = vunpack.c.l.b16 %v2334
    %v2375 = vunpack.c.l.b16 %v2335
    %v2376 = vunpack.c.l.b16 %v2336
    %v2377 = vunpack.c.l.b16 %v2337
    %v2378 = vpack.c.b16 %v2363, %v2362
    %v2379 = vpack.c.b16 %v2365, %v2364
    %v2380 = vpack.c.b16 %v2367, %v2366
    %v2381 = vpack.c.b16 %v2369, %v2368
    %v2382 = vpack.c.b16 %v2371, %v2370
    %v2383 = vpack.c.b16 %v2373, %v2372
    %v2384 = vpack.c.b16 %v2375, %v2374
    %v2385 = vpack.c.b16 %v2377, %v2376
    %2394 = vmatprep.subr.bf16.mxu0 0
    %2395 = vmatpush1.bf16.msra.mxu0 %v2385
    %2396 = vmatprep.subr.bf16.mxu0 0
    %2397 = vmatpush1.bf16.msra.mxu0 %v2384
    %2398 = vmatprep.subr.bf16.mxu0 0
    %2399 = vmatpush1.bf16.msra.mxu0 %v2383
    %2400 = vmatprep.subr.bf16.mxu0 0
    %2401 = vmatpush1.bf16.msra.mxu0 %v2382
    %2402 = vmatprep.subr.bf16.mxu0 0
    %2403 = vmatpush1.bf16.msra.mxu0 %v2381
    %2404 = vmatprep.subr.bf16.mxu0 0
    %2405 = vmatpush1.bf16.msra.mxu0 %v2380
    %2406 = vmatprep.subr.bf16.mxu0 0
    %2407 = vmatpush1.bf16.msra.mxu0 %v2379
    %2408 = vmatprep.subr.bf16.mxu0 0
    %2409 = vmatpush1.bf16.msra.mxu0 %v2378
    %2410 = vmatprep.subr.bf16.mxu0 0
    %2411 = vmatpush2.bf16.msra.mxu0 0
    %2412 = vmatprep.subr.bf16.mxu0 0
    %2413 = vmatpush2.bf16.msra.mxu0 0
    %2414 = vmatprep.subr.bf16.mxu0 0
    %2415 = vmatpush2.bf16.msra.mxu0 0
    %2416 = vmatprep.subr.bf16.mxu0 0
    %2417 = vmatpush2.bf16.msra.mxu0 0
    %2418 = vmatprep.subr.bf16.mxu0 0
    %2419 = vmatpush2.bf16.msra.mxu0 0
    %2420 = vmatprep.subr.bf16.mxu0 0
    %2421 = vmatpush2.bf16.msra.mxu0 0
    %2422 = vmatprep.subr.bf16.mxu0 0
    %2423 = vmatpush2.bf16.msra.mxu0 0
    %2424 = vmatprep.subr.bf16.mxu0 0
    %2425 = vmatpush2.bf16.msra.mxu0 0
    %2426 = vmatprep.mubr.bf16.mxu0 0
    %2427 = vmatmul.mubr.bf16.gmra.mxu0 %v536
    %v2428 = vpop.f32.mrf.mxu0
    %v2429 = vadd.f32 %v2344, %v2428
    %v2430 = vpop.f32.mrf.mxu0
    %v2431 = vpop.f32.mrf.mxu0
    %v2432 = vadd.f32 %v2344, %v2431
    %v2433 = vpop.f32.mrf.mxu0
    %2434 = vmatprep.mubr.bf16.mxu0 0
    %2435 = vmatmul.mubr.bf16.gmra.mxu0 %v537
    %v2436 = vpop.f32.mrf.mxu0
    %v2437 = vadd.f32 %v2344, %v2436
    %v2438 = vpop.f32.mrf.mxu0
    %v2439 = vpop.f32.mrf.mxu0
    %v2440 = vadd.f32 %v2344, %v2439
    %v2441 = vpop.f32.mrf.mxu0
    %2442 = vdwg.mxu0
    %s2443 = scalar_lea.vmem %s11, 128
    %v2444 = vld [vmem:[%s2443] sm:$0xf]
    %v2445 = vld [vmem:[%s2443 + $0x4] sm:$0xf]
    %v2446 = vld [vmem:[%s2443 + $0x8] sm:$0xf]
    %v2447 = vld [vmem:[%s2443 + $0xc] sm:$0xf]
    %v2448 = vld [vmem:[%s2443 + $0x10] sm:$0xf]
    %v2449 = vld [vmem:[%s2443 + $0x14] sm:$0xf]
    %v2450 = vld [vmem:[%s2443 + $0x18] sm:$0xf]
    %v2451 = vld [vmem:[%s2443 + $0x1c] sm:$0xf]
    %v2452 = vld [vmem:[%s2443 + $0x20] sm:$0xf]
    %v2453 = vld [vmem:[%s2443 + $0x24] sm:$0xf]
    %v2454 = vld [vmem:[%s2443 + $0x28] sm:$0xf]
    %v2455 = vld [vmem:[%s2443 + $0x2c] sm:$0xf]
    %v2456 = vld [vmem:[%s2443 + $0x30] sm:$0xf]
    %v2457 = vld [vmem:[%s2443 + $0x34] sm:$0xf]
    %v2458 = vld [vmem:[%s2443 + $0x38] sm:$0xf]
    %v2459 = vld [vmem:[%s2443 + $0x3c] sm:$0xf]
    %s2460 = scalar_lea.vmem %s12, 2
    %v2461 = vld [vmem:[%s2460] sm:$0x1]
    %v2463 = vlaneseq
    %v2464 = vshrl.u32 %v2463, 7
    %v2465 = vsub.s32 0, %v2464
    %v2466 = vrot.slane %v2461, %v2465
    %v2484 = vunpack.c.l.b16 %v2444
    %v2485 = vunpack.c.l.b16 %v2445
    %v2486 = vunpack.c.l.b16 %v2446
    %v2487 = vunpack.c.l.b16 %v2447
    %v2488 = vunpack.c.l.b16 %v2448
    %v2489 = vunpack.c.l.b16 %v2449
    %v2490 = vunpack.c.l.b16 %v2450
    %v2491 = vunpack.c.l.b16 %v2451
    %v2492 = vunpack.c.l.b16 %v2452
    %v2493 = vunpack.c.l.b16 %v2453
    %v2494 = vunpack.c.l.b16 %v2454
    %v2495 = vunpack.c.l.b16 %v2455
    %v2496 = vunpack.c.l.b16 %v2456
    %v2497 = vunpack.c.l.b16 %v2457
    %v2498 = vunpack.c.l.b16 %v2458
    %v2499 = vunpack.c.l.b16 %v2459
    %v2500 = vpack.c.b16 %v2485, %v2484
    %v2501 = vpack.c.b16 %v2487, %v2486
    %v2502 = vpack.c.b16 %v2489, %v2488
    %v2503 = vpack.c.b16 %v2491, %v2490
    %v2504 = vpack.c.b16 %v2493, %v2492
    %v2505 = vpack.c.b16 %v2495, %v2494
    %v2506 = vpack.c.b16 %v2497, %v2496
    %v2507 = vpack.c.b16 %v2499, %v2498
    %2516 = vmatprep.subr.bf16.mxu0 0
    %2517 = vmatpush1.bf16.msra.mxu0 %v2507
    %2518 = vmatprep.subr.bf16.mxu0 0
    %2519 = vmatpush1.bf16.msra.mxu0 %v2506
    %2520 = vmatprep.subr.bf16.mxu0 0
    %2521 = vmatpush1.bf16.msra.mxu0 %v2505
    %2522 = vmatprep.subr.bf16.mxu0 0
    %2523 = vmatpush1.bf16.msra.mxu0 %v2504
    %2524 = vmatprep.subr.bf16.mxu0 0
    %2525 = vmatpush1.bf16.msra.mxu0 %v2503
    %2526 = vmatprep.subr.bf16.mxu0 0
    %2527 = vmatpush1.bf16.msra.mxu0 %v2502
    %2528 = vmatprep.subr.bf16.mxu0 0
    %2529 = vmatpush1.bf16.msra.mxu0 %v2501
    %2530 = vmatprep.subr.bf16.mxu0 0
    %2531 = vmatpush1.bf16.msra.mxu0 %v2500
    %2532 = vmatprep.subr.bf16.mxu0 0
    %2533 = vmatpush2.bf16.msra.mxu0 0
    %2534 = vmatprep.subr.bf16.mxu0 0
    %2535 = vmatpush2.bf16.msra.mxu0 0
    %2536 = vmatprep.subr.bf16.mxu0 0
    %2537 = vmatpush2.bf16.msra.mxu0 0
    %2538 = vmatprep.subr.bf16.mxu0 0
    %2539 = vmatpush2.bf16.msra.mxu0 0
    %2540 = vmatprep.subr.bf16.mxu0 0
    %2541 = vmatpush2.bf16.msra.mxu0 0
    %2542 = vmatprep.subr.bf16.mxu0 0
    %2543 = vmatpush2.bf16.msra.mxu0 0
    %2544 = vmatprep.subr.bf16.mxu0 0
    %2545 = vmatpush2.bf16.msra.mxu0 0
    %2546 = vmatprep.subr.bf16.mxu0 0
    %2547 = vmatpush2.bf16.msra.mxu0 0
    %2548 = vmatprep.mubr.bf16.mxu0 0
    %2549 = vmatmul.mubr.bf16.gmra.mxu0 %v536
    %v2550 = vpop.f32.mrf.mxu0
    %v2551 = vadd.f32 %v2466, %v2550
    %v2552 = vpop.f32.mrf.mxu0
    %v2553 = vpop.f32.mrf.mxu0
    %v2554 = vadd.f32 %v2466, %v2553
    %v2555 = vpop.f32.mrf.mxu0
    %2556 = vmatprep.mubr.bf16.mxu0 0
    %2557 = vmatmul.mubr.bf16.gmra.mxu0 %v537
    %v2558 = vpop.f32.mrf.mxu0
    %v2559 = vadd.f32 %v2466, %v2558
    %v2560 = vpop.f32.mrf.mxu0
    %v2561 = vpop.f32.mrf.mxu0
    %v2562 = vadd.f32 %v2466, %v2561
    %v2563 = vpop.f32.mrf.mxu0
    %2564 = vdwg.mxu0
    %v2566 = vsel %vm898, %v2307, 0
    %v2569 = vsel %vm898, %v2310, 0
    %v2572 = vsel %vm898, %v2429, 0
    %v2575 = vsel %vm898, %v2432, 0
    %2577 = vmatprep.subr.mxu0 0.0
    %2578 = vmatpush1.xpose.msra.mxu0 0.0
    %2579 = vmatprep.subr.mxu0 0.0
    %2580 = vmatpush1.xpose.msra.mxu0 0.0
    %2581 = vmatprep.subr.mxu0 0.0
    %2582 = vmatpush1.xpose.msra.mxu0 0.0
    %2583 = vmatprep.subr.mxu0 0.0
    %2584 = vmatpush1.xpose.msra.mxu0 0.0
    %2585 = vmatprep.subr.mxu0 0.0
    %2586 = vmatpush1.xpose.msra.mxu0 0.0
    %2587 = vmatprep.subr.mxu0 0.0
    %2588 = vmatpush1.xpose.msra.mxu0 0.0
    %2589 = vmatprep.subr.mxu0 0.0
    %2590 = vmatpush1.xpose.msra.mxu0 0.0
    %2591 = vmatprep.subr.mxu0 0.0
    %2592 = vmatpush1.xpose.msra.mxu0 0.0
    %2593 = vmatprep.subr.mxu0 0.0
    %2594 = vmatpush1.xpose.msra.mxu0 0.0
    %2595 = vmatprep.subr.mxu0 0.0
    %2596 = vmatpush1.xpose.msra.mxu0 0.0
    %2597 = vmatprep.subr.mxu0 0.0
    %2598 = vmatpush1.xpose.msra.mxu0 0.0
    %2599 = vmatprep.subr.mxu0 0.0
    %2600 = vmatpush1.xpose.msra.mxu0 0.0
    %2601 = vmatprep.subr.mxu0 0.0
    %2602 = vmatpush1.xpose.msra.mxu0 0.0
    %2603 = vmatprep.subr.mxu0 0.0
    %2604 = vmatpush1.xpose.msra.mxu0 0.0
    %2605 = vmatprep.subr.mxu0 0.0
    %2606 = vmatpush1.xpose.msra.mxu0 %v2575
    %2607 = vmatprep.subr.mxu0 0.0
    %2608 = vmatpush1.xpose.msra.mxu0 %v2572
    %2609 = vmatprep.subr.mxu0 0.0
    %2610 = vmatpush2.xpose.msra.mxu0 0.0
    %2611 = vmatprep.subr.mxu0 0.0
    %2612 = vmatpush2.xpose.msra.mxu0 0.0
    %2613 = vmatprep.subr.mxu0 0.0
    %2614 = vmatpush2.xpose.msra.mxu0 0.0
    %2615 = vmatprep.subr.mxu0 0.0
    %2616 = vmatpush2.xpose.msra.mxu0 0.0
    %2617 = vmatprep.subr.mxu0 0.0
    %2618 = vmatpush2.xpose.msra.mxu0 0.0
    %2619 = vmatprep.subr.mxu0 0.0
    %2620 = vmatpush2.xpose.msra.mxu0 0.0
    %2621 = vmatprep.subr.mxu0 0.0
    %2622 = vmatpush2.xpose.msra.mxu0 0.0
    %2623 = vmatprep.subr.mxu0 0.0
    %2624 = vmatpush2.xpose.msra.mxu0 0.0
    %2625 = vmatprep.subr.mxu0 0.0
    %2626 = vmatpush2.xpose.msra.mxu0 0.0
    %2627 = vmatprep.subr.mxu0 0.0
    %2628 = vmatpush2.xpose.msra.mxu0 0.0
    %2629 = vmatprep.subr.mxu0 0.0
    %2630 = vmatpush2.xpose.msra.mxu0 0.0
    %2631 = vmatprep.subr.mxu0 0.0
    %2632 = vmatpush2.xpose.msra.mxu0 0.0
    %2633 = vmatprep.subr.mxu0 0.0
    %2634 = vmatpush2.xpose.msra.mxu0 0.0
    %2635 = vmatprep.subr.mxu0 0.0
    %2636 = vmatpush2.xpose.msra.mxu0 0.0
    %2637 = vmatprep.subr.mxu0 0.0
    %2638 = vmatpush2.xpose.msra.mxu0 0.0
    %2639 = vmatprep.subr.mxu0 0.0
    %2640 = vmatpush2.xpose.msra.mxu0 0.0
    %2641 = vmatprep.mubr.f32.mxu0 0.0
    %2642 = vmatmul.mubr.f32.gmra.mxu0 %v2566
    %v2643 = vpop.f32.mrf.mxu0
    %v2644 = vadd.f32 0.0, %v2643
    %v2645 = vpop.f32.mrf.mxu0
    %2646 = vmatprep.mubr.f32.mxu0 0.0
    %2647 = vmatmul.mubr.f32.gmra.mxu0 %v2569
    %v2648 = vpop.f32.mrf.mxu0
    %v2649 = vadd.f32 0.0, %v2648
    %v2650 = vpop.f32.mrf.mxu0
    %2651 = vdwg.mxu0
    %v2653 = vsel %vm898, %v2315, 0
    %v2656 = vsel %vm898, %v2318, 0
    %v2659 = vsel %vm898, %v2437, 0
    %v2662 = vsel %vm898, %v2440, 0
    %2664 = vmatprep.subr.mxu0 0.0
    %2665 = vmatpush1.xpose.msra.mxu0 0.0
    %2666 = vmatprep.subr.mxu0 0.0
    %2667 = vmatpush1.xpose.msra.mxu0 0.0
    %2668 = vmatprep.subr.mxu0 0.0
    %2669 = vmatpush1.xpose.msra.mxu0 0.0
    %2670 = vmatprep.subr.mxu0 0.0
    %2671 = vmatpush1.xpose.msra.mxu0 0.0
    %2672 = vmatprep.subr.mxu0 0.0
    %2673 = vmatpush1.xpose.msra.mxu0 0.0
    %2674 = vmatprep.subr.mxu0 0.0
    %2675 = vmatpush1.xpose.msra.mxu0 0.0
    %2676 = vmatprep.subr.mxu0 0.0
    %2677 = vmatpush1.xpose.msra.mxu0 0.0
    %2678 = vmatprep.subr.mxu0 0.0
    %2679 = vmatpush1.xpose.msra.mxu0 0.0
    %2680 = vmatprep.subr.mxu0 0.0
    %2681 = vmatpush1.xpose.msra.mxu0 0.0
    %2682 = vmatprep.subr.mxu0 0.0
    %2683 = vmatpush1.xpose.msra.mxu0 0.0
    %2684 = vmatprep.subr.mxu0 0.0
    %2685 = vmatpush1.xpose.msra.mxu0 0.0
    %2686 = vmatprep.subr.mxu0 0.0
    %2687 = vmatpush1.xpose.msra.mxu0 0.0
    %2688 = vmatprep.subr.mxu0 0.0
    %2689 = vmatpush1.xpose.msra.mxu0 0.0
    %2690 = vmatprep.subr.mxu0 0.0
    %2691 = vmatpush1.xpose.msra.mxu0 0.0
    %2692 = vmatprep.subr.mxu0 0.0
    %2693 = vmatpush1.xpose.msra.mxu0 %v2662
    %2694 = vmatprep.subr.mxu0 0.0
    %2695 = vmatpush1.xpose.msra.mxu0 %v2659
    %2696 = vmatprep.subr.mxu0 0.0
    %2697 = vmatpush2.xpose.msra.mxu0 0.0
    %2698 = vmatprep.subr.mxu0 0.0
    %2699 = vmatpush2.xpose.msra.mxu0 0.0
    %2700 = vmatprep.subr.mxu0 0.0
    %2701 = vmatpush2.xpose.msra.mxu0 0.0
    %2702 = vmatprep.subr.mxu0 0.0
    %2703 = vmatpush2.xpose.msra.mxu0 0.0
    %2704 = vmatprep.subr.mxu0 0.0
    %2705 = vmatpush2.xpose.msra.mxu0 0.0
    %2706 = vmatprep.subr.mxu0 0.0
    %2707 = vmatpush2.xpose.msra.mxu0 0.0
    %2708 = vmatprep.subr.mxu0 0.0
    %2709 = vmatpush2.xpose.msra.mxu0 0.0
    %2710 = vmatprep.subr.mxu0 0.0
    %2711 = vmatpush2.xpose.msra.mxu0 0.0
    %2712 = vmatprep.subr.mxu0 0.0
    %2713 = vmatpush2.xpose.msra.mxu0 0.0
    %2714 = vmatprep.subr.mxu0 0.0
    %2715 = vmatpush2.xpose.msra.mxu0 0.0
    %2716 = vmatprep.subr.mxu0 0.0
    %2717 = vmatpush2.xpose.msra.mxu0 0.0
    %2718 = vmatprep.subr.mxu0 0.0
    %2719 = vmatpush2.xpose.msra.mxu0 0.0
    %2720 = vmatprep.subr.mxu0 0.0
    %2721 = vmatpush2.xpose.msra.mxu0 0.0
    %2722 = vmatprep.subr.mxu0 0.0
    %2723 = vmatpush2.xpose.msra.mxu0 0.0
    %2724 = vmatprep.subr.mxu0 0.0
    %2725 = vmatpush2.xpose.msra.mxu0 0.0
    %2726 = vmatprep.subr.mxu0 0.0
    %2727 = vmatpush2.xpose.msra.mxu0 0.0
    %2728 = vmatprep.mubr.f32.mxu0 0.0
    %2729 = vmatmul.mubr.f32.gmra.mxu0 %v2653
    %v2730 = vpop.f32.mrf.mxu0
    %v2731 = vadd.f32 0.0, %v2730
    %v2732 = vpop.f32.mrf.mxu0
    %2733 = vmatprep.mubr.f32.mxu0 0.0
    %2734 = vmatmul.mubr.f32.gmra.mxu0 %v2656
    %v2735 = vpop.f32.mrf.mxu0
    %v2736 = vadd.f32 0.0, %v2735
    %v2737 = vpop.f32.mrf.mxu0
    %2738 = vdwg.mxu0
    %v2739 = vmul.f32 %v2644, 0.17677669
    %v2740 = vmul.f32 %v2649, 0.17677669
    %v2741 = vmul.f32 %v2731, 0.17677669
    %v2742 = vmul.f32 %v2736, 0.17677669
    %v2743 = vadd.f32 %v2739, %v1080
    %v2744 = vadd.f32 %v2740, %v1080
    %v2745 = vadd.f32 %v2741, %v1084
    %v2746 = vadd.f32 %v2742, %v1084
    %v2747 = vsel %vm1091, %v2743, -inf
    %2748 = vmax.xlane.f32.xlu0 %v2747
    %v2749 = vpop.xlane.xlu0 %2748
    %v2750 = vsel %vm1091, %v2744, -inf
    %2751 = vmax.xlane.f32.xlu0 %v2750
    %v2752 = vpop.xlane.xlu0 %2751
    %v2753 = vsel %vm1091, %v2745, -inf
    %2754 = vmax.xlane.f32.xlu0 %v2753
    %v2755 = vpop.xlane.xlu0 %2754
    %v2756 = vsel %vm1091, %v2746, -inf
    %2757 = vmax.xlane.f32.xlu0 %v2756
    %v2758 = vpop.xlane.xlu0 %2757
    %v2759 = vsub.f32 %v2743, %v2749
    %v2760 = vsub.f32 %v2744, %v2752
    %v2761 = vsub.f32 %v2745, %v2755
    %v2762 = vsub.f32 %v2746, %v2758
    %v2763 = vmul.f32 %v2759, 1.442695
    %v2764 = vpow.pop %v2763
    %v2765 = vmul.f32 %v2760, 1.442695
    %v2766 = vpow.pop %v2765
    %v2767 = vmul.f32 %v2761, 1.442695
    %v2768 = vpow.pop %v2767
    %v2769 = vmul.f32 %v2762, 1.442695
    %v2770 = vpow.pop %v2769
    %v2771 = vsel %vm1091, %v2764, 0.0
    %2772 = vadd.xlane.f32.xlu0 %v2771
    %v2773 = vpop.xlane.xlu0 %2772
    %v2774 = vsel %vm1091, %v2766, 0.0
    %2775 = vadd.xlane.f32.xlu0 %v2774
    %v2776 = vpop.xlane.xlu0 %2775
    %v2777 = vsel %vm1091, %v2768, 0.0
    %2778 = vadd.xlane.f32.xlu0 %v2777
    %v2779 = vpop.xlane.xlu0 %2778
    %v2780 = vsel %vm1091, %v2770, 0.0
    %2781 = vadd.xlane.f32.xlu0 %v2780
    %v2782 = vpop.xlane.xlu0 %2781
    %v2783 = vrcp.pop %v2773
    %v2784 = vmul.f32 %v2764, %v2783
    %v2785 = vrcp.pop %v2776
    %v2786 = vmul.f32 %v2766, %v2785
    %v2787 = vrcp.pop %v2779
    %v2788 = vmul.f32 %v2768, %v2787
    %v2789 = vrcp.pop %v2782
    %v2790 = vmul.f32 %v2770, %v2789
    %v2792 = vsel %vm1091, %v2784, 0
    %v2795 = vsel %vm1091, %v2786, 0
    %2797 = vmatprep.subr.mxu0 0.0
    %2798 = vmatpush1.msra.mxu0 0.0
    %2799 = vmatprep.subr.mxu0 0.0
    %2800 = vmatpush1.msra.mxu0 0.0
    %2801 = vmatprep.subr.mxu0 0.0
    %2802 = vmatpush1.msra.mxu0 0.0
    %2803 = vmatprep.subr.mxu0 0.0
    %2804 = vmatpush1.msra.mxu0 0.0
    %2805 = vmatprep.subr.mxu0 0.0
    %2806 = vmatpush1.msra.mxu0 0.0
    %2807 = vmatprep.subr.mxu0 0.0
    %2808 = vmatpush1.msra.mxu0 0.0
    %2809 = vmatprep.subr.mxu0 0.0
    %2810 = vmatpush1.msra.mxu0 0.0
    %2811 = vmatprep.subr.mxu0 0.0
    %2812 = vmatpush1.msra.mxu0 0.0
    %2813 = vmatprep.subr.mxu0 0.0
    %2814 = vmatpush1.msra.mxu0 0.0
    %2815 = vmatprep.subr.mxu0 0.0
    %2816 = vmatpush1.msra.mxu0 0.0
    %2817 = vmatprep.subr.mxu0 0.0
    %2818 = vmatpush1.msra.mxu0 0.0
    %2819 = vmatprep.subr.mxu0 0.0
    %2820 = vmatpush1.msra.mxu0 0.0
    %2821 = vmatprep.subr.mxu0 0.0
    %2822 = vmatpush1.msra.mxu0 0.0
    %2823 = vmatprep.subr.mxu0 0.0
    %2824 = vmatpush1.msra.mxu0 0.0
    %2825 = vmatprep.subr.mxu0 0.0
    %2826 = vmatpush1.msra.mxu0 %v2554
    %2827 = vmatprep.subr.mxu0 0.0
    %2828 = vmatpush1.msra.mxu0 %v2551
    %2829 = vmatprep.subr.mxu0 0.0
    %2830 = vmatpush2.msra.mxu0 0.0
    %2831 = vmatprep.subr.mxu0 0.0
    %2832 = vmatpush2.msra.mxu0 0.0
    %2833 = vmatprep.subr.mxu0 0.0
    %2834 = vmatpush2.msra.mxu0 0.0
    %2835 = vmatprep.subr.mxu0 0.0
    %2836 = vmatpush2.msra.mxu0 0.0
    %2837 = vmatprep.subr.mxu0 0.0
    %2838 = vmatpush2.msra.mxu0 0.0
    %2839 = vmatprep.subr.mxu0 0.0
    %2840 = vmatpush2.msra.mxu0 0.0
    %2841 = vmatprep.subr.mxu0 0.0
    %2842 = vmatpush2.msra.mxu0 0.0
    %2843 = vmatprep.subr.mxu0 0.0
    %2844 = vmatpush2.msra.mxu0 0.0
    %2845 = vmatprep.subr.mxu0 0.0
    %2846 = vmatpush2.msra.mxu0 0.0
    %2847 = vmatprep.subr.mxu0 0.0
    %2848 = vmatpush2.msra.mxu0 0.0
    %2849 = vmatprep.subr.mxu0 0.0
    %2850 = vmatpush2.msra.mxu0 0.0
    %2851 = vmatprep.subr.mxu0 0.0
    %2852 = vmatpush2.msra.mxu0 0.0
    %2853 = vmatprep.subr.mxu0 0.0
    %2854 = vmatpush2.msra.mxu0 0.0
    %2855 = vmatprep.subr.mxu0 0.0
    %2856 = vmatpush2.msra.mxu0 0.0
    %2857 = vmatprep.subr.mxu0 0.0
    %2858 = vmatpush2.msra.mxu0 0.0
    %2859 = vmatprep.subr.mxu0 0.0
    %2860 = vmatpush2.msra.mxu0 0.0
    %2861 = vmatprep.mubr.f32.mxu0 0.0
    %2862 = vmatmul.mubr.f32.gmra.mxu0 %v2792
    %v2863 = vpop.f32.mrf.mxu0
    %v2864 = vadd.f32 0.0, %v2863
    %v2865 = vpop.f32.mrf.mxu0
    %2866 = vmatprep.mubr.f32.mxu0 0.0
    %2867 = vmatmul.mubr.f32.gmra.mxu0 %v2795
    %v2868 = vpop.f32.mrf.mxu0
    %v2869 = vadd.f32 0.0, %v2868
    %v2870 = vpop.f32.mrf.mxu0
    %2871 = vdwg.mxu0
    %v2873 = vsel %vm1091, %v2788, 0
    %v2876 = vsel %vm1091, %v2790, 0
    %2878 = vmatprep.subr.mxu0 0.0
    %2879 = vmatpush1.msra.mxu0 0.0
    %2880 = vmatprep.subr.mxu0 0.0
    %2881 = vmatpush1.msra.mxu0 0.0
    %2882 = vmatprep.subr.mxu0 0.0
    %2883 = vmatpush1.msra.mxu0 0.0
    %2884 = vmatprep.subr.mxu0 0.0
    %2885 = vmatpush1.msra.mxu0 0.0
    %2886 = vmatprep.subr.mxu0 0.0
    %2887 = vmatpush1.msra.mxu0 0.0
    %2888 = vmatprep.subr.mxu0 0.0
    %2889 = vmatpush1.msra.mxu0 0.0
    %2890 = vmatprep.subr.mxu0 0.0
    %2891 = vmatpush1.msra.mxu0 0.0
    %2892 = vmatprep.subr.mxu0 0.0
    %2893 = vmatpush1.msra.mxu0 0.0
    %2894 = vmatprep.subr.mxu0 0.0
    %2895 = vmatpush1.msra.mxu0 0.0
    %2896 = vmatprep.subr.mxu0 0.0
    %2897 = vmatpush1.msra.mxu0 0.0
    %2898 = vmatprep.subr.mxu0 0.0
    %2899 = vmatpush1.msra.mxu0 0.0
    %2900 = vmatprep.subr.mxu0 0.0
    %2901 = vmatpush1.msra.mxu0 0.0
    %2902 = vmatprep.subr.mxu0 0.0
    %2903 = vmatpush1.msra.mxu0 0.0
    %2904 = vmatprep.subr.mxu0 0.0
    %2905 = vmatpush1.msra.mxu0 0.0
    %2906 = vmatprep.subr.mxu0 0.0
    %2907 = vmatpush1.msra.mxu0 %v2562
    %2908 = vmatprep.subr.mxu0 0.0
    %2909 = vmatpush1.msra.mxu0 %v2559
    %2910 = vmatprep.subr.mxu0 0.0
    %2911 = vmatpush2.msra.mxu0 0.0
    %2912 = vmatprep.subr.mxu0 0.0
    %2913 = vmatpush2.msra.mxu0 0.0
    %2914 = vmatprep.subr.mxu0 0.0
    %2915 = vmatpush2.msra.mxu0 0.0
    %2916 = vmatprep.subr.mxu0 0.0
    %2917 = vmatpush2.msra.mxu0 0.0
    %2918 = vmatprep.subr.mxu0 0.0
    %2919 = vmatpush2.msra.mxu0 0.0
    %2920 = vmatprep.subr.mxu0 0.0
    %2921 = vmatpush2.msra.mxu0 0.0
    %2922 = vmatprep.subr.mxu0 0.0
    %2923 = vmatpush2.msra.mxu0 0.0
    %2924 = vmatprep.subr.mxu0 0.0
    %2925 = vmatpush2.msra.mxu0 0.0
    %2926 = vmatprep.subr.mxu0 0.0
    %2927 = vmatpush2.msra.mxu0 0.0
    %2928 = vmatprep.subr.mxu0 0.0
    %2929 = vmatpush2.msra.mxu0 0.0
    %2930 = vmatprep.subr.mxu0 0.0
    %2931 = vmatpush2.msra.mxu0 0.0
    %2932 = vmatprep.subr.mxu0 0.0
    %2933 = vmatpush2.msra.mxu0 0.0
    %2934 = vmatprep.subr.mxu0 0.0
    %2935 = vmatpush2.msra.mxu0 0.0
    %2936 = vmatprep.subr.mxu0 0.0
    %2937 = vmatpush2.msra.mxu0 0.0
    %2938 = vmatprep.subr.mxu0 0.0
    %2939 = vmatpush2.msra.mxu0 0.0
    %2940 = vmatprep.subr.mxu0 0.0
    %2941 = vmatpush2.msra.mxu0 0.0
    %2942 = vmatprep.mubr.f32.mxu0 0.0
    %2943 = vmatmul.mubr.f32.gmra.mxu0 %v2873
    %v2944 = vpop.f32.mrf.mxu0
    %v2945 = vadd.f32 0.0, %v2944
    %v2946 = vpop.f32.mrf.mxu0
    %2947 = vmatprep.mubr.f32.mxu0 0.0
    %2948 = vmatmul.mubr.f32.gmra.mxu0 %v2876
    %v2949 = vpop.f32.mrf.mxu0
    %v2950 = vadd.f32 0.0, %v2949
    %v2951 = vpop.f32.mrf.mxu0
    %2952 = vdwg.mxu0
    %v2953 = vpack.c.bf16 %v2869, %v2864
    %v2954 = vpack.c.bf16 %v2950, %v2945
    %s2955 = scalar_lea.vmem %s13, 32
    %v2956 = vld [vmem:[%s2955] sm:$0xf]
    %v2957 = vld [vmem:[%s2955 + $0x4] sm:$0xf]
    %v2958 = vld [vmem:[%s2955 + $0x8] sm:$0xf]
    %v2959 = vld [vmem:[%s2955 + $0xc] sm:$0xf]
    %v2964 = vunpack.c.l.b16 %v2956
    %v2965 = vunpack.c.l.b16 %v2957
    %v2966 = vunpack.c.l.b16 %v2958
    %v2967 = vunpack.c.l.b16 %v2959
    %v2968 = vpack.c.b16 %v2965, %v2964
    %v2969 = vpack.c.b16 %v2967, %v2966
    %v2973 = vsel %vm898, %v2953, 0
    %v2976 = vsel %vm898, %v2954, 0
    %2978 = vmatprep.subr.bf16.mxu0 0
    %2979 = vmatpush1.bf16.msra.mxu0 0
    %2980 = vmatprep.subr.bf16.mxu0 0
    %2981 = vmatpush1.bf16.msra.mxu0 0
    %2982 = vmatprep.subr.bf16.mxu0 0
    %2983 = vmatpush1.bf16.msra.mxu0 0
    %2984 = vmatprep.subr.bf16.mxu0 0
    %2985 = vmatpush1.bf16.msra.mxu0 0
    %2986 = vmatprep.subr.bf16.mxu0 0
    %2987 = vmatpush1.bf16.msra.mxu0 0
    %2988 = vmatprep.subr.bf16.mxu0 0
    %2989 = vmatpush1.bf16.msra.mxu0 0
    %2990 = vmatprep.subr.bf16.mxu0 0
    %2991 = vmatpush1.bf16.msra.mxu0 %v2969
    %2992 = vmatprep.subr.bf16.mxu0 0
    %2993 = vmatpush1.bf16.msra.mxu0 %v2968
    %2994 = vmatprep.subr.bf16.mxu0 0
    %2995 = vmatpush2.bf16.msra.mxu0 0
    %2996 = vmatprep.subr.bf16.mxu0 0
    %2997 = vmatpush2.bf16.msra.mxu0 0
    %2998 = vmatprep.subr.bf16.mxu0 0
    %2999 = vmatpush2.bf16.msra.mxu0 0
    %3000 = vmatprep.subr.bf16.mxu0 0
    %3001 = vmatpush2.bf16.msra.mxu0 0
    %3002 = vmatprep.subr.bf16.mxu0 0
    %3003 = vmatpush2.bf16.msra.mxu0 0
    %3004 = vmatprep.subr.bf16.mxu0 0
    %3005 = vmatpush2.bf16.msra.mxu0 0
    %3006 = vmatprep.subr.bf16.mxu0 0
    %3007 = vmatpush2.bf16.msra.mxu0 0
    %3008 = vmatprep.subr.bf16.mxu0 0
    %3009 = vmatpush2.bf16.msra.mxu0 0
    %3010 = vmatprep.mubr.bf16.mxu0 0
    %3011 = vmatmul.mubr.bf16.gmra.mxu0 %v2973
    %v3012 = vpop.f32.mrf.mxu0
    %v3013 = vadd.f32 0.0, %v3012
    %v3014 = vpop.f32.mrf.mxu0
    %v3015 = vpop.f32.mrf.mxu0
    %v3016 = vadd.f32 0.0, %v3015
    %v3017 = vpop.f32.mrf.mxu0
    %3018 = vmatprep.mubr.bf16.mxu0 0
    %3019 = vmatmul.mubr.bf16.gmra.mxu0 %v2976
    %v3020 = vpop.f32.mrf.mxu0
    %v3021 = vadd.f32 0.0, %v3020
    %v3022 = vpop.f32.mrf.mxu0
    %v3023 = vpop.f32.mrf.mxu0
    %v3024 = vadd.f32 0.0, %v3023
    %v3025 = vpop.f32.mrf.mxu0
    %3026 = vdwg.mxu0
    %v3027 = vadd.f32 %v2185, %v3013
    %v3028 = vadd.f32 %v2188, %v3016
    %v3029 = vadd.f32 %v2193, %v3021
    %v3030 = vadd.f32 %v2196, %v3024
    %s3031 = scalar_lea.vmem %s7, 192
    %v3032 = vld [vmem:[%s3031] sm:$0xf]
    %v3033 = vld [vmem:[%s3031 + $0x4] sm:$0xf]
    %v3034 = vld [vmem:[%s3031 + $0x8] sm:$0xf]
    %v3035 = vld [vmem:[%s3031 + $0xc] sm:$0xf]
    %v3036 = vld [vmem:[%s3031 + $0x10] sm:$0xf]
    %v3037 = vld [vmem:[%s3031 + $0x14] sm:$0xf]
    %v3038 = vld [vmem:[%s3031 + $0x18] sm:$0xf]
    %v3039 = vld [vmem:[%s3031 + $0x1c] sm:$0xf]
    %v3040 = vld [vmem:[%s3031 + $0x20] sm:$0xf]
    %v3041 = vld [vmem:[%s3031 + $0x24] sm:$0xf]
    %v3042 = vld [vmem:[%s3031 + $0x28] sm:$0xf]
    %v3043 = vld [vmem:[%s3031 + $0x2c] sm:$0xf]
    %v3044 = vld [vmem:[%s3031 + $0x30] sm:$0xf]
    %v3045 = vld [vmem:[%s3031 + $0x34] sm:$0xf]
    %v3046 = vld [vmem:[%s3031 + $0x38] sm:$0xf]
    %v3047 = vld [vmem:[%s3031 + $0x3c] sm:$0xf]
    %s3048 = scalar_lea.vmem %s8, 3
    %v3049 = vld [vmem:[%s3048] sm:$0x1]
    %v3051 = vlaneseq
    %v3052 = vshrl.u32 %v3051, 7
    %v3053 = vsub.s32 0, %v3052
    %v3054 = vrot.slane %v3049, %v3053
    %v3072 = vunpack.c.l.b16 %v3032
    %v3073 = vunpack.c.l.b16 %v3033
    %v3074 = vunpack.c.l.b16 %v3034
    %v3075 = vunpack.c.l.b16 %v3035
    %v3076 = vunpack.c.l.b16 %v3036
    %v3077 = vunpack.c.l.b16 %v3037
    %v3078 = vunpack.c.l.b16 %v3038
    %v3079 = vunpack.c.l.b16 %v3039
    %v3080 = vunpack.c.l.b16 %v3040
    %v3081 = vunpack.c.l.b16 %v3041
    %v3082 = vunpack.c.l.b16 %v3042
    %v3083 = vunpack.c.l.b16 %v3043
    %v3084 = vunpack.c.l.b16 %v3044
    %v3085 = vunpack.c.l.b16 %v3045
    %v3086 = vunpack.c.l.b16 %v3046
    %v3087 = vunpack.c.l.b16 %v3047
    %v3088 = vpack.c.b16 %v3073, %v3072
    %v3089 = vpack.c.b16 %v3075, %v3074
    %v3090 = vpack.c.b16 %v3077, %v3076
    %v3091 = vpack.c.b16 %v3079, %v3078
    %v3092 = vpack.c.b16 %v3081, %v3080
    %v3093 = vpack.c.b16 %v3083, %v3082
    %v3094 = vpack.c.b16 %v3085, %v3084
    %v3095 = vpack.c.b16 %v3087, %v3086
    %3104 = vmatprep.subr.bf16.mxu0 0
    %3105 = vmatpush1.bf16.msra.mxu0 %v3095
    %3106 = vmatprep.subr.bf16.mxu0 0
    %3107 = vmatpush1.bf16.msra.mxu0 %v3094
    %3108 = vmatprep.subr.bf16.mxu0 0
    %3109 = vmatpush1.bf16.msra.mxu0 %v3093
    %3110 = vmatprep.subr.bf16.mxu0 0
    %3111 = vmatpush1.bf16.msra.mxu0 %v3092
    %3112 = vmatprep.subr.bf16.mxu0 0
    %3113 = vmatpush1.bf16.msra.mxu0 %v3091
    %3114 = vmatprep.subr.bf16.mxu0 0
    %3115 = vmatpush1.bf16.msra.mxu0 %v3090
    %3116 = vmatprep.subr.bf16.mxu0 0
    %3117 = vmatpush1.bf16.msra.mxu0 %v3089
    %3118 = vmatprep.subr.bf16.mxu0 0
    %3119 = vmatpush1.bf16.msra.mxu0 %v3088
    %3120 = vmatprep.subr.bf16.mxu0 0
    %3121 = vmatpush2.bf16.msra.mxu0 0
    %3122 = vmatprep.subr.bf16.mxu0 0
    %3123 = vmatpush2.bf16.msra.mxu0 0
    %3124 = vmatprep.subr.bf16.mxu0 0
    %3125 = vmatpush2.bf16.msra.mxu0 0
    %3126 = vmatprep.subr.bf16.mxu0 0
    %3127 = vmatpush2.bf16.msra.mxu0 0
    %3128 = vmatprep.subr.bf16.mxu0 0
    %3129 = vmatpush2.bf16.msra.mxu0 0
    %3130 = vmatprep.subr.bf16.mxu0 0
    %3131 = vmatpush2.bf16.msra.mxu0 0
    %3132 = vmatprep.subr.bf16.mxu0 0
    %3133 = vmatpush2.bf16.msra.mxu0 0
    %3134 = vmatprep.subr.bf16.mxu0 0
    %3135 = vmatpush2.bf16.msra.mxu0 0
    %3136 = vmatprep.mubr.bf16.mxu0 0
    %3137 = vmatmul.mubr.bf16.gmra.mxu0 %v536
    %v3138 = vpop.f32.mrf.mxu0
    %v3139 = vadd.f32 %v3054, %v3138
    %v3140 = vpop.f32.mrf.mxu0
    %v3141 = vpop.f32.mrf.mxu0
    %v3142 = vadd.f32 %v3054, %v3141
    %v3143 = vpop.f32.mrf.mxu0
    %3144 = vmatprep.mubr.bf16.mxu0 0
    %3145 = vmatmul.mubr.bf16.gmra.mxu0 %v537
    %v3146 = vpop.f32.mrf.mxu0
    %v3147 = vadd.f32 %v3054, %v3146
    %v3148 = vpop.f32.mrf.mxu0
    %v3149 = vpop.f32.mrf.mxu0
    %v3150 = vadd.f32 %v3054, %v3149
    %v3151 = vpop.f32.mrf.mxu0
    %3152 = vdwg.mxu0
    %s3153 = scalar_lea.vmem %s9, 192
    %v3154 = vld [vmem:[%s3153] sm:$0xf]
    %v3155 = vld [vmem:[%s3153 + $0x4] sm:$0xf]
    %v3156 = vld [vmem:[%s3153 + $0x8] sm:$0xf]
    %v3157 = vld [vmem:[%s3153 + $0xc] sm:$0xf]
    %v3158 = vld [vmem:[%s3153 + $0x10] sm:$0xf]
    %v3159 = vld [vmem:[%s3153 + $0x14] sm:$0xf]
    %v3160 = vld [vmem:[%s3153 + $0x18] sm:$0xf]
    %v3161 = vld [vmem:[%s3153 + $0x1c] sm:$0xf]
    %v3162 = vld [vmem:[%s3153 + $0x20] sm:$0xf]
    %v3163 = vld [vmem:[%s3153 + $0x24] sm:$0xf]
    %v3164 = vld [vmem:[%s3153 + $0x28] sm:$0xf]
    %v3165 = vld [vmem:[%s3153 + $0x2c] sm:$0xf]
    %v3166 = vld [vmem:[%s3153 + $0x30] sm:$0xf]
    %v3167 = vld [vmem:[%s3153 + $0x34] sm:$0xf]
    %v3168 = vld [vmem:[%s3153 + $0x38] sm:$0xf]
    %v3169 = vld [vmem:[%s3153 + $0x3c] sm:$0xf]
    %s3170 = scalar_lea.vmem %s10, 3
    %v3171 = vld [vmem:[%s3170] sm:$0x1]
    %v3173 = vlaneseq
    %v3174 = vshrl.u32 %v3173, 7
    %v3175 = vsub.s32 0, %v3174
    %v3176 = vrot.slane %v3171, %v3175
    %v3194 = vunpack.c.l.b16 %v3154
    %v3195 = vunpack.c.l.b16 %v3155
    %v3196 = vunpack.c.l.b16 %v3156
    %v3197 = vunpack.c.l.b16 %v3157
    %v3198 = vunpack.c.l.b16 %v3158
    %v3199 = vunpack.c.l.b16 %v3159
    %v3200 = vunpack.c.l.b16 %v3160
    %v3201 = vunpack.c.l.b16 %v3161
    %v3202 = vunpack.c.l.b16 %v3162
    %v3203 = vunpack.c.l.b16 %v3163
    %v3204 = vunpack.c.l.b16 %v3164
    %v3205 = vunpack.c.l.b16 %v3165
    %v3206 = vunpack.c.l.b16 %v3166
    %v3207 = vunpack.c.l.b16 %v3167
    %v3208 = vunpack.c.l.b16 %v3168
    %v3209 = vunpack.c.l.b16 %v3169
    %v3210 = vpack.c.b16 %v3195, %v3194
    %v3211 = vpack.c.b16 %v3197, %v3196
    %v3212 = vpack.c.b16 %v3199, %v3198
    %v3213 = vpack.c.b16 %v3201, %v3200
    %v3214 = vpack.c.b16 %v3203, %v3202
    %v3215 = vpack.c.b16 %v3205, %v3204
    %v3216 = vpack.c.b16 %v3207, %v3206
    %v3217 = vpack.c.b16 %v3209, %v3208
    %3226 = vmatprep.subr.bf16.mxu0 0
    %3227 = vmatpush1.bf16.msra.mxu0 %v3217
    %3228 = vmatprep.subr.bf16.mxu0 0
    %3229 = vmatpush1.bf16.msra.mxu0 %v3216
    %3230 = vmatprep.subr.bf16.mxu0 0
    %3231 = vmatpush1.bf16.msra.mxu0 %v3215
    %3232 = vmatprep.subr.bf16.mxu0 0
    %3233 = vmatpush1.bf16.msra.mxu0 %v3214
    %3234 = vmatprep.subr.bf16.mxu0 0
    %3235 = vmatpush1.bf16.msra.mxu0 %v3213
    %3236 = vmatprep.subr.bf16.mxu0 0
    %3237 = vmatpush1.bf16.msra.mxu0 %v3212
    %3238 = vmatprep.subr.bf16.mxu0 0
    %3239 = vmatpush1.bf16.msra.mxu0 %v3211
    %3240 = vmatprep.subr.bf16.mxu0 0
    %3241 = vmatpush1.bf16.msra.mxu0 %v3210
    %3242 = vmatprep.subr.bf16.mxu0 0
    %3243 = vmatpush2.bf16.msra.mxu0 0
    %3244 = vmatprep.subr.bf16.mxu0 0
    %3245 = vmatpush2.bf16.msra.mxu0 0
    %3246 = vmatprep.subr.bf16.mxu0 0
    %3247 = vmatpush2.bf16.msra.mxu0 0
    %3248 = vmatprep.subr.bf16.mxu0 0
    %3249 = vmatpush2.bf16.msra.mxu0 0
    %3250 = vmatprep.subr.bf16.mxu0 0
    %3251 = vmatpush2.bf16.msra.mxu0 0
    %3252 = vmatprep.subr.bf16.mxu0 0
    %3253 = vmatpush2.bf16.msra.mxu0 0
    %3254 = vmatprep.subr.bf16.mxu0 0
    %3255 = vmatpush2.bf16.msra.mxu0 0
    %3256 = vmatprep.subr.bf16.mxu0 0
    %3257 = vmatpush2.bf16.msra.mxu0 0
    %3258 = vmatprep.mubr.bf16.mxu0 0
    %3259 = vmatmul.mubr.bf16.gmra.mxu0 %v536
    %v3260 = vpop.f32.mrf.mxu0
    %v3261 = vadd.f32 %v3176, %v3260
    %v3262 = vpop.f32.mrf.mxu0
    %v3263 = vpop.f32.mrf.mxu0
    %v3264 = vadd.f32 %v3176, %v3263
    %v3265 = vpop.f32.mrf.mxu0
    %3266 = vmatprep.mubr.bf16.mxu0 0
    %3267 = vmatmul.mubr.bf16.gmra.mxu0 %v537
    %v3268 = vpop.f32.mrf.mxu0
    %v3269 = vadd.f32 %v3176, %v3268
    %v3270 = vpop.f32.mrf.mxu0
    %v3271 = vpop.f32.mrf.mxu0
    %v3272 = vadd.f32 %v3176, %v3271
    %v3273 = vpop.f32.mrf.mxu0
    %3274 = vdwg.mxu0
    %s3275 = scalar_lea.vmem %s11, 192
    %v3276 = vld [vmem:[%s3275] sm:$0xf]
    %v3277 = vld [vmem:[%s3275 + $0x4] sm:$0xf]
    %v3278 = vld [vmem:[%s3275 + $0x8] sm:$0xf]
    %v3279 = vld [vmem:[%s3275 + $0xc] sm:$0xf]
    %v3280 = vld [vmem:[%s3275 + $0x10] sm:$0xf]
    %v3281 = vld [vmem:[%s3275 + $0x14] sm:$0xf]
    %v3282 = vld [vmem:[%s3275 + $0x18] sm:$0xf]
    %v3283 = vld [vmem:[%s3275 + $0x1c] sm:$0xf]
    %v3284 = vld [vmem:[%s3275 + $0x20] sm:$0xf]
    %v3285 = vld [vmem:[%s3275 + $0x24] sm:$0xf]
    %v3286 = vld [vmem:[%s3275 + $0x28] sm:$0xf]
    %v3287 = vld [vmem:[%s3275 + $0x2c] sm:$0xf]
    %v3288 = vld [vmem:[%s3275 + $0x30] sm:$0xf]
    %v3289 = vld [vmem:[%s3275 + $0x34] sm:$0xf]
    %v3290 = vld [vmem:[%s3275 + $0x38] sm:$0xf]
    %v3291 = vld [vmem:[%s3275 + $0x3c] sm:$0xf]
    %s3292 = scalar_lea.vmem %s12, 3
    %v3293 = vld [vmem:[%s3292] sm:$0x1]
    %v3295 = vlaneseq
    %v3296 = vshrl.u32 %v3295, 7
    %v3297 = vsub.s32 0, %v3296
    %v3298 = vrot.slane %v3293, %v3297
    %v3316 = vunpack.c.l.b16 %v3276
    %v3317 = vunpack.c.l.b16 %v3277
    %v3318 = vunpack.c.l.b16 %v3278
    %v3319 = vunpack.c.l.b16 %v3279
    %v3320 = vunpack.c.l.b16 %v3280
    %v3321 = vunpack.c.l.b16 %v3281
    %v3322 = vunpack.c.l.b16 %v3282
    %v3323 = vunpack.c.l.b16 %v3283
    %v3324 = vunpack.c.l.b16 %v3284
    %v3325 = vunpack.c.l.b16 %v3285
    %v3326 = vunpack.c.l.b16 %v3286
    %v3327 = vunpack.c.l.b16 %v3287
    %v3328 = vunpack.c.l.b16 %v3288
    %v3329 = vunpack.c.l.b16 %v3289
    %v3330 = vunpack.c.l.b16 %v3290
    %v3331 = vunpack.c.l.b16 %v3291
    %v3332 = vpack.c.b16 %v3317, %v3316
    %v3333 = vpack.c.b16 %v3319, %v3318
    %v3334 = vpack.c.b16 %v3321, %v3320
    %v3335 = vpack.c.b16 %v3323, %v3322
    %v3336 = vpack.c.b16 %v3325, %v3324
    %v3337 = vpack.c.b16 %v3327, %v3326
    %v3338 = vpack.c.b16 %v3329, %v3328
    %v3339 = vpack.c.b16 %v3331, %v3330
    %3348 = vmatprep.subr.bf16.mxu0 0
    %3349 = vmatpush1.bf16.msra.mxu0 %v3339
    %3350 = vmatprep.subr.bf16.mxu0 0
    %3351 = vmatpush1.bf16.msra.mxu0 %v3338
    %3352 = vmatprep.subr.bf16.mxu0 0
    %3353 = vmatpush1.bf16.msra.mxu0 %v3337
    %3354 = vmatprep.subr.bf16.mxu0 0
    %3355 = vmatpush1.bf16.msra.mxu0 %v3336
    %3356 = vmatprep.subr.bf16.mxu0 0
    %3357 = vmatpush1.bf16.msra.mxu0 %v3335
    %3358 = vmatprep.subr.bf16.mxu0 0
    %3359 = vmatpush1.bf16.msra.mxu0 %v3334
    %3360 = vmatprep.subr.bf16.mxu0 0
    %3361 = vmatpush1.bf16.msra.mxu0 %v3333
    %3362 = vmatprep.subr.bf16.mxu0 0
    %3363 = vmatpush1.bf16.msra.mxu0 %v3332
    %3364 = vmatprep.subr.bf16.mxu0 0
    %3365 = vmatpush2.bf16.msra.mxu0 0
    %3366 = vmatprep.subr.bf16.mxu0 0
    %3367 = vmatpush2.bf16.msra.mxu0 0
    %3368 = vmatprep.subr.bf16.mxu0 0
    %3369 = vmatpush2.bf16.msra.mxu0 0
    %3370 = vmatprep.subr.bf16.mxu0 0
    %3371 = vmatpush2.bf16.msra.mxu0 0
    %3372 = vmatprep.subr.bf16.mxu0 0
    %3373 = vmatpush2.bf16.msra.mxu0 0
    %3374 = vmatprep.subr.bf16.mxu0 0
    %3375 = vmatpush2.bf16.msra.mxu0 0
    %3376 = vmatprep.subr.bf16.mxu0 0
    %3377 = vmatpush2.bf16.msra.mxu0 0
    %3378 = vmatprep.subr.bf16.mxu0 0
    %3379 = vmatpush2.bf16.msra.mxu0 0
    %3380 = vmatprep.mubr.bf16.mxu0 0
    %3381 = vmatmul.mubr.bf16.gmra.mxu0 %v536
    %v3382 = vpop.f32.mrf.mxu0
    %v3383 = vadd.f32 %v3298, %v3382
    %v3384 = vpop.f32.mrf.mxu0
    %v3385 = vpop.f32.mrf.mxu0
    %v3386 = vadd.f32 %v3298, %v3385
    %v3387 = vpop.f32.mrf.mxu0
    %3388 = vmatprep.mubr.bf16.mxu0 0
    %3389 = vmatmul.mubr.bf16.gmra.mxu0 %v537
    %v3390 = vpop.f32.mrf.mxu0
    %v3391 = vadd.f32 %v3298, %v3390
    %v3392 = vpop.f32.mrf.mxu0
    %v3393 = vpop.f32.mrf.mxu0
    %v3394 = vadd.f32 %v3298, %v3393
    %v3395 = vpop.f32.mrf.mxu0
    %3396 = vdwg.mxu0
    %v3398 = vsel %vm898, %v3139, 0
    %v3401 = vsel %vm898, %v3142, 0
    %v3404 = vsel %vm898, %v3261, 0
    %v3407 = vsel %vm898, %v3264, 0
    %3409 = vmatprep.subr.mxu0 0.0
    %3410 = vmatpush1.xpose.msra.mxu0 0.0
    %3411 = vmatprep.subr.mxu0 0.0
    %3412 = vmatpush1.xpose.msra.mxu0 0.0
    %3413 = vmatprep.subr.mxu0 0.0
    %3414 = vmatpush1.xpose.msra.mxu0 0.0
    %3415 = vmatprep.subr.mxu0 0.0
    %3416 = vmatpush1.xpose.msra.mxu0 0.0
    %3417 = vmatprep.subr.mxu0 0.0
    %3418 = vmatpush1.xpose.msra.mxu0 0.0
    %3419 = vmatprep.subr.mxu0 0.0
    %3420 = vmatpush1.xpose.msra.mxu0 0.0
    %3421 = vmatprep.subr.mxu0 0.0
    %3422 = vmatpush1.xpose.msra.mxu0 0.0
    %3423 = vmatprep.subr.mxu0 0.0
    %3424 = vmatpush1.xpose.msra.mxu0 0.0
    %3425 = vmatprep.subr.mxu0 0.0
    %3426 = vmatpush1.xpose.msra.mxu0 0.0
    %3427 = vmatprep.subr.mxu0 0.0
    %3428 = vmatpush1.xpose.msra.mxu0 0.0
    %3429 = vmatprep.subr.mxu0 0.0
    %3430 = vmatpush1.xpose.msra.mxu0 0.0
    %3431 = vmatprep.subr.mxu0 0.0
    %3432 = vmatpush1.xpose.msra.mxu0 0.0
    %3433 = vmatprep.subr.mxu0 0.0
    %3434 = vmatpush1.xpose.msra.mxu0 0.0
    %3435 = vmatprep.subr.mxu0 0.0
    %3436 = vmatpush1.xpose.msra.mxu0 0.0
    %3437 = vmatprep.subr.mxu0 0.0
    %3438 = vmatpush1.xpose.msra.mxu0 %v3407
    %3439 = vmatprep.subr.mxu0 0.0
    %3440 = vmatpush1.xpose.msra.mxu0 %v3404
    %3441 = vmatprep.subr.mxu0 0.0
    %3442 = vmatpush2.xpose.msra.mxu0 0.0
    %3443 = vmatprep.subr.mxu0 0.0
    %3444 = vmatpush2.xpose.msra.mxu0 0.0
    %3445 = vmatprep.subr.mxu0 0.0
    %3446 = vmatpush2.xpose.msra.mxu0 0.0
    %3447 = vmatprep.subr.mxu0 0.0
    %3448 = vmatpush2.xpose.msra.mxu0 0.0
    %3449 = vmatprep.subr.mxu0 0.0
    %3450 = vmatpush2.xpose.msra.mxu0 0.0
    %3451 = vmatprep.subr.mxu0 0.0
    %3452 = vmatpush2.xpose.msra.mxu0 0.0
    %3453 = vmatprep.subr.mxu0 0.0
    %3454 = vmatpush2.xpose.msra.mxu0 0.0
    %3455 = vmatprep.subr.mxu0 0.0
    %3456 = vmatpush2.xpose.msra.mxu0 0.0
    %3457 = vmatprep.subr.mxu0 0.0
    %3458 = vmatpush2.xpose.msra.mxu0 0.0
    %3459 = vmatprep.subr.mxu0 0.0
    %3460 = vmatpush2.xpose.msra.mxu0 0.0
    %3461 = vmatprep.subr.mxu0 0.0
    %3462 = vmatpush2.xpose.msra.mxu0 0.0
    %3463 = vmatprep.subr.mxu0 0.0
    %3464 = vmatpush2.xpose.msra.mxu0 0.0
    %3465 = vmatprep.subr.mxu0 0.0
    %3466 = vmatpush2.xpose.msra.mxu0 0.0
    %3467 = vmatprep.subr.mxu0 0.0
    %3468 = vmatpush2.xpose.msra.mxu0 0.0
    %3469 = vmatprep.subr.mxu0 0.0
    %3470 = vmatpush2.xpose.msra.mxu0 0.0
    %3471 = vmatprep.subr.mxu0 0.0
    %3472 = vmatpush2.xpose.msra.mxu0 0.0
    %3473 = vmatprep.mubr.f32.mxu0 0.0
    %3474 = vmatmul.mubr.f32.gmra.mxu0 %v3398
    %v3475 = vpop.f32.mrf.mxu0
    %v3476 = vadd.f32 0.0, %v3475
    %v3477 = vpop.f32.mrf.mxu0
    %3478 = vmatprep.mubr.f32.mxu0 0.0
    %3479 = vmatmul.mubr.f32.gmra.mxu0 %v3401
    %v3480 = vpop.f32.mrf.mxu0
    %v3481 = vadd.f32 0.0, %v3480
    %v3482 = vpop.f32.mrf.mxu0
    %3483 = vdwg.mxu0
    %v3485 = vsel %vm898, %v3147, 0
    %v3488 = vsel %vm898, %v3150, 0
    %v3491 = vsel %vm898, %v3269, 0
    %v3494 = vsel %vm898, %v3272, 0
    %3496 = vmatprep.subr.mxu0 0.0
    %3497 = vmatpush1.xpose.msra.mxu0 0.0
    %3498 = vmatprep.subr.mxu0 0.0
    %3499 = vmatpush1.xpose.msra.mxu0 0.0
    %3500 = vmatprep.subr.mxu0 0.0
    %3501 = vmatpush1.xpose.msra.mxu0 0.0
    %3502 = vmatprep.subr.mxu0 0.0
    %3503 = vmatpush1.xpose.msra.mxu0 0.0
    %3504 = vmatprep.subr.mxu0 0.0
    %3505 = vmatpush1.xpose.msra.mxu0 0.0
    %3506 = vmatprep.subr.mxu0 0.0
    %3507 = vmatpush1.xpose.msra.mxu0 0.0
    %3508 = vmatprep.subr.mxu0 0.0
    %3509 = vmatpush1.xpose.msra.mxu0 0.0
    %3510 = vmatprep.subr.mxu0 0.0
    %3511 = vmatpush1.xpose.msra.mxu0 0.0
    %3512 = vmatprep.subr.mxu0 0.0
    %3513 = vmatpush1.xpose.msra.mxu0 0.0
    %3514 = vmatprep.subr.mxu0 0.0
    %3515 = vmatpush1.xpose.msra.mxu0 0.0
    %3516 = vmatprep.subr.mxu0 0.0
    %3517 = vmatpush1.xpose.msra.mxu0 0.0
    %3518 = vmatprep.subr.mxu0 0.0
    %3519 = vmatpush1.xpose.msra.mxu0 0.0
    %3520 = vmatprep.subr.mxu0 0.0
    %3521 = vmatpush1.xpose.msra.mxu0 0.0
    %3522 = vmatprep.subr.mxu0 0.0
    %3523 = vmatpush1.xpose.msra.mxu0 0.0
    %3524 = vmatprep.subr.mxu0 0.0
    %3525 = vmatpush1.xpose.msra.mxu0 %v3494
    %3526 = vmatprep.subr.mxu0 0.0
    %3527 = vmatpush1.xpose.msra.mxu0 %v3491
    %3528 = vmatprep.subr.mxu0 0.0
    %3529 = vmatpush2.xpose.msra.mxu0 0.0
    %3530 = vmatprep.subr.mxu0 0.0
    %3531 = vmatpush2.xpose.msra.mxu0 0.0
    %3532 = vmatprep.subr.mxu0 0.0
    %3533 = vmatpush2.xpose.msra.mxu0 0.0
    %3534 = vmatprep.subr.mxu0 0.0
    %3535 = vmatpush2.xpose.msra.mxu0 0.0
    %3536 = vmatprep.subr.mxu0 0.0
    %3537 = vmatpush2.xpose.msra.mxu0 0.0
    %3538 = vmatprep.subr.mxu0 0.0
    %3539 = vmatpush2.xpose.msra.mxu0 0.0
    %3540 = vmatprep.subr.mxu0 0.0
    %3541 = vmatpush2.xpose.msra.mxu0 0.0
    %3542 = vmatprep.subr.mxu0 0.0
    %3543 = vmatpush2.xpose.msra.mxu0 0.0
    %3544 = vmatprep.subr.mxu0 0.0
    %3545 = vmatpush2.xpose.msra.mxu0 0.0
    %3546 = vmatprep.subr.mxu0 0.0
    %3547 = vmatpush2.xpose.msra.mxu0 0.0
    %3548 = vmatprep.subr.mxu0 0.0
    %3549 = vmatpush2.xpose.msra.mxu0 0.0
    %3550 = vmatprep.subr.mxu0 0.0
    %3551 = vmatpush2.xpose.msra.mxu0 0.0
    %3552 = vmatprep.subr.mxu0 0.0
    %3553 = vmatpush2.xpose.msra.mxu0 0.0
    %3554 = vmatprep.subr.mxu0 0.0
    %3555 = vmatpush2.xpose.msra.mxu0 0.0
    %3556 = vmatprep.subr.mxu0 0.0
    %3557 = vmatpush2.xpose.msra.mxu0 0.0
    %3558 = vmatprep.subr.mxu0 0.0
    %3559 = vmatpush2.xpose.msra.mxu0 0.0
    %3560 = vmatprep.mubr.f32.mxu0 0.0
    %3561 = vmatmul.mubr.f32.gmra.mxu0 %v3485
    %v3562 = vpop.f32.mrf.mxu0
    %v3563 = vadd.f32 0.0, %v3562
    %v3564 = vpop.f32.mrf.mxu0
    %3565 = vmatprep.mubr.f32.mxu0 0.0
    %3566 = vmatmul.mubr.f32.gmra.mxu0 %v3488
    %v3567 = vpop.f32.mrf.mxu0
    %v3568 = vadd.f32 0.0, %v3567
    %v3569 = vpop.f32.mrf.mxu0
    %3570 = vdwg.mxu0
    %v3571 = vmul.f32 %v3476, 0.17677669
    %v3572 = vmul.f32 %v3481, 0.17677669
    %v3573 = vmul.f32 %v3563, 0.17677669
    %v3574 = vmul.f32 %v3568, 0.17677669
    %v3575 = vadd.f32 %v3571, %v1080
    %v3576 = vadd.f32 %v3572, %v1080
    %v3577 = vadd.f32 %v3573, %v1084
    %v3578 = vadd.f32 %v3574, %v1084
    %v3579 = vsel %vm1091, %v3575, -inf
    %3580 = vmax.xlane.f32.xlu0 %v3579
    %v3581 = vpop.xlane.xlu0 %3580
    %v3582 = vsel %vm1091, %v3576, -inf
    %3583 = vmax.xlane.f32.xlu0 %v3582
    %v3584 = vpop.xlane.xlu0 %3583
    %v3585 = vsel %vm1091, %v3577, -inf
    %3586 = vmax.xlane.f32.xlu0 %v3585
    %v3587 = vpop.xlane.xlu0 %3586
    %v3588 = vsel %vm1091, %v3578, -inf
    %3589 = vmax.xlane.f32.xlu0 %v3588
    %v3590 = vpop.xlane.xlu0 %3589
    %v3591 = vsub.f32 %v3575, %v3581
    %v3592 = vsub.f32 %v3576, %v3584
    %v3593 = vsub.f32 %v3577, %v3587
    %v3594 = vsub.f32 %v3578, %v3590
    %v3595 = vmul.f32 %v3591, 1.442695
    %v3596 = vpow.pop %v3595
    %v3597 = vmul.f32 %v3592, 1.442695
    %v3598 = vpow.pop %v3597
    %v3599 = vmul.f32 %v3593, 1.442695
    %v3600 = vpow.pop %v3599
    %v3601 = vmul.f32 %v3594, 1.442695
    %v3602 = vpow.pop %v3601
    %v3603 = vsel %vm1091, %v3596, 0.0
    %3604 = vadd.xlane.f32.xlu0 %v3603
    %v3605 = vpop.xlane.xlu0 %3604
    %v3606 = vsel %vm1091, %v3598, 0.0
    %3607 = vadd.xlane.f32.xlu0 %v3606
    %v3608 = vpop.xlane.xlu0 %3607
    %v3609 = vsel %vm1091, %v3600, 0.0
    %3610 = vadd.xlane.f32.xlu0 %v3609
    %v3611 = vpop.xlane.xlu0 %3610
    %v3612 = vsel %vm1091, %v3602, 0.0
    %3613 = vadd.xlane.f32.xlu0 %v3612
    %v3614 = vpop.xlane.xlu0 %3613
    %v3615 = vrcp.pop %v3605
    %v3616 = vmul.f32 %v3596, %v3615
    %v3617 = vrcp.pop %v3608
    %v3618 = vmul.f32 %v3598, %v3617
    %v3619 = vrcp.pop %v3611
    %v3620 = vmul.f32 %v3600, %v3619
    %v3621 = vrcp.pop %v3614
    %v3622 = vmul.f32 %v3602, %v3621
    %v3624 = vsel %vm1091, %v3616, 0
    %v3627 = vsel %vm1091, %v3618, 0
    %3629 = vmatprep.subr.mxu0 0.0
    %3630 = vmatpush1.msra.mxu0 0.0
    %3631 = vmatprep.subr.mxu0 0.0
    %3632 = vmatpush1.msra.mxu0 0.0
    %3633 = vmatprep.subr.mxu0 0.0
    %3634 = vmatpush1.msra.mxu0 0.0
    %3635 = vmatprep.subr.mxu0 0.0
    %3636 = vmatpush1.msra.mxu0 0.0
    %3637 = vmatprep.subr.mxu0 0.0
    %3638 = vmatpush1.msra.mxu0 0.0
    %3639 = vmatprep.subr.mxu0 0.0
    %3640 = vmatpush1.msra.mxu0 0.0
    %3641 = vmatprep.subr.mxu0 0.0
    %3642 = vmatpush1.msra.mxu0 0.0
    %3643 = vmatprep.subr.mxu0 0.0
    %3644 = vmatpush1.msra.mxu0 0.0
    %3645 = vmatprep.subr.mxu0 0.0
    %3646 = vmatpush1.msra.mxu0 0.0
    %3647 = vmatprep.subr.mxu0 0.0
    %3648 = vmatpush1.msra.mxu0 0.0
    %3649 = vmatprep.subr.mxu0 0.0
    %3650 = vmatpush1.msra.mxu0 0.0
    %3651 = vmatprep.subr.mxu0 0.0
    %3652 = vmatpush1.msra.mxu0 0.0
    %3653 = vmatprep.subr.mxu0 0.0
    %3654 = vmatpush1.msra.mxu0 0.0
    %3655 = vmatprep.subr.mxu0 0.0
    %3656 = vmatpush1.msra.mxu0 0.0
    %3657 = vmatprep.subr.mxu0 0.0
    %3658 = vmatpush1.msra.mxu0 %v3386
    %3659 = vmatprep.subr.mxu0 0.0
    %3660 = vmatpush1.msra.mxu0 %v3383
    %3661 = vmatprep.subr.mxu0 0.0
    %3662 = vmatpush2.msra.mxu0 0.0
    %3663 = vmatprep.subr.mxu0 0.0
    %3664 = vmatpush2.msra.mxu0 0.0
    %3665 = vmatprep.subr.mxu0 0.0
    %3666 = vmatpush2.msra.mxu0 0.0
    %3667 = vmatprep.subr.mxu0 0.0
    %3668 = vmatpush2.msra.mxu0 0.0
    %3669 = vmatprep.subr.mxu0 0.0
    %3670 = vmatpush2.msra.mxu0 0.0
    %3671 = vmatprep.subr.mxu0 0.0
    %3672 = vmatpush2.msra.mxu0 0.0
    %3673 = vmatprep.subr.mxu0 0.0
    %3674 = vmatpush2.msra.mxu0 0.0
    %3675 = vmatprep.subr.mxu0 0.0
    %3676 = vmatpush2.msra.mxu0 0.0
    %3677 = vmatprep.subr.mxu0 0.0
    %3678 = vmatpush2.msra.mxu0 0.0
    %3679 = vmatprep.subr.mxu0 0.0
    %3680 = vmatpush2.msra.mxu0 0.0
    %3681 = vmatprep.subr.mxu0 0.0
    %3682 = vmatpush2.msra.mxu0 0.0
    %3683 = vmatprep.subr.mxu0 0.0
    %3684 = vmatpush2.msra.mxu0 0.0
    %3685 = vmatprep.subr.mxu0 0.0
    %3686 = vmatpush2.msra.mxu0 0.0
    %3687 = vmatprep.subr.mxu0 0.0
    %3688 = vmatpush2.msra.mxu0 0.0
    %3689 = vmatprep.subr.mxu0 0.0
    %3690 = vmatpush2.msra.mxu0 0.0
    %3691 = vmatprep.subr.mxu0 0.0
    %3692 = vmatpush2.msra.mxu0 0.0
    %3693 = vmatprep.mubr.f32.mxu0 0.0
    %3694 = vmatmul.mubr.f32.gmra.mxu0 %v3624
    %v3695 = vpop.f32.mrf.mxu0
    %v3696 = vadd.f32 0.0, %v3695
    %v3697 = vpop.f32.mrf.mxu0
    %3698 = vmatprep.mubr.f32.mxu0 0.0
    %3699 = vmatmul.mubr.f32.gmra.mxu0 %v3627
    %v3700 = vpop.f32.mrf.mxu0
    %v3701 = vadd.f32 0.0, %v3700
    %v3702 = vpop.f32.mrf.mxu0
    %3703 = vdwg.mxu0
    %v3705 = vsel %vm1091, %v3620, 0
    %v3708 = vsel %vm1091, %v3622, 0
    %3710 = vmatprep.subr.mxu0 0.0
    %3711 = vmatpush1.msra.mxu0 0.0
    %3712 = vmatprep.subr.mxu0 0.0
    %3713 = vmatpush1.msra.mxu0 0.0
    %3714 = vmatprep.subr.mxu0 0.0
    %3715 = vmatpush1.msra.mxu0 0.0
    %3716 = vmatprep.subr.mxu0 0.0
    %3717 = vmatpush1.msra.mxu0 0.0
    %3718 = vmatprep.subr.mxu0 0.0
    %3719 = vmatpush1.msra.mxu0 0.0
    %3720 = vmatprep.subr.mxu0 0.0
    %3721 = vmatpush1.msra.mxu0 0.0
    %3722 = vmatprep.subr.mxu0 0.0
    %3723 = vmatpush1.msra.mxu0 0.0
    %3724 = vmatprep.subr.mxu0 0.0
    %3725 = vmatpush1.msra.mxu0 0.0
    %3726 = vmatprep.subr.mxu0 0.0
    %3727 = vmatpush1.msra.mxu0 0.0
    %3728 = vmatprep.subr.mxu0 0.0
    %3729 = vmatpush1.msra.mxu0 0.0
    %3730 = vmatprep.subr.mxu0 0.0
    %3731 = vmatpush1.msra.mxu0 0.0
    %3732 = vmatprep.subr.mxu0 0.0
    %3733 = vmatpush1.msra.mxu0 0.0
    %3734 = vmatprep.subr.mxu0 0.0
    %3735 = vmatpush1.msra.mxu0 0.0
    %3736 = vmatprep.subr.mxu0 0.0
    %3737 = vmatpush1.msra.mxu0 0.0
    %3738 = vmatprep.subr.mxu0 0.0
    %3739 = vmatpush1.msra.mxu0 %v3394
    %3740 = vmatprep.subr.mxu0 0.0
    %3741 = vmatpush1.msra.mxu0 %v3391
    %3742 = vmatprep.subr.mxu0 0.0
    %3743 = vmatpush2.msra.mxu0 0.0
    %3744 = vmatprep.subr.mxu0 0.0
    %3745 = vmatpush2.msra.mxu0 0.0
    %3746 = vmatprep.subr.mxu0 0.0
    %3747 = vmatpush2.msra.mxu0 0.0
    %3748 = vmatprep.subr.mxu0 0.0
    %3749 = vmatpush2.msra.mxu0 0.0
    %3750 = vmatprep.subr.mxu0 0.0
    %3751 = vmatpush2.msra.mxu0 0.0
    %3752 = vmatprep.subr.mxu0 0.0
    %3753 = vmatpush2.msra.mxu0 0.0
    %3754 = vmatprep.subr.mxu0 0.0
    %3755 = vmatpush2.msra.mxu0 0.0
    %3756 = vmatprep.subr.mxu0 0.0
    %3757 = vmatpush2.msra.mxu0 0.0
    %3758 = vmatprep.subr.mxu0 0.0
    %3759 = vmatpush2.msra.mxu0 0.0
    %3760 = vmatprep.subr.mxu0 0.0
    %3761 = vmatpush2.msra.mxu0 0.0
    %3762 = vmatprep.subr.mxu0 0.0
    %3763 = vmatpush2.msra.mxu0 0.0
    %3764 = vmatprep.subr.mxu0 0.0
    %3765 = vmatpush2.msra.mxu0 0.0
    %3766 = vmatprep.subr.mxu0 0.0
    %3767 = vmatpush2.msra.mxu0 0.0
    %3768 = vmatprep.subr.mxu0 0.0
    %3769 = vmatpush2.msra.mxu0 0.0
    %3770 = vmatprep.subr.mxu0 0.0
    %3771 = vmatpush2.msra.mxu0 0.0
    %3772 = vmatprep.subr.mxu0 0.0
    %3773 = vmatpush2.msra.mxu0 0.0
    %3774 = vmatprep.mubr.f32.mxu0 0.0
    %3775 = vmatmul.mubr.f32.gmra.mxu0 %v3705
    %v3776 = vpop.f32.mrf.mxu0
    %v3777 = vadd.f32 0.0, %v3776
    %v3778 = vpop.f32.mrf.mxu0
    %3779 = vmatprep.mubr.f32.mxu0 0.0
    %3780 = vmatmul.mubr.f32.gmra.mxu0 %v3708
    %v3781 = vpop.f32.mrf.mxu0
    %v3782 = vadd.f32 0.0, %v3781
    %v3783 = vpop.f32.mrf.mxu0
    %3784 = vdwg.mxu0
    %v3785 = vpack.c.bf16 %v3701, %v3696
    %v3786 = vpack.c.bf16 %v3782, %v3777
    %s3787 = scalar_lea.vmem %s13, 48
    %v3788 = vld [vmem:[%s3787] sm:$0xf]
    %v3789 = vld [vmem:[%s3787 + $0x4] sm:$0xf]
    %v3790 = vld [vmem:[%s3787 + $0x8] sm:$0xf]
    %v3791 = vld [vmem:[%s3787 + $0xc] sm:$0xf]
    %v3796 = vunpack.c.l.b16 %v3788
    %v3797 = vunpack.c.l.b16 %v3789
    %v3798 = vunpack.c.l.b16 %v3790
    %v3799 = vunpack.c.l.b16 %v3791
    %v3800 = vpack.c.b16 %v3797, %v3796
    %v3801 = vpack.c.b16 %v3799, %v3798
    %v3805 = vsel %vm898, %v3785, 0
    %v3808 = vsel %vm898, %v3786, 0
    %3810 = vmatprep.subr.bf16.mxu0 0
    %3811 = vmatpush1.bf16.msra.mxu0 0
    %3812 = vmatprep.subr.bf16.mxu0 0
    %3813 = vmatpush1.bf16.msra.mxu0 0
    %3814 = vmatprep.subr.bf16.mxu0 0
    %3815 = vmatpush1.bf16.msra.mxu0 0
    %3816 = vmatprep.subr.bf16.mxu0 0
    %3817 = vmatpush1.bf16.msra.mxu0 0
    %3818 = vmatprep.subr.bf16.mxu0 0
    %3819 = vmatpush1.bf16.msra.mxu0 0
    %3820 = vmatprep.subr.bf16.mxu0 0
    %3821 = vmatpush1.bf16.msra.mxu0 0
    %3822 = vmatprep.subr.bf16.mxu0 0
    %3823 = vmatpush1.bf16.msra.mxu0 %v3801
    %3824 = vmatprep.subr.bf16.mxu0 0
    %3825 = vmatpush1.bf16.msra.mxu0 %v3800
    %3826 = vmatprep.subr.bf16.mxu0 0
    %3827 = vmatpush2.bf16.msra.mxu0 0
    %3828 = vmatprep.subr.bf16.mxu0 0
    %3829 = vmatpush2.bf16.msra.mxu0 0
    %3830 = vmatprep.subr.bf16.mxu0 0
    %3831 = vmatpush2.bf16.msra.mxu0 0
    %3832 = vmatprep.subr.bf16.mxu0 0
    %3833 = vmatpush2.bf16.msra.mxu0 0
    %3834 = vmatprep.subr.bf16.mxu0 0
    %3835 = vmatpush2.bf16.msra.mxu0 0
    %3836 = vmatprep.subr.bf16.mxu0 0
    %3837 = vmatpush2.bf16.msra.mxu0 0
    %3838 = vmatprep.subr.bf16.mxu0 0
    %3839 = vmatpush2.bf16.msra.mxu0 0
    %3840 = vmatprep.subr.bf16.mxu0 0
    %3841 = vmatpush2.bf16.msra.mxu0 0
    %3842 = vmatprep.mubr.bf16.mxu0 0
    %3843 = vmatmul.mubr.bf16.gmra.mxu0 %v3805
    %v3844 = vpop.f32.mrf.mxu0
    %v3845 = vadd.f32 0.0, %v3844
    %v3846 = vpop.f32.mrf.mxu0
    %v3847 = vpop.f32.mrf.mxu0
    %v3848 = vadd.f32 0.0, %v3847
    %v3849 = vpop.f32.mrf.mxu0
    %3850 = vmatprep.mubr.bf16.mxu0 0
    %3851 = vmatmul.mubr.bf16.gmra.mxu0 %v3808
    %v3852 = vpop.f32.mrf.mxu0
    %v3853 = vadd.f32 0.0, %v3852
    %v3854 = vpop.f32.mrf.mxu0
    %v3855 = vpop.f32.mrf.mxu0
    %v3856 = vadd.f32 0.0, %v3855
    %v3857 = vpop.f32.mrf.mxu0
    %3858 = vdwg.mxu0
    %v3859 = vadd.f32 %v3027, %v3845
    %v3860 = vadd.f32 %v3028, %v3848
    %v3861 = vadd.f32 %v3029, %v3853
    %v3862 = vadd.f32 %v3030, %v3856
    %v3863 = vld [vmem:[%s14] sm:$0x1]
    %v3865 = vlaneseq
    %v3866 = vshrl.u32 %v3865, 7
    %v3867 = vsub.s32 0, %v3866
    %v3868 = vrot.slane %v3863, %v3867
    %v3870 = vadd.f32 %v3859, %v3868
    %v3871 = vadd.f32 %v3860, %v3868
    %v3872 = vadd.f32 %v3861, %v3868
    %v3873 = vadd.f32 %v3862, %v3868
    %v3874 = vadd.f32 %v507, %v3870
    %v3875 = vadd.f32 %v508, %v3871
    %v3876 = vadd.f32 %v509, %v3872
    %v3877 = vadd.f32 %v510, %v3873
    %v3878 = vld [vmem:[%s15] sm:$0x1]
    %v3879 = vld [vmem:[%s16] sm:$0x1]
    %3880 = vadd.xlane.f32.xlu0 %v3874
    %v3881 = vpop.xlane.xlu0 %3880
    %3882 = vadd.xlane.f32.xlu0 %v3875
    %v3883 = vpop.xlane.xlu0 %3882
    %3884 = vadd.xlane.f32.xlu0 %v3876
    %v3885 = vpop.xlane.xlu0 %3884
    %3886 = vadd.xlane.f32.xlu0 %v3877
    %v3887 = vpop.xlane.xlu0 %3886
    %v3888 = vmul.f32 %v3881, %v454
    %v3889 = vmul.f32 %v3883, %v454
    %v3890 = vmul.f32 %v3885, %v454
    %v3891 = vmul.f32 %v3887, %v454
    %v3892 = vsub.f32 %v3874, %v3888
    %v3893 = vsub.f32 %v3875, %v3889
    %v3894 = vsub.f32 %v3876, %v3890
    %v3895 = vsub.f32 %v3877, %v3891
    %v3896 = vmul.f32 %v3892, %v3892
    %v3897 = vmul.f32 %v3893, %v3893
    %v3898 = vmul.f32 %v3894, %v3894
    %v3899 = vmul.f32 %v3895, %v3895
    %3900 = vadd.xlane.f32.xlu0 %v3896
    %v3901 = vpop.xlane.xlu0 %3900
    %3902 = vadd.xlane.f32.xlu0 %v3897
    %v3903 = vpop.xlane.xlu0 %3902
    %3904 = vadd.xlane.f32.xlu0 %v3898
    %v3905 = vpop.xlane.xlu0 %3904
    %3906 = vadd.xlane.f32.xlu0 %v3899
    %v3907 = vpop.xlane.xlu0 %3906
    %v3908 = vmul.f32 %v3901, %v454
    %v3909 = vmul.f32 %v3903, %v454
    %v3910 = vmul.f32 %v3905, %v454
    %v3911 = vmul.f32 %v3907, %v454
    %v3912 = vadd.f32 %v3908, 1e-12
    %v3913 = vadd.f32 %v3909, 1e-12
    %v3914 = vadd.f32 %v3910, 1e-12
    %v3915 = vadd.f32 %v3911, 1e-12
    %v3916 = vrsqrt.pop %v3912
    %v3917 = vrsqrt.pop %v3913
    %v3918 = vrsqrt.pop %v3914
    %v3919 = vrsqrt.pop %v3915
    %v3920 = vmul.f32 %v3892, %v3916
    %v3921 = vmul.f32 %v3893, %v3917
    %v3922 = vmul.f32 %v3894, %v3918
    %v3923 = vmul.f32 %v3895, %v3919
    %v3925 = vlaneseq
    %v3926 = vshrl.u32 %v3925, 7
    %v3927 = vsub.s32 0, %v3926
    %v3928 = vrot.slane %v3878, %v3927
    %v3930 = vmul.f32 %v3920, %v3928
    %v3931 = vmul.f32 %v3921, %v3928
    %v3932 = vmul.f32 %v3922, %v3928
    %v3933 = vmul.f32 %v3923, %v3928
    %v3935 = vlaneseq
    %v3936 = vshrl.u32 %v3935, 7
    %v3937 = vsub.s32 0, %v3936
    %v3938 = vrot.slane %v3879, %v3937
    %v3940 = vadd.f32 %v3930, %v3938
    %v3941 = vadd.f32 %v3931, %v3938
    %v3942 = vadd.f32 %v3932, %v3938
    %v3943 = vadd.f32 %v3933, %v3938
    %v3944 = vpack.c.bf16 %v3941, %v3940
    %v3945 = vpack.c.bf16 %v3943, %v3942
    %v3946 = vld [vmem:[%s17] sm:$0xff]
    %v3947 = vld [vmem:[%s17 + $0x8] sm:$0xff]
    %v3948 = vld [vmem:[%s17 + $0x10] sm:$0xff]
    %v3949 = vld [vmem:[%s17 + $0x18] sm:$0xff]
    %v3950 = vld [vmem:[%s17 + $0x20] sm:$0xff]
    %v3951 = vld [vmem:[%s17 + $0x28] sm:$0xff]
    %v3952 = vld [vmem:[%s17 + $0x30] sm:$0xff]
    %v3953 = vld [vmem:[%s17 + $0x38] sm:$0xff]
    %v3954 = vld [vmem:[%s17 + $0x40] sm:$0xff]
    %v3955 = vld [vmem:[%s17 + $0x48] sm:$0xff]
    %v3956 = vld [vmem:[%s17 + $0x50] sm:$0xff]
    %v3957 = vld [vmem:[%s17 + $0x58] sm:$0xff]
    %v3958 = vld [vmem:[%s17 + $0x60] sm:$0xff]
    %v3959 = vld [vmem:[%s17 + $0x68] sm:$0xff]
    %v3960 = vld [vmem:[%s17 + $0x70] sm:$0xff]
    %v3961 = vld [vmem:[%s17 + $0x78] sm:$0xff]
    %v3962 = vld [vmem:[%s18] sm:$0x3]
    %v3964 = vlaneseq
    %v3965 = vshrl.u32 %v3964, 7
    %v3966 = vsub.s32 0, %v3965
    %v3967 = vrot.slane %v3962, %v3966
    %v3968 = vlaneseq
    %v3969 = vshrl.u32 %v3968, 7
    %v3970 = vsub.s32 1, %v3969
    %v3971 = vrot.slane %v3962, %v3970
    %v3990 = vunpack.c.l.b16 %v3946
    %v3991 = vunpack.c.h.b16 %v3946
    %v3992 = vunpack.c.l.b16 %v3947
    %v3993 = vunpack.c.h.b16 %v3947
    %v3994 = vunpack.c.l.b16 %v3948
    %v3995 = vunpack.c.h.b16 %v3948
    %v3996 = vunpack.c.l.b16 %v3949
    %v3997 = vunpack.c.h.b16 %v3949
    %v3998 = vunpack.c.l.b16 %v3950
    %v3999 = vunpack.c.h.b16 %v3950
    %v4000 = vunpack.c.l.b16 %v3951
    %v4001 = vunpack.c.h.b16 %v3951
    %v4002 = vunpack.c.l.b16 %v3952
    %v4003 = vunpack.c.h.b16 %v3952
    %v4004 = vunpack.c.l.b16 %v3953
    %v4005 = vunpack.c.h.b16 %v3953
    %v4006 = vunpack.c.l.b16 %v3954
    %v4007 = vunpack.c.h.b16 %v3954
    %v4008 = vunpack.c.l.b16 %v3955
    %v4009 = vunpack.c.h.b16 %v3955
    %v4010 = vunpack.c.l.b16 %v3956
    %v4011 = vunpack.c.h.b16 %v3956
    %v4012 = vunpack.c.l.b16 %v3957
    %v4013 = vunpack.c.h.b16 %v3957
    %v4014 = vunpack.c.l.b16 %v3958
    %v4015 = vunpack.c.h.b16 %v3958
    %v4016 = vunpack.c.l.b16 %v3959
    %v4017 = vunpack.c.h.b16 %v3959
    %v4018 = vunpack.c.l.b16 %v3960
    %v4019 = vunpack.c.h.b16 %v3960
    %v4020 = vunpack.c.l.b16 %v3961
    %v4021 = vunpack.c.h.b16 %v3961
    %v4022 = vpack.c.b16 %v3992, %v3990
    %v4023 = vpack.c.b16 %v3993, %v3991
    %v4024 = vpack.c.b16 %v3996, %v3994
    %v4025 = vpack.c.b16 %v3997, %v3995
    %v4026 = vpack.c.b16 %v4000, %v3998
    %v4027 = vpack.c.b16 %v4001, %v3999
    %v4028 = vpack.c.b16 %v4004, %v4002
    %v4029 = vpack.c.b16 %v4005, %v4003
    %v4030 = vpack.c.b16 %v4008, %v4006
    %v4031 = vpack.c.b16 %v4009, %v4007
    %v4032 = vpack.c.b16 %v4012, %v4010
    %v4033 = vpack.c.b16 %v4013, %v4011
    %v4034 = vpack.c.b16 %v4016, %v4014
    %v4035 = vpack.c.b16 %v4017, %v4015
    %v4036 = vpack.c.b16 %v4020, %v4018
    %v4037 = vpack.c.b16 %v4021, %v4019
    %4054 = vmatprep.subr.bf16.mxu0 %v4037
    %4055 = vmatpush1.bf16.msra.mxu0 %v4036
    %4056 = vmatprep.subr.bf16.mxu0 %v4035
    %4057 = vmatpush1.bf16.msra.mxu0 %v4034
    %4058 = vmatprep.subr.bf16.mxu0 %v4033
    %4059 = vmatpush1.bf16.msra.mxu0 %v4032
    %4060 = vmatprep.subr.bf16.mxu0 %v4031
    %4061 = vmatpush1.bf16.msra.mxu0 %v4030
    %4062 = vmatprep.subr.bf16.mxu0 %v4029
    %4063 = vmatpush1.bf16.msra.mxu0 %v4028
    %4064 = vmatprep.subr.bf16.mxu0 %v4027
    %4065 = vmatpush1.bf16.msra.mxu0 %v4026
    %4066 = vmatprep.subr.bf16.mxu0 %v4025
    %4067 = vmatpush1.bf16.msra.mxu0 %v4024
    %4068 = vmatprep.subr.bf16.mxu0 %v4023
    %4069 = vmatpush1.bf16.msra.mxu0 %v4022
    %4070 = vmatprep.subr.bf16.mxu0 0
    %4071 = vmatpush2.bf16.msra.mxu0 0
    %4072 = vmatprep.subr.bf16.mxu0 0
    %4073 = vmatpush2.bf16.msra.mxu0 0
    %4074 = vmatprep.subr.bf16.mxu0 0
    %4075 = vmatpush2.bf16.msra.mxu0 0
    %4076 = vmatprep.subr.bf16.mxu0 0
    %4077 = vmatpush2.bf16.msra.mxu0 0
    %4078 = vmatprep.subr.bf16.mxu0 0
    %4079 = vmatpush2.bf16.msra.mxu0 0
    %4080 = vmatprep.subr.bf16.mxu0 0
    %4081 = vmatpush2.bf16.msra.mxu0 0
    %4082 = vmatprep.subr.bf16.mxu0 0
    %4083 = vmatpush2.bf16.msra.mxu0 0
    %4084 = vmatprep.subr.bf16.mxu0 0
    %4085 = vmatpush2.bf16.msra.mxu0 0
    %4086 = vmatprep.mubr.bf16.mxu0 0
    %4087 = vmatmul.mubr.bf16.gmra.mxu0 %v3944
    %v4088 = vpop.f32.mrf.mxu0
    %v4089 = vadd.f32 %v3967, %v4088
    %v4090 = vpop.f32.mrf.mxu0
    %v4091 = vadd.f32 %v3971, %v4090
    %v4092 = vpop.f32.mrf.mxu0
    %v4093 = vadd.f32 %v3967, %v4092
    %v4094 = vpop.f32.mrf.mxu0
    %v4095 = vadd.f32 %v3971, %v4094
    %4096 = vmatprep.mubr.bf16.mxu0 0
    %4097 = vmatmul.mubr.bf16.gmra.mxu0 %v3945
    %v4098 = vpop.f32.mrf.mxu0
    %v4099 = vadd.f32 %v3967, %v4098
    %v4100 = vpop.f32.mrf.mxu0
    %v4101 = vadd.f32 %v3971, %v4100
    %v4102 = vpop.f32.mrf.mxu0
    %v4103 = vadd.f32 %v3967, %v4102
    %v4104 = vpop.f32.mrf.mxu0
    %v4105 = vadd.f32 %v3971, %v4104
    %4106 = vdwg.mxu0
    %v4107 = vmul.f32 %v4089, 0.5
    %v4108 = vmul.f32 %v4091, 0.5
    %v4109 = vmul.f32 %v4093, 0.5
    %v4110 = vmul.f32 %v4095, 0.5
    %v4111 = vmul.f32 %v4099, 0.5
    %v4112 = vmul.f32 %v4101, 0.5
    %v4113 = vmul.f32 %v4103, 0.5
    %v4114 = vmul.f32 %v4105, 0.5
    %v4115 = vmul.f32 %v4089, 0.044715
    %v4116 = vmul.f32 %v4091, 0.044715
    %v4117 = vmul.f32 %v4093, 0.044715
    %v4118 = vmul.f32 %v4095, 0.044715
    %v4119 = vmul.f32 %v4099, 0.044715
    %v4120 = vmul.f32 %v4101, 0.044715
    %v4121 = vmul.f32 %v4103, 0.044715
    %v4122 = vmul.f32 %v4105, 0.044715
    %v4123 = vmul.f32 %v4115, %v4089
    %v4124 = vmul.f32 %v4116, %v4091
    %v4125 = vmul.f32 %v4117, %v4093
    %v4126 = vmul.f32 %v4118, %v4095
    %v4127 = vmul.f32 %v4119, %v4099
    %v4128 = vmul.f32 %v4120, %v4101
    %v4129 = vmul.f32 %v4121, %v4103
    %v4130 = vmul.f32 %v4122, %v4105
    %v4131 = vmul.f32 %v4123, %v4089
    %v4132 = vmul.f32 %v4124, %v4091
    %v4133 = vmul.f32 %v4125, %v4093
    %v4134 = vmul.f32 %v4126, %v4095
    %v4135 = vmul.f32 %v4127, %v4099
    %v4136 = vmul.f32 %v4128, %v4101
    %v4137 = vmul.f32 %v4129, %v4103
    %v4138 = vmul.f32 %v4130, %v4105
    %v4139 = vadd.f32 %v4089, %v4131
    %v4140 = vadd.f32 %v4091, %v4132
    %v4141 = vadd.f32 %v4093, %v4133
    %v4142 = vadd.f32 %v4095, %v4134
    %v4143 = vadd.f32 %v4099, %v4135
    %v4144 = vadd.f32 %v4101, %v4136
    %v4145 = vadd.f32 %v4103, %v4137
    %v4146 = vadd.f32 %v4105, %v4138
    %v4147 = vmul.f32 %v4139, 0.7978846
    %v4148 = vmul.f32 %v4140, 0.7978846
    %v4149 = vmul.f32 %v4141, 0.7978846
    %v4150 = vmul.f32 %v4142, 0.7978846
    %v4151 = vmul.f32 %v4143, 0.7978846
    %v4152 = vmul.f32 %v4144, 0.7978846
    %v4153 = vmul.f32 %v4145, 0.7978846
    %v4154 = vmul.f32 %v4146, 0.7978846
    %v4155 = vtanh.pop %v4147
    %v4156 = vtanh.pop %v4148
    %v4157 = vtanh.pop %v4149
    %v4158 = vtanh.pop %v4150
    %v4159 = vtanh.pop %v4151
    %v4160 = vtanh.pop %v4152
    %v4161 = vtanh.pop %v4153
    %v4162 = vtanh.pop %v4154
    %v4163 = vadd.f32 %v4155, 1.0
    %v4164 = vadd.f32 %v4156, 1.0
    %v4165 = vadd.f32 %v4157, 1.0
    %v4166 = vadd.f32 %v4158, 1.0
    %v4167 = vadd.f32 %v4159, 1.0
    %v4168 = vadd.f32 %v4160, 1.0
    %v4169 = vadd.f32 %v4161, 1.0
    %v4170 = vadd.f32 %v4162, 1.0
    %v4171 = vmul.f32 %v4107, %v4163
    %v4172 = vmul.f32 %v4108, %v4164
    %v4173 = vmul.f32 %v4109, %v4165
    %v4174 = vmul.f32 %v4110, %v4166
    %v4175 = vmul.f32 %v4111, %v4167
    %v4176 = vmul.f32 %v4112, %v4168
    %v4177 = vmul.f32 %v4113, %v4169
    %v4178 = vmul.f32 %v4114, %v4170
    %v4179 = vpack.c.bf16 %v4173, %v4171
    %v4180 = vpack.c.bf16 %v4174, %v4172
    %v4181 = vpack.c.bf16 %v4177, %v4175
    %v4182 = vpack.c.bf16 %v4178, %v4176
    %v4183 = vld [vmem:[%s19] sm:$0xf]
    %v4184 = vld [vmem:[%s19 + $0x4] sm:$0xf]
    %v4185 = vld [vmem:[%s19 + $0x8] sm:$0xf]
    %v4186 = vld [vmem:[%s19 + $0xc] sm:$0xf]
    %v4187 = vld [vmem:[%s19 + $0x10] sm:$0xf]
    %v4188 = vld [vmem:[%s19 + $0x14] sm:$0xf]
    %v4189 = vld [vmem:[%s19 + $0x18] sm:$0xf]
    %v4190 = vld [vmem:[%s19 + $0x1c] sm:$0xf]
    %v4191 = vld [vmem:[%s19 + $0x20] sm:$0xf]
    %v4192 = vld [vmem:[%s19 + $0x24] sm:$0xf]
    %v4193 = vld [vmem:[%s19 + $0x28] sm:$0xf]
    %v4194 = vld [vmem:[%s19 + $0x2c] sm:$0xf]
    %v4195 = vld [vmem:[%s19 + $0x30] sm:$0xf]
    %v4196 = vld [vmem:[%s19 + $0x34] sm:$0xf]
    %v4197 = vld [vmem:[%s19 + $0x38] sm:$0xf]
    %v4198 = vld [vmem:[%s19 + $0x3c] sm:$0xf]
    %v4199 = vld [vmem:[%s19 + $0x40] sm:$0xf]
    %v4200 = vld [vmem:[%s19 + $0x44] sm:$0xf]
    %v4201 = vld [vmem:[%s19 + $0x48] sm:$0xf]
    %v4202 = vld [vmem:[%s19 + $0x4c] sm:$0xf]
    %v4203 = vld [vmem:[%s19 + $0x50] sm:$0xf]
    %v4204 = vld [vmem:[%s19 + $0x54] sm:$0xf]
    %v4205 = vld [vmem:[%s19 + $0x58] sm:$0xf]
    %v4206 = vld [vmem:[%s19 + $0x5c] sm:$0xf]
    %v4207 = vld [vmem:[%s19 + $0x60] sm:$0xf]
    %v4208 = vld [vmem:[%s19 + $0x64] sm:$0xf]
    %v4209 = vld [vmem:[%s19 + $0x68] sm:$0xf]
    %v4210 = vld [vmem:[%s19 + $0x6c] sm:$0xf]
    %v4211 = vld [vmem:[%s19 + $0x70] sm:$0xf]
    %v4212 = vld [vmem:[%s19 + $0x74] sm:$0xf]
    %v4213 = vld [vmem:[%s19 + $0x78] sm:$0xf]
    %v4214 = vld [vmem:[%s19 + $0x7c] sm:$0xf]
    %v4215 = vld [vmem:[%s20] sm:$0x1]
    %v4217 = vlaneseq
    %v4218 = vshrl.u32 %v4217, 7
    %v4219 = vsub.s32 0, %v4218
    %v4220 = vrot.slane %v4215, %v4219
    %v4254 = vunpack.c.l.b16 %v4183
    %v4255 = vunpack.c.l.b16 %v4184
    %v4256 = vunpack.c.l.b16 %v4185
    %v4257 = vunpack.c.l.b16 %v4186
    %v4258 = vunpack.c.l.b16 %v4187
    %v4259 = vunpack.c.l.b16 %v4188
    %v4260 = vunpack.c.l.b16 %v4189
    %v4261 = vunpack.c.l.b16 %v4190
    %v4262 = vunpack.c.l.b16 %v4191
    %v4263 = vunpack.c.l.b16 %v4192
    %v4264 = vunpack.c.l.b16 %v4193
    %v4265 = vunpack.c.l.b16 %v4194
    %v4266 = vunpack.c.l.b16 %v4195
    %v4267 = vunpack.c.l.b16 %v4196
    %v4268 = vunpack.c.l.b16 %v4197
    %v4269 = vunpack.c.l.b16 %v4198
    %v4270 = vunpack.c.l.b16 %v4199
    %v4271 = vunpack.c.l.b16 %v4200
    %v4272 = vunpack.c.l.b16 %v4201
    %v4273 = vunpack.c.l.b16 %v4202
    %v4274 = vunpack.c.l.b16 %v4203
    %v4275 = vunpack.c.l.b16 %v4204
    %v4276 = vunpack.c.l.b16 %v4205
    %v4277 = vunpack.c.l.b16 %v4206
    %v4278 = vunpack.c.l.b16 %v4207
    %v4279 = vunpack.c.l.b16 %v4208
    %v4280 = vunpack.c.l.b16 %v4209
    %v4281 = vunpack.c.l.b16 %v4210
    %v4282 = vunpack.c.l.b16 %v4211
    %v4283 = vunpack.c.l.b16 %v4212
    %v4284 = vunpack.c.l.b16 %v4213
    %v4285 = vunpack.c.l.b16 %v4214
    %v4286 = vpack.c.b16 %v4255, %v4254
    %v4287 = vpack.c.b16 %v4257, %v4256
    %v4288 = vpack.c.b16 %v4259, %v4258
    %v4289 = vpack.c.b16 %v4261, %v4260
    %v4290 = vpack.c.b16 %v4263, %v4262
    %v4291 = vpack.c.b16 %v4265, %v4264
    %v4292 = vpack.c.b16 %v4267, %v4266
    %v4293 = vpack.c.b16 %v4269, %v4268
    %v4294 = vpack.c.b16 %v4271, %v4270
    %v4295 = vpack.c.b16 %v4273, %v4272
    %v4296 = vpack.c.b16 %v4275, %v4274
    %v4297 = vpack.c.b16 %v4277, %v4276
    %v4298 = vpack.c.b16 %v4279, %v4278
    %v4299 = vpack.c.b16 %v4281, %v4280
    %v4300 = vpack.c.b16 %v4283, %v4282
    %v4301 = vpack.c.b16 %v4285, %v4284
    %4318 = vmatprep.subr.bf16.mxu0 0
    %4319 = vmatpush1.bf16.msra.mxu0 %v4293
    %4320 = vmatprep.subr.bf16.mxu0 0
    %4321 = vmatpush1.bf16.msra.mxu0 %v4292
    %4322 = vmatprep.subr.bf16.mxu0 0
    %4323 = vmatpush1.bf16.msra.mxu0 %v4291
    %4324 = vmatprep.subr.bf16.mxu0 0
    %4325 = vmatpush1.bf16.msra.mxu0 %v4290
    %4326 = vmatprep.subr.bf16.mxu0 0
    %4327 = vmatpush1.bf16.msra.mxu0 %v4289
    %4328 = vmatprep.subr.bf16.mxu0 0
    %4329 = vmatpush1.bf16.msra.mxu0 %v4288
    %4330 = vmatprep.subr.bf16.mxu0 0
    %4331 = vmatpush1.bf16.msra.mxu0 %v4287
    %4332 = vmatprep.subr.bf16.mxu0 0
    %4333 = vmatpush1.bf16.msra.mxu0 %v4286
    %4334 = vmatprep.subr.bf16.mxu0 0
    %4335 = vmatpush2.bf16.msra.mxu0 %v4301
    %4336 = vmatprep.subr.bf16.mxu0 0
    %4337 = vmatpush2.bf16.msra.mxu0 %v4300
    %4338 = vmatprep.subr.bf16.mxu0 0
    %4339 = vmatpush2.bf16.msra.mxu0 %v4299
    %4340 = vmatprep.subr.bf16.mxu0 0
    %4341 = vmatpush2.bf16.msra.mxu0 %v4298
    %4342 = vmatprep.subr.bf16.mxu0 0
    %4343 = vmatpush2.bf16.msra.mxu0 %v4297
    %4344 = vmatprep.subr.bf16.mxu0 0
    %4345 = vmatpush2.bf16.msra.mxu0 %v4296
    %4346 = vmatprep.subr.bf16.mxu0 0
    %4347 = vmatpush2.bf16.msra.mxu0 %v4295
    %4348 = vmatprep.subr.bf16.mxu0 0
    %4349 = vmatpush2.bf16.msra.mxu0 %v4294
    %4350 = vmatprep.mubr.bf16.mxu0 %v4180
    %4351 = vmatmul.mubr.bf16.gmra.mxu0 %v4179
    %v4352 = vpop.f32.mrf.mxu0
    %v4353 = vadd.f32 %v4220, %v4352
    %v4354 = vpop.f32.mrf.mxu0
    %v4355 = vpop.f32.mrf.mxu0
    %v4356 = vadd.f32 %v4220, %v4355
    %v4357 = vpop.f32.mrf.mxu0
    %4358 = vmatprep.mubr.bf16.mxu0 %v4182
    %4359 = vmatmul.mubr.bf16.gmra.mxu0 %v4181
    %v4360 = vpop.f32.mrf.mxu0
    %v4361 = vadd.f32 %v4220, %v4360
    %v4362 = vpop.f32.mrf.mxu0
    %v4363 = vpop.f32.mrf.mxu0
    %v4364 = vadd.f32 %v4220, %v4363
    %v4365 = vpop.f32.mrf.mxu0
    %4366 = vdwg.mxu0
    %v4367 = vadd.f32 %v3940, %v4353
    %v4368 = vadd.f32 %v3941, %v4356
    %v4369 = vadd.f32 %v3942, %v4361
    %v4370 = vadd.f32 %v3943, %v4364
    %v4371 = vld [vmem:[%s21] sm:$0x1]
    %v4372 = vld [vmem:[%s22] sm:$0x1]
    %4373 = vadd.xlane.f32.xlu0 %v4367
    %v4374 = vpop.xlane.xlu0 %4373
    %4375 = vadd.xlane.f32.xlu0 %v4368
    %v4376 = vpop.xlane.xlu0 %4375
    %4377 = vadd.xlane.f32.xlu0 %v4369
    %v4378 = vpop.xlane.xlu0 %4377
    %4379 = vadd.xlane.f32.xlu0 %v4370
    %v4380 = vpop.xlane.xlu0 %4379
    %v4381 = vmul.f32 %v4374, %v454
    %v4382 = vmul.f32 %v4376, %v454
    %v4383 = vmul.f32 %v4378, %v454
    %v4384 = vmul.f32 %v4380, %v454
    %v4385 = vsub.f32 %v4367, %v4381
    %v4386 = vsub.f32 %v4368, %v4382
    %v4387 = vsub.f32 %v4369, %v4383
    %v4388 = vsub.f32 %v4370, %v4384
    %v4389 = vmul.f32 %v4385, %v4385
    %v4390 = vmul.f32 %v4386, %v4386
    %v4391 = vmul.f32 %v4387, %v4387
    %v4392 = vmul.f32 %v4388, %v4388
    %4393 = vadd.xlane.f32.xlu0 %v4389
    %v4394 = vpop.xlane.xlu0 %4393
    %4395 = vadd.xlane.f32.xlu0 %v4390
    %v4396 = vpop.xlane.xlu0 %4395
    %4397 = vadd.xlane.f32.xlu0 %v4391
    %v4398 = vpop.xlane.xlu0 %4397
    %4399 = vadd.xlane.f32.xlu0 %v4392
    %v4400 = vpop.xlane.xlu0 %4399
    %v4401 = vmul.f32 %v4394, %v454
    %v4402 = vmul.f32 %v4396, %v454
    %v4403 = vmul.f32 %v4398, %v454
    %v4404 = vmul.f32 %v4400, %v454
    %v4405 = vadd.f32 %v4401, 1e-12
    %v4406 = vadd.f32 %v4402, 1e-12
    %v4407 = vadd.f32 %v4403, 1e-12
    %v4408 = vadd.f32 %v4404, 1e-12
    %v4409 = vrsqrt.pop %v4405
    %v4410 = vrsqrt.pop %v4406
    %v4411 = vrsqrt.pop %v4407
    %v4412 = vrsqrt.pop %v4408
    %v4413 = vmul.f32 %v4385, %v4409
    %v4414 = vmul.f32 %v4386, %v4410
    %v4415 = vmul.f32 %v4387, %v4411
    %v4416 = vmul.f32 %v4388, %v4412
    %v4418 = vlaneseq
    %v4419 = vshrl.u32 %v4418, 7
    %v4420 = vsub.s32 0, %v4419
    %v4421 = vrot.slane %v4371, %v4420
    %v4423 = vmul.f32 %v4413, %v4421
    %v4424 = vmul.f32 %v4414, %v4421
    %v4425 = vmul.f32 %v4415, %v4421
    %v4426 = vmul.f32 %v4416, %v4421
    %v4428 = vlaneseq
    %v4429 = vshrl.u32 %v4428, 7
    %v4430 = vsub.s32 0, %v4429
    %v4431 = vrot.slane %v4372, %v4430
    %v4433 = vadd.f32 %v4423, %v4431
    %v4434 = vadd.f32 %v4424, %v4431
    %v4435 = vadd.f32 %v4425, %v4431
    %v4436 = vadd.f32 %v4426, %v4431
    %v4437 = vpack.c.bf16 %v4434, %v4433
    %v4438 = vpack.c.bf16 %v4436, %v4435
    %v4439 = vld [vmem:[%s23] sm:$0xff]
    %v4440 = vld [vmem:[%s23 + $0x8] sm:$0xff]
    %v4441 = vld [vmem:[%s23 + $0x10] sm:$0xff]
    %v4442 = vld [vmem:[%s23 + $0x18] sm:$0xff]
    %v4443 = vld [vmem:[%s23 + $0x20] sm:$0xff]
    %v4444 = vld [vmem:[%s23 + $0x28] sm:$0xff]
    %v4445 = vld [vmem:[%s23 + $0x30] sm:$0xff]
    %v4446 = vld [vmem:[%s23 + $0x38] sm:$0xff]
    %v4447 = vld [vmem:[%s23 + $0x40] sm:$0xff]
    %v4448 = vld [vmem:[%s23 + $0x48] sm:$0xff]
    %v4449 = vld [vmem:[%s23 + $0x50] sm:$0xff]
    %v4450 = vld [vmem:[%s23 + $0x58] sm:$0xff]
    %v4451 = vld [vmem:[%s23 + $0x60] sm:$0xff]
    %v4452 = vld [vmem:[%s23 + $0x68] sm:$0xff]
    %v4453 = vld [vmem:[%s23 + $0x70] sm:$0xff]
    %v4454 = vld [vmem:[%s23 + $0x78] sm:$0xff]
    %v4455 = vld [vmem:[%s23 + $0x80] sm:$0xff]
    %v4456 = vld [vmem:[%s23 + $0x88] sm:$0xff]
    %v4457 = vld [vmem:[%s23 + $0x90] sm:$0xff]
    %v4458 = vld [vmem:[%s23 + $0x98] sm:$0xff]
    %v4459 = vld [vmem:[%s23 + $0xa0] sm:$0xff]
    %v4460 = vld [vmem:[%s23 + $0xa8] sm:$0xff]
    %v4461 = vld [vmem:[%s23 + $0xb0] sm:$0xff]
    %v4462 = vld [vmem:[%s23 + $0xb8] sm:$0xff]
    %v4463 = vld [vmem:[%s23 + $0xc0] sm:$0xff]
    %v4464 = vld [vmem:[%s23 + $0xc8] sm:$0xff]
    %v4465 = vld [vmem:[%s23 + $0xd0] sm:$0xff]
    %v4466 = vld [vmem:[%s23 + $0xd8] sm:$0xff]
    %v4467 = vld [vmem:[%s23 + $0xe0] sm:$0xff]
    %v4468 = vld [vmem:[%s23 + $0xe8] sm:$0xff]
    %v4469 = vld [vmem:[%s23 + $0xf0] sm:$0xff]
    %v4470 = vld [vmem:[%s23 + $0xf8] sm:$0xff]
    %v4471 = vld [vmem:[%s24] sm:$0xf]
    %v4473 = vlaneseq
    %v4474 = vshrl.u32 %v4473, 7
    %v4475 = vsub.s32 0, %v4474
    %v4476 = vrot.slane %v4471, %v4475
    %v4477 = vlaneseq
    %v4478 = vshrl.u32 %v4477, 7
    %v4479 = vsub.s32 1, %v4478
    %v4480 = vrot.slane %v4471, %v4479
    %v4481 = vlaneseq
    %v4482 = vshrl.u32 %v4481, 7
    %v4483 = vsub.s32 2, %v4482
    %v4484 = vrot.slane %v4471, %v4483
    %v4485 = vlaneseq
    %v4486 = vshrl.u32 %v4485, 7
    %v4487 = vsub.s32 3, %v4486
    %v4488 = vrot.slane %v4471, %v4487
    %v4525 = vunpack.c.l.b16 %v4439
    %v4526 = vunpack.c.h.b16 %v4439
    %v4527 = vunpack.c.l.b16 %v4440
    %v4528 = vunpack.c.h.b16 %v4440
    %v4529 = vunpack.c.l.b16 %v4441
    %v4530 = vunpack.c.h.b16 %v4441
    %v4531 = vunpack.c.l.b16 %v4442
    %v4532 = vunpack.c.h.b16 %v4442
    %v4533 = vunpack.c.l.b16 %v4443
    %v4534 = vunpack.c.h.b16 %v4443
    %v4535 = vunpack.c.l.b16 %v4444
    %v4536 = vunpack.c.h.b16 %v4444
    %v4537 = vunpack.c.l.b16 %v4445
    %v4538 = vunpack.c.h.b16 %v4445
    %v4539 = vunpack.c.l.b16 %v4446
    %v4540 = vunpack.c.h.b16 %v4446
    %v4541 = vunpack.c.l.b16 %v4447
    %v4542 = vunpack.c.h.b16 %v4447
    %v4543 = vunpack.c.l.b16 %v4448
    %v4544 = vunpack.c.h.b16 %v4448
    %v4545 = vunpack.c.l.b16 %v4449
    %v4546 = vunpack.c.h.b16 %v4449
    %v4547 = vunpack.c.l.b16 %v4450
    %v4548 = vunpack.c.h.b16 %v4450
    %v4549 = vunpack.c.l.b16 %v4451
    %v4550 = vunpack.c.h.b16 %v4451
    %v4551 = vunpack.c.l.b16 %v4452
    %v4552 = vunpack.c.h.b16 %v4452
    %v4553 = vunpack.c.l.b16 %v4453
    %v4554 = vunpack.c.h.b16 %v4453
    %v4555 = vunpack.c.l.b16 %v4454
    %v4556 = vunpack.c.h.b16 %v4454
    %v4557 = vunpack.c.l.b16 %v4455
    %v4558 = vunpack.c.h.b16 %v4455
    %v4559 = vunpack.c.l.b16 %v4456
    %v4560 = vunpack.c.h.b16 %v4456
    %v4561 = vunpack.c.l.b16 %v4457
    %v4562 = vunpack.c.h.b16 %v4457
    %v4563 = vunpack.c.l.b16 %v4458
    %v4564 = vunpack.c.h.b16 %v4458
    %v4565 = vunpack.c.l.b16 %v4459
    %v4566 = vunpack.c.h.b16 %v4459
    %v4567 = vunpack.c.l.b16 %v4460
    %v4568 = vunpack.c.h.b16 %v4460
    %v4569 = vunpack.c.l.b16 %v4461
    %v4570 = vunpack.c.h.b16 %v4461
    %v4571 = vunpack.c.l.b16 %v4462
    %v4572 = vunpack.c.h.b16 %v4462
    %v4573 = vunpack.c.l.b16 %v4463
    %v4574 = vunpack.c.h.b16 %v4463
    %v4575 = vunpack.c.l.b16 %v4464
    %v4576 = vunpack.c.h.b16 %v4464
    %v4577 = vunpack.c.l.b16 %v4465
    %v4578 = vunpack.c.h.b16 %v4465
    %v4579 = vunpack.c.l.b16 %v4466
    %v4580 = vunpack.c.h.b16 %v4466
    %v4581 = vunpack.c.l.b16 %v4467
    %v4582 = vunpack.c.h.b16 %v4467
    %v4583 = vunpack.c.l.b16 %v4468
    %v4584 = vunpack.c.h.b16 %v4468
    %v4585 = vunpack.c.l.b16 %v4469
    %v4586 = vunpack.c.h.b16 %v4469
    %v4587 = vunpack.c.l.b16 %v4470
    %v4588 = vunpack.c.h.b16 %v4470
    %v4589 = vpack.c.b16 %v4529, %v4525
    %v4590 = vpack.c.b16 %v4530, %v4526
    %v4591 = vpack.c.b16 %v4531, %v4527
    %v4592 = vpack.c.b16 %v4532, %v4528
    %v4593 = vpack.c.b16 %v4537, %v4533
    %v4594 = vpack.c.b16 %v4538, %v4534
    %v4595 = vpack.c.b16 %v4539, %v4535
    %v4596 = vpack.c.b16 %v4540, %v4536
    %v4597 = vpack.c.b16 %v4545, %v4541
    %v4598 = vpack.c.b16 %v4546, %v4542
    %v4599 = vpack.c.b16 %v4547, %v4543
    %v4600 = vpack.c.b16 %v4548, %v4544
    %v4601 = vpack.c.b16 %v4553, %v4549
    %v4602 = vpack.c.b16 %v4554, %v4550
    %v4603 = vpack.c.b16 %v4555, %v4551
    %v4604 = vpack.c.b16 %v4556, %v4552
    %v4605 = vpack.c.b16 %v4561, %v4557
    %v4606 = vpack.c.b16 %v4562, %v4558
    %v4607 = vpack.c.b16 %v4563, %v4559
    %v4608 = vpack.c.b16 %v4564, %v4560
    %v4609 = vpack.c.b16 %v4569, %v4565
    %v4610 = vpack.c.b16 %v4570, %v4566
    %v4611 = vpack.c.b16 %v4571, %v4567
    %v4612 = vpack.c.b16 %v4572, %v4568
    %v4613 = vpack.c.b16 %v4577, %v4573
    %v4614 = vpack.c.b16 %v4578, %v4574
    %v4615 = vpack.c.b16 %v4579, %v4575
    %v4616 = vpack.c.b16 %v4580, %v4576
    %v4617 = vpack.c.b16 %v4585, %v4581
    %v4618 = vpack.c.b16 %v4586, %v4582
    %v4619 = vpack.c.b16 %v4587, %v4583
    %v4620 = vpack.c.b16 %v4588, %v4584
    %4653 = vmatprep.subr.bf16.mxu0 %v4618
    %4654 = vmatpush1.bf16.msra.mxu0 %v4617
    %4655 = vmatprep.subr.bf16.mxu0 %v4614
    %4656 = vmatpush1.bf16.msra.mxu0 %v4613
    %4657 = vmatprep.subr.bf16.mxu0 %v4610
    %4658 = vmatpush1.bf16.msra.mxu0 %v4609
    %4659 = vmatprep.subr.bf16.mxu0 %v4606
    %4660 = vmatpush1.bf16.msra.mxu0 %v4605
    %4661 = vmatprep.subr.bf16.mxu0 %v4602
    %4662 = vmatpush1.bf16.msra.mxu0 %v4601
    %4663 = vmatprep.subr.bf16.mxu0 %v4598
    %4664 = vmatpush1.bf16.msra.mxu0 %v4597
    %4665 = vmatprep.subr.bf16.mxu0 %v4594
    %4666 = vmatpush1.bf16.msra.mxu0 %v4593
    %4667 = vmatprep.subr.bf16.mxu0 %v4590
    %4668 = vmatpush1.bf16.msra.mxu0 %v4589
    %4669 = vmatprep.subr.bf16.mxu0 0
    %4670 = vmatpush2.bf16.msra.mxu0 0
    %4671 = vmatprep.subr.bf16.mxu0 0
    %4672 = vmatpush2.bf16.msra.mxu0 0
    %4673 = vmatprep.subr.bf16.mxu0 0
    %4674 = vmatpush2.bf16.msra.mxu0 0
    %4675 = vmatprep.subr.bf16.mxu0 0
    %4676 = vmatpush2.bf16.msra.mxu0 0
    %4677 = vmatprep.subr.bf16.mxu0 0
    %4678 = vmatpush2.bf16.msra.mxu0 0
    %4679 = vmatprep.subr.bf16.mxu0 0
    %4680 = vmatpush2.bf16.msra.mxu0 0
    %4681 = vmatprep.subr.bf16.mxu0 0
    %4682 = vmatpush2.bf16.msra.mxu0 0
    %4683 = vmatprep.subr.bf16.mxu0 0
    %4684 = vmatpush2.bf16.msra.mxu0 0
    %4685 = vmatprep.mubr.bf16.mxu0 0
    %4686 = vmatmul.mubr.bf16.gmra.mxu0 %v4437
    %v4687 = vpop.f32.mrf.mxu0
    %v4688 = vadd.f32 %v4476, %v4687
    %v4689 = vpop.f32.mrf.mxu0
    %v4690 = vadd.f32 %v4480, %v4689
    %v4691 = vpop.f32.mrf.mxu0
    %v4692 = vadd.f32 %v4476, %v4691
    %v4693 = vpop.f32.mrf.mxu0
    %v4694 = vadd.f32 %v4480, %v4693
    %4695 = vmatprep.mubr.bf16.mxu0 0
    %4696 = vmatmul.mubr.bf16.gmra.mxu0 %v4438
    %v4697 = vpop.f32.mrf.mxu0
    %v4698 = vadd.f32 %v4476, %v4697
    %v4699 = vpop.f32.mrf.mxu0
    %v4700 = vadd.f32 %v4480, %v4699
    %v4701 = vpop.f32.mrf.mxu0
    %v4702 = vadd.f32 %v4476, %v4701
    %v4703 = vpop.f32.mrf.mxu0
    %v4704 = vadd.f32 %v4480, %v4703
    %4705 = vdwg.mxu0
    %4706 = vmatprep.subr.bf16.mxu0 %v4620
    %4707 = vmatpush1.bf16.msra.mxu0 %v4619
    %4708 = vmatprep.subr.bf16.mxu0 %v4616
    %4709 = vmatpush1.bf16.msra.mxu0 %v4615
    %4710 = vmatprep.subr.bf16.mxu0 %v4612
    %4711 = vmatpush1.bf16.msra.mxu0 %v4611
    %4712 = vmatprep.subr.bf16.mxu0 %v4608
    %4713 = vmatpush1.bf16.msra.mxu0 %v4607
    %4714 = vmatprep.subr.bf16.mxu0 %v4604
    %4715 = vmatpush1.bf16.msra.mxu0 %v4603
    %4716 = vmatprep.subr.bf16.mxu0 %v4600
    %4717 = vmatpush1.bf16.msra.mxu0 %v4599
    %4718 = vmatprep.subr.bf16.mxu0 %v4596
    %4719 = vmatpush1.bf16.msra.mxu0 %v4595
    %4720 = vmatprep.subr.bf16.mxu0 %v4592
    %4721 = vmatpush1.bf16.msra.mxu0 %v4591
    %4722 = vmatprep.subr.bf16.mxu0 0
    %4723 = vmatpush2.bf16.msra.mxu0 0
    %4724 = vmatprep.subr.bf16.mxu0 0
    %4725 = vmatpush2.bf16.msra.mxu0 0
    %4726 = vmatprep.subr.bf16.mxu0 0
    %4727 = vmatpush2.bf16.msra.mxu0 0
    %4728 = vmatprep.subr.bf16.mxu0 0
    %4729 = vmatpush2.bf16.msra.mxu0 0
    %4730 = vmatprep.subr.bf16.mxu0 0
    %4731 = vmatpush2.bf16.msra.mxu0 0
    %4732 = vmatprep.subr.bf16.mxu0 0
    %4733 = vmatpush2.bf16.msra.mxu0 0
    %4734 = vmatprep.subr.bf16.mxu0 0
    %4735 = vmatpush2.bf16.msra.mxu0 0
    %4736 = vmatprep.subr.bf16.mxu0 0
    %4737 = vmatpush2.bf16.msra.mxu0 0
    %4738 = vmatprep.mubr.bf16.mxu0 0
    %4739 = vmatmul.mubr.bf16.gmra.mxu0 %v4437
    %v4740 = vpop.f32.mrf.mxu0
    %v4741 = vadd.f32 %v4484, %v4740
    %v4742 = vpop.f32.mrf.mxu0
    %v4743 = vadd.f32 %v4488, %v4742
    %v4744 = vpop.f32.mrf.mxu0
    %v4745 = vadd.f32 %v4484, %v4744
    %v4746 = vpop.f32.mrf.mxu0
    %v4747 = vadd.f32 %v4488, %v4746
    %4748 = vmatprep.mubr.bf16.mxu0 0
    %4749 = vmatmul.mubr.bf16.gmra.mxu0 %v4438
    %v4750 = vpop.f32.mrf.mxu0
    %v4751 = vadd.f32 %v4484, %v4750
    %v4752 = vpop.f32.mrf.mxu0
    %v4753 = vadd.f32 %v4488, %v4752
    %v4754 = vpop.f32.mrf.mxu0
    %v4755 = vadd.f32 %v4484, %v4754
    %v4756 = vpop.f32.mrf.mxu0
    %v4757 = vadd.f32 %v4488, %v4756
    %4758 = vdwg.mxu0
    %v4759 = vmax.f32 %v4688, %v4690
    %v4760 = vmax.f32 %v4759, %v4741
    %v4761 = vmax.f32 %v4760, %v4743
    %4762 = vmax.xlane.f32.xlu0 %v4761
    %v4763 = vpop.xlane.xlu0 %4762
    %v4764 = vmax.f32 %v4692, %v4694
    %v4765 = vmax.f32 %v4764, %v4745
    %v4766 = vmax.f32 %v4765, %v4747
    %4767 = vmax.xlane.f32.xlu0 %v4766
    %v4768 = vpop.xlane.xlu0 %4767
    %v4769 = vmax.f32 %v4698, %v4700
    %v4770 = vmax.f32 %v4769, %v4751
    %v4771 = vmax.f32 %v4770, %v4753
    %4772 = vmax.xlane.f32.xlu0 %v4771
    %v4773 = vpop.xlane.xlu0 %4772
    %v4774 = vmax.f32 %v4702, %v4704
    %v4775 = vmax.f32 %v4774, %v4755
    %v4776 = vmax.f32 %v4775, %v4757
    %4777 = vmax.xlane.f32.xlu0 %v4776
    %v4778 = vpop.xlane.xlu0 %4777
    %v4779 = vsub.f32 %v4688, %v4763
    %v4780 = vsub.f32 %v4690, %v4763
    %v4781 = vsub.f32 %v4741, %v4763
    %v4782 = vsub.f32 %v4743, %v4763
    %v4783 = vsub.f32 %v4692, %v4768
    %v4784 = vsub.f32 %v4694, %v4768
    %v4785 = vsub.f32 %v4745, %v4768
    %v4786 = vsub.f32 %v4747, %v4768
    %v4787 = vsub.f32 %v4698, %v4773
    %v4788 = vsub.f32 %v4700, %v4773
    %v4789 = vsub.f32 %v4751, %v4773
    %v4790 = vsub.f32 %v4753, %v4773
    %v4791 = vsub.f32 %v4702, %v4778
    %v4792 = vsub.f32 %v4704, %v4778
    %v4793 = vsub.f32 %v4755, %v4778
    %v4794 = vsub.f32 %v4757, %v4778
    %v4795 = vmul.f32 %v4779, 1.442695
    %v4796 = vpow.pop %v4795
    %v4797 = vmul.f32 %v4780, 1.442695
    %v4798 = vpow.pop %v4797
    %v4799 = vmul.f32 %v4781, 1.442695
    %v4800 = vpow.pop %v4799
    %v4801 = vmul.f32 %v4782, 1.442695
    %v4802 = vpow.pop %v4801
    %v4803 = vmul.f32 %v4783, 1.442695
    %v4804 = vpow.pop %v4803
    %v4805 = vmul.f32 %v4784, 1.442695
    %v4806 = vpow.pop %v4805
    %v4807 = vmul.f32 %v4785, 1.442695
    %v4808 = vpow.pop %v4807
    %v4809 = vmul.f32 %v4786, 1.442695
    %v4810 = vpow.pop %v4809
    %v4811 = vmul.f32 %v4787, 1.442695
    %v4812 = vpow.pop %v4811
    %v4813 = vmul.f32 %v4788, 1.442695
    %v4814 = vpow.pop %v4813
    %v4815 = vmul.f32 %v4789, 1.442695
    %v4816 = vpow.pop %v4815
    %v4817 = vmul.f32 %v4790, 1.442695
    %v4818 = vpow.pop %v4817
    %v4819 = vmul.f32 %v4791, 1.442695
    %v4820 = vpow.pop %v4819
    %v4821 = vmul.f32 %v4792, 1.442695
    %v4822 = vpow.pop %v4821
    %v4823 = vmul.f32 %v4793, 1.442695
    %v4824 = vpow.pop %v4823
    %v4825 = vmul.f32 %v4794, 1.442695
    %v4826 = vpow.pop %v4825
    %v4827 = vadd.f32 %v4796, %v4798
    %v4828 = vadd.f32 %v4827, %v4800
    %v4829 = vadd.f32 %v4828, %v4802
    %4830 = vadd.xlane.f32.xlu0 %v4829
    %v4831 = vpop.xlane.xlu0 %4830
    %v4832 = vadd.f32 %v4804, %v4806
    %v4833 = vadd.f32 %v4832, %v4808
    %v4834 = vadd.f32 %v4833, %v4810
    %4835 = vadd.xlane.f32.xlu0 %v4834
    %v4836 = vpop.xlane.xlu0 %4835
    %v4837 = vadd.f32 %v4812, %v4814
    %v4838 = vadd.f32 %v4837, %v4816
    %v4839 = vadd.f32 %v4838, %v4818
    %4840 = vadd.xlane.f32.xlu0 %v4839
    %v4841 = vpop.xlane.xlu0 %4840
    %v4842 = vadd.f32 %v4820, %v4822
    %v4843 = vadd.f32 %v4842, %v4824
    %v4844 = vadd.f32 %v4843, %v4826
    %4845 = vadd.xlane.f32.xlu0 %v4844
    %v4846 = vpop.xlane.xlu0 %4845
    %v4847 = vlog2.pop %v4831
    %v4848 = vmul.f32 %v4847, 0.6931472
    %v4849 = vlog2.pop %v4836
    %v4850 = vmul.f32 %v4849, 0.6931472
    %v4851 = vlog2.pop %v4841
    %v4852 = vmul.f32 %v4851, 0.6931472
    %v4853 = vlog2.pop %v4846
    %v4854 = vmul.f32 %v4853, 0.6931472
    %v4855 = vsub.f32 %v4779, %v4848
    %v4856 = vsub.f32 %v4780, %v4848
    %v4857 = vsub.f32 %v4781, %v4848
    %v4858 = vsub.f32 %v4782, %v4848
    %v4859 = vsub.f32 %v4783, %v4850
    %v4860 = vsub.f32 %v4784, %v4850
    %v4861 = vsub.f32 %v4785, %v4850
    %v4862 = vsub.f32 %v4786, %v4850
    %v4863 = vsub.f32 %v4787, %v4852
    %v4864 = vsub.f32 %v4788, %v4852
    %v4865 = vsub.f32 %v4789, %v4852
    %v4866 = vsub.f32 %v4790, %v4852
    %v4867 = vsub.f32 %v4791, %v4854
    %v4868 = vsub.f32 %v4792, %v4854
    %v4869 = vsub.f32 %v4793, %v4854
    %v4870 = vsub.f32 %v4794, %v4854
    %4871 = vst [vmem:[#allocation2] sm:$0xff] %v4855
    %4872 = vst [vmem:[#allocation2 + $0x8] sm:$0xff] %v4856
    %4873 = vst [vmem:[#allocation2 + $0x10] sm:$0xff] %v4857
    %4874 = vst [vmem:[#allocation2 + $0x18] sm:$0xff] %v4858
    %4875 = vst [vmem:[#allocation2 + $0x20] sm:$0xff] %v4859
    %4876 = vst [vmem:[#allocation2 + $0x28] sm:$0xff] %v4860
    %4877 = vst [vmem:[#allocation2 + $0x30] sm:$0xff] %v4861
    %4878 = vst [vmem:[#allocation2 + $0x38] sm:$0xff] %v4862
    %4879 = vst [vmem:[#allocation2 + $0x40] sm:$0xff] %v4863
    %4880 = vst [vmem:[#allocation2 + $0x48] sm:$0xff] %v4864
    %4881 = vst [vmem:[#allocation2 + $0x50] sm:$0xff] %v4865
    %4882 = vst [vmem:[#allocation2 + $0x58] sm:$0xff] %v4866
    %4883 = vst [vmem:[#allocation2 + $0x60] sm:$0xff] %v4867
    %4884 = vst [vmem:[#allocation2 + $0x68] sm:$0xff] %v4868
    %4885 = vst [vmem:[#allocation2 + $0x70] sm:$0xff] %v4869
    %4886 = vst [vmem:[#allocation2 + $0x78] sm:$0xff] %v4870
    // Predicated region
    $region102: #{kcbert_reconstruct_forward.1} parent=1 // pred_check
      _
    $region103: #{kcbert_reconstruct_forward.1} parent=1 // pred_check_branch
      %4888 = sbr.rel (0) target = $region105
    $region104: #{kcbert_reconstruct_forward.1} parent=1 // pred_region
      %s4890 = ssub.s32 2048, 2048
      %4891 = vsyncadd [#allocation3], %s4890
      %s4892 = sshll.u32 [#allocation2], 4
      %s4893 = int_to_ptr.vmem [resolvable:$true] %s4892
      %4898 = dma.vmem_to_hbm [thread:$0]  %s4893, 2048, %s25, [#allocation3], 512, 512, 32
    $region105: #{kcbert_reconstruct_forward.1} parent=1 // pred_fallthru
      _
    // Predicated region
    $region106: #{kcbert_reconstruct_forward.1} parent=1 // pred_check
      _
    $region107: #{kcbert_reconstruct_forward.1} parent=1 // pred_check_branch
      %4900 = sbr.rel (0) target = $region109
    $region108: #{kcbert_reconstruct_forward.1} parent=1 // pred_region
      %4901 = dma.done [#allocation3], 2048
    $region109: #{kcbert_reconstruct_forward.1} parent=1 // pred_fallthru
      _
    %4902 = vsyncpa [#allocation3], 1

</llo_original>
